<compile_context>
chip_gen: v7x
topology: tpu7x:2x2x1
jax: 0.10.0
libtpu: 0.0.40
codegen_flags: <defaults>
</compile_context>

<pallas_src>
import jax
import jax.numpy as jnp
import numpy as np
from jax import lax
from jax.experimental import pallas as pl
from jax.experimental.pallas import tpu as pltpu

NEG_SLOPE = 0.01   # PyTorch LeakyReLU default negative_slope
BN_EPS = 1e-5      # PyTorch BatchNorm2d default eps


def _leaky(x):
    # max(x, a*x) == LeakyReLU(x) for 0 <= a <= 1 (one mul + one max, no select).
    return jnp.maximum(x, NEG_SLOPE * x)


def disc_fused_kernel(p_ref, w1_ref, w2_ref, vec_ref, b3_ref, o_ref):
    vec = vec_ref[...]               # (4, 256): rows = [b1 tiled x4 taps, gamma, beta, w3]
    b1v = vec[0:1, :]
    g = vec[1:2, :]
    be = vec[2:3, :]
    w3r = vec[3:4, :]

    # conv1 for all four conv2 taps at once: (M2,16) @ block-diagonal (16,256) + bias, LeakyReLU
    h1 = _leaky(jnp.dot(p_ref[...], w1_ref[...], preferred_element_type=jnp.float32) + b1v)

    # conv2 as matmul: (M2,256) @ (256,256).  NOTE: conv2's bias b2 is mathematically
    # cancelled by the train-mode BatchNorm mean subtraction, so it is never added here.
    z = jnp.dot(h1, w2_ref[...], preferred_element_type=jnp.float32)

    # BatchNorm2d (training / batch stats, biased variance), single pass over z, with the
    # affine folded into one per-channel scale/shift.  Stats are over ALL rows -> correct
    # only because this kernel is a single un-gridded block.
    inv_m = 1.0 / jnp.float32(z.shape[0])
    mean = jnp.sum(z, axis=0, keepdims=True) * inv_m
    var = jnp.sum(z * z, axis=0, keepdims=True) * inv_m - mean * mean
    scale = g * lax.rsqrt(var + BN_EPS)
    shift = be - mean * scale
    a = _leaky(z * scale + shift)

    # 1x1 conv (256 -> 1): VPU multiply + lane reduce (keeps the degenerate N=1 matmul off
    # the MXU); b3 is a scalar in SMEM (a (1,1) VMEM operand would pad to a full tile).
    o_ref[...] = jnp.sum(a * w3r, axis=-1, keepdims=True) + b3_ref[0]


def discriminator_forward(image, params):
    """image: (B, H, W, 1) float32  ->  (B, H//4, W//4, 1) float32."""
    w1, b1, w2, b2, gamma, beta, w3, b3 = params  # PyTorch (O, I, kH, kW) conv layouts
    del b2  # exactly cancelled by the train-mode BatchNorm mean subtraction (see kernel)
    B, H, W, _ = image.shape
    H2, W2 = H // 4, W // 4
    M2 = B * H2 * W2

    # image.view(B, 1, H, W): C_in == 1, so this is a pure reshape.
    x = image.reshape(B, H, W).astype(jnp.float32)

    # ---- single 4x4 / stride-4 space-to-depth; column order (kh2, kw2, kh1, kw1) ----
    # (allow_input_fusion below lets XLA fuse this into the pallas_call prologue.)
    p = x.reshape(B, H2, 2, 2, W2, 2, 2)              # (b, ho, kh2, kh1, wo, kw2, kw1)
    p = p.transpose(0, 1, 4, 2, 5, 3, 6).reshape(M2, 16)

    # conv1 weight as block-diagonal (16, 256): each conv2 tap t gets the same (4,64) block.
    w1m = w1.reshape(64, 4).T                                    # (4,64), rows (kh1,kw1)
    w1_big = jnp.kron(jnp.eye(4, dtype=w1m.dtype), w1m)         # (16,256)

    # conv2 weight with row order (kh2, kw2, c_in) to match the h1 column layout.
    w2m = w2.transpose(2, 3, 1, 0).reshape(256, 256)

    # One (4,256) operand instead of five separately padded+DMA'd (1,256) tiles.
    vec = jnp.stack([jnp.tile(b1, 4), gamma, beta, w3.reshape(256)], axis=0)
    b3s = b3.reshape(1)                                          # scalar bias -> SMEM

    vmem = pl.BlockSpec(memory_space=pltpu.MemorySpace.VMEM)
    smem = pl.BlockSpec(memory_space=pltpu.MemorySpace.SMEM)

    out = pl.pallas_call(
        disc_fused_kernel,
        out_shape=jax.ShapeDtypeStruct((M2, 1), jnp.float32),
        in_specs=[vmem, vmem, vmem, vmem, smem],
        out_specs=vmem,
        compiler_params=pltpu.CompilerParams(
            # allow the space-to-depth producer of p to fuse into the kernel's prologue
            allow_input_fusion=[True, False, False, False, False]),
    )(p, w1_big, w2m, vec, b3s)

    # h.view(B, H2, W2, 1): output channels == 1, so this is a pure reshape.
    return out.reshape(B, H2, W2, 1)


def ref_forward(image, params):
    """Pure-JAX reference using lax.conv (matches the PyTorch forward in train mode)."""
    w1, b1, w2, b2, gamma, beta, w3, b3 = params
    B, H, W, _ = image.shape
    x = image.reshape(B, 1, H, W)
    dn = ("NCHW", "OIHW", "NCHW")
    h = lax.conv_general_dilated(x, w1, (2, 2), "VALID", dimension_numbers=dn)
    h = h + b1[None, :, None, None]
    h = jnp.where(h > 0, h, NEG_SLOPE * h)
    h = lax.conv_general_dilated(h, w2, (2, 2), "VALID", dimension_numbers=dn)
    h = h + b2[None, :, None, None]
    mean = h.mean(axis=(0, 2, 3), keepdims=True)
    var = ((h - mean) ** 2).mean(axis=(0, 2, 3), keepdims=True)
    h = (h - mean) / jnp.sqrt(var + BN_EPS)
    h = h * gamma[None, :, None, None] + beta[None, :, None, None]
    h = jnp.where(h > 0, h, NEG_SLOPE * h)
    h = lax.conv_general_dilated(h, w3, (1, 1), "VALID", dimension_numbers=dn)
    h = h + b3[None, :, None, None]
    return h.reshape(B, h.shape[2], h.shape[3], 1)


if __name__ == "__main__":
    key = jax.random.PRNGKey(0)
    ks = jax.random.split(key, 9)

    B, H, W = 2, 64, 84  # docstring shape: (batch, 64, 84, 1)
    image = jax.random.normal(ks[0], (B, H, W, 1), jnp.float32)

    # Deterministic synthetic parameters (PyTorch layouts: (O, I, kH, kW) for convs).
    w1 = 0.1 * jax.random.normal(ks[1], (64, 1, 2, 2), jnp.float32)
    b1 = 0.1 * jax.random.normal(ks[2], (64,), jnp.float32)
    w2 = 0.05 * jax.random.normal(ks[3], (256, 64, 2, 2), jnp.float32)
    b2 = 0.1 * jax.random.normal(ks[4], (256,), jnp.float32)
    gamma = jnp.ones((256,), jnp.float32) + 0.1 * jax.random.normal(ks[5], (256,), jnp.float32)
    beta = 0.1 * jax.random.normal(ks[6], (256,), jnp.float32)
    w3 = 0.1 * jax.random.normal(ks[7], (1, 256, 1, 1), jnp.float32)
    b3 = 0.1 * jax.random.normal(ks[8], (1,), jnp.float32)
    params = (w1, b1, w2, b2, gamma, beta, w3, b3)

    out = jax.jit(discriminator_forward)(image, params)
    out = jax.block_until_ready(out)
    assert out.shape == (B, H // 4, W // 4, 1), out.shape

    ref = ref_forward(image, params)
    np.testing.assert_allclose(np.asarray(out), np.asarray(ref), rtol=5e-4, atol=1e-3)

    print("KERNEL_OK")
</pallas_src>

<mosaic_0001>
module attributes {stable_mosaic.version = 11 : i64} {
  func.func @disc_fused_kernel(%arg0: memref<672x16xf32, #tpu.memory_space<vmem>>, %arg1: memref<16x256xf32, #tpu.memory_space<vmem>>, %arg2: memref<256x256xf32, #tpu.memory_space<vmem>>, %arg3: memref<4x256xf32, #tpu.memory_space<vmem>>, %arg4: memref<1xf32, #tpu.memory_space<smem>>, %arg5: memref<672x1xf32, #tpu.memory_space<vmem>>) attributes {dimension_semantics = [], scalar_prefetch = 0 : i64, scratch_operands = 0 : i64, tpu.core_type = #tpu.core_type<tc>} {
    %c0 = arith.constant 0 : index
    %c0_0 = arith.constant 0 : index
    %0 = vector.load %arg3[%c0, %c0_0] : memref<4x256xf32, #tpu.memory_space<vmem>>, vector<4x256xf32>
    %1 = vector.extract_strided_slice %0 {offsets = [0, 0], sizes = [1, 256], strides = [1, 1]} : vector<4x256xf32> to vector<1x256xf32>
    %2 = vector.extract_strided_slice %0 {offsets = [1, 0], sizes = [1, 256], strides = [1, 1]} : vector<4x256xf32> to vector<1x256xf32>
    %3 = vector.extract_strided_slice %0 {offsets = [2, 0], sizes = [1, 256], strides = [1, 1]} : vector<4x256xf32> to vector<1x256xf32>
    %4 = vector.extract_strided_slice %0 {offsets = [3, 0], sizes = [1, 256], strides = [1, 1]} : vector<4x256xf32> to vector<1x256xf32>
    %c0_1 = arith.constant 0 : index
    %c0_2 = arith.constant 0 : index
    %5 = vector.load %arg0[%c0_1, %c0_2] : memref<672x16xf32, #tpu.memory_space<vmem>>, vector<672x16xf32>
    %c0_3 = arith.constant 0 : index
    %c0_4 = arith.constant 0 : index
    %6 = vector.load %arg1[%c0_3, %c0_4] : memref<16x256xf32, #tpu.memory_space<vmem>>, vector<16x256xf32>
    %cst = arith.constant dense<0.000000e+00> : vector<672x256xf32>
    %7 = tpu.matmul %5, %6, %cst {dimension_numbers = #tpu.dot_dimension_numbers<[1], [0], [0], [1], [0, 0, 1, 1], [], []>} : vector<672x16xf32>, vector<16x256xf32>, vector<672x256xf32> -> vector<672x256xf32>
    %8 = vector.broadcast %1 : vector<1x256xf32> to vector<672x256xf32>
    %9 = arith.addf %7, %8 : vector<672x256xf32>
    %cst_5 = arith.constant 0.00999999977 : f32
    %10 = vector.broadcast %cst_5 : f32 to vector<672x256xf32>
    %11 = arith.mulf %10, %9 : vector<672x256xf32>
    %12 = arith.maximumf %9, %11 : vector<672x256xf32>
    %c0_6 = arith.constant 0 : index
    %c0_7 = arith.constant 0 : index
    %13 = vector.load %arg2[%c0_6, %c0_7] : memref<256x256xf32, #tpu.memory_space<vmem>>, vector<256x256xf32>
    %cst_8 = arith.constant dense<0.000000e+00> : vector<672x256xf32>
    %14 = tpu.matmul %12, %13, %cst_8 {dimension_numbers = #tpu.dot_dimension_numbers<[1], [0], [0], [1], [0, 0, 1, 1], [], []>} : vector<672x256xf32>, vector<256x256xf32>, vector<672x256xf32> -> vector<672x256xf32>
    %cst_9 = arith.constant 1.000000e+00 : f32
    %cst_10 = arith.constant 6.720000e+02 : f32
    %15 = arith.divf %cst_9, %cst_10 : f32
    %cst_11 = arith.constant dense<0.000000e+00> : vector<256xf32>
    %16 = vector.multi_reduction <add>, %14, %cst_11 [0] : vector<672x256xf32> to vector<256xf32>
    %17 = vector.shape_cast %16 : vector<256xf32> to vector<1x256xf32>
    %18 = vector.broadcast %15 : f32 to vector<1x256xf32>
    %19 = arith.mulf %17, %18 : vector<1x256xf32>
    %20 = arith.mulf %14, %14 : vector<672x256xf32>
    %cst_12 = arith.constant dense<0.000000e+00> : vector<256xf32>
    %21 = vector.multi_reduction <add>, %20, %cst_12 [0] : vector<672x256xf32> to vector<256xf32>
    %22 = vector.shape_cast %21 : vector<256xf32> to vector<1x256xf32>
    %23 = vector.broadcast %15 : f32 to vector<1x256xf32>
    %24 = arith.mulf %22, %23 : vector<1x256xf32>
    %25 = arith.mulf %19, %19 : vector<1x256xf32>
    %26 = arith.subf %24, %25 : vector<1x256xf32>
    %cst_13 = arith.constant 9.99999974E-6 : f32
    %27 = vector.broadcast %cst_13 : f32 to vector<1x256xf32>
    %28 = arith.addf %26, %27 : vector<1x256xf32>
    %29 = math.rsqrt %28 : vector<1x256xf32>
    %30 = arith.mulf %2, %29 : vector<1x256xf32>
    %31 = arith.mulf %19, %30 : vector<1x256xf32>
    %32 = arith.subf %3, %31 : vector<1x256xf32>
    %33 = vector.broadcast %30 : vector<1x256xf32> to vector<672x256xf32>
    %34 = arith.mulf %14, %33 : vector<672x256xf32>
    %35 = vector.broadcast %32 : vector<1x256xf32> to vector<672x256xf32>
    %36 = arith.addf %34, %35 : vector<672x256xf32>
    %cst_14 = arith.constant 0.00999999977 : f32
    %37 = vector.broadcast %cst_14 : f32 to vector<672x256xf32>
    %38 = arith.mulf %37, %36 : vector<672x256xf32>
    %39 = arith.maximumf %36, %38 : vector<672x256xf32>
    %40 = vector.broadcast %4 : vector<1x256xf32> to vector<672x256xf32>
    %41 = arith.mulf %39, %40 : vector<672x256xf32>
    %cst_15 = arith.constant dense<0.000000e+00> : vector<672xf32>
    %42 = vector.multi_reduction <add>, %41, %cst_15 [1] : vector<672x256xf32> to vector<672xf32>
    %43 = vector.shape_cast %42 : vector<672xf32> to vector<672x1xf32>
    %c0_16 = arith.constant 0 : index
    %44 = memref.load %arg4[%c0_16] : memref<1xf32, #tpu.memory_space<smem>>
    %45 = vector.broadcast %44 : f32 to vector<672x1xf32>
    %46 = arith.addf %43, %45 : vector<672x1xf32>
    %c0_17 = arith.constant 0 : index
    %c0_18 = arith.constant 0 : index
    %47 = vector.load %arg5[%c0_17, %c0_18] : memref<672x1xf32, #tpu.memory_space<vmem>>, vector<672x1xf32>
    tpu.vector_store %arg5[%c0_17, %c0_18], %46 {strides = array<i32>} : memref<672x1xf32, #tpu.memory_space<vmem>>, vector<672x1xf32>,
    return
  }
}

</mosaic_0001>

<llo_original>
// kernel: tile.8
$region0: #{tile.8}
  #allocation0 [shape = 's32[1]{0}', space=sflag, size = 0x4, scoped, tag = 'scoped memory for tile.8']
  %s0 = inlined_call_operand.vmem [shape: f32[64], index: 0, kind: input, shape index: {}]
  %s1 = inlined_call_operand.vmem [shape: f32[4,64], index: 1, kind: output, shape index: {}]
  // Predicated region
  $region2: #{tile.8} parent=0 // pred_check
    _
  $region3: #{tile.8} parent=0 // pred_check_branch
    %3 = sbr.rel (0) target = $region5
  $region4: #{tile.8} parent=0 // pred_region
    _
  $region5: #{tile.8} parent=0 // pred_fallthru
    _
  %v4 = vld [vmem:[%s0] ss:$0 sm:$0xff]
  %5 = vst [vmem:[%s1] sm:$0xf] %v4

// kernel: tile.9
$region0: #{tile.9}
  %s0 = inlined_call_operand.vmem [shape: f32[4,64], index: 0, kind: input, shape index: {}]
  %s1 = inlined_call_operand.vmem [shape: f32[1,256], index: 1, kind: output, shape index: {}]
  $region1: #{tile.9} parent=0
    #allocation0 [shape = 'u8[8192]{0}', space=vmem, size = 0x2000, scoped, tag = 'scoped mem for output reshape']
    #allocation1 [shape = 'u8[4096]{0}', space=vmem, size = 0x1000, scoped, tag = 'scoped mem for input reshape']
    %s3 = sshllo.u32 0, 4
    %v4 = vld [vmem:[%s0] sm:%s3]
    %5 = vst [vmem:[#allocation1] sm:%s3] %v4
    %s6 = smov 3
    %v7 = vld [vmem:[#allocation1] ss:$2 sm:%s6]
    %vm8 = vcmask 523264
    %9 = vst.msk [vmem:[#allocation0] ss:$8 sm:$0x3] %vm8, %v7
    %s10 = scalar_lea.vmem [#allocation1], 1
    %s11 = smov 3
    %v12 = vld [vmem:[%s10] ss:$2 sm:%s11]
    %13 = vrot.lane.b32.xlu0 %v12, 64
    %v14 = vpop.permute.xlu0 %13
    %vm15 = vcmask 1048064
    %16 = vst.msk [vmem:[#allocation0] ss:$8 sm:$0x3] %vm15, %v14
    %s18 = sshllo.u32 0, 1
    %v20 = vld [vmem:[#allocation0] sm:%s18]
    %s21 = sshllo.u32 0, 1
    %22 = vst [vmem:[%s1] sm:%s21] %v20
    %s23 = scalar_lea.vmem [#allocation0], 8
    %v24 = vld [vmem:[%s23] sm:%s18]
    %s25 = sshllo.u32 0, 1
    %s26 = scalar_lea.vmem %s1, 1
    %27 = vst [vmem:[%s26] sm:%s25] %v24

// kernel: discriminator_forward.1
$region0: #{discriminator_forward.1}
  #allocation0 [shape = 'u32[]', space=smem, size = 0x4, offset = 0x4, fixed_abs, tag = 'smem constant byte address 0x4 - core index']
  #allocation1 [shape = 'u32[144,128]{1,0:T(1,128)}', space=vmem, size = 0x12000, scoped, tag = 'internal scratch']
  #allocation2 [shape = 'f32[1]{0:T(128)S(6)}', space=smem, size = 0x200, scoped, tag = 'scoped memory for discriminator_forward.1']
  %s0 = inlined_call_operand.vmem [shape: f32[672,16], index: 0, kind: input, shape index: {}]
  %s1 = inlined_call_operand.vmem [shape: f32[16,256], index: 1, kind: input, shape index: {}]
  %s2 = inlined_call_operand.vmem [shape: f32[256,256], index: 2, kind: input, shape index: {}]
  %s3 = inlined_call_operand.vmem [shape: f32[4,256], index: 3, kind: input, shape index: {}]
  %s4 = inlined_call_operand.<no memory space> [shape: f32[1], index: 4, kind: input, shape index: {}]
  %s5 = inlined_call_operand.vmem [shape: f32[672,1], index: 5, kind: output, shape index: {}]
  %s6 = sld [smem:[#allocation0]]
  $region30: #{discriminator_forward.1} parent=0
    _
  %s8 = ssub.s32 1, %s6
  %s9 = scalar_select 0, %s8, %s6
  %10 = sst [smem:[#allocation2]] %s4
  // Predicated region
  $region2: #{discriminator_forward.1} parent=0 // pred_check
    _
  $region3: #{discriminator_forward.1} parent=0 // pred_check_branch
    %12 = sbr.rel (0) target = $region5
  $region4: #{discriminator_forward.1} parent=0 // pred_region
    _
  $region5: #{discriminator_forward.1} parent=0 // pred_fallthru
    _
  // Predicated region
  $region6: #{discriminator_forward.1} parent=0 // pred_check
    _
  $region7: #{discriminator_forward.1} parent=0 // pred_check_branch
    %14 = sbr.rel (0) target = $region9
  $region8: #{discriminator_forward.1} parent=0 // pred_region
    _
  $region9: #{discriminator_forward.1} parent=0 // pred_fallthru
    _
  // Predicated region
  $region10: #{discriminator_forward.1} parent=0 // pred_check
    _
  $region11: #{discriminator_forward.1} parent=0 // pred_check_branch
    %16 = sbr.rel (0) target = $region13
  $region12: #{discriminator_forward.1} parent=0 // pred_region
    _
  $region13: #{discriminator_forward.1} parent=0 // pred_fallthru
    _
  // Predicated region
  $region14: #{discriminator_forward.1} parent=0 // pred_check
    _
  $region15: #{discriminator_forward.1} parent=0 // pred_check_branch
    %18 = sbr.rel (0) target = $region17
  $region16: #{discriminator_forward.1} parent=0 // pred_region
    _
  $region17: #{discriminator_forward.1} parent=0 // pred_fallthru
    _
  // Predicated region
  $region18: #{discriminator_forward.1} parent=0 // pred_check
    _
  $region19: #{discriminator_forward.1} parent=0 // pred_check_branch
    %20 = sbr.rel (0) target = $region21
  $region20: #{discriminator_forward.1} parent=0 // pred_region
    _
  $region21: #{discriminator_forward.1} parent=0 // pred_fallthru
    _
  %v21 = vld [vmem:[%s3] sm:$0xff]
  %v22 = vld [vmem:[%s0] sm:$0xff]
  %v23 = vld [vmem:[%s0 + $0x8] sm:$0xff]
  %v24 = vld [vmem:[%s0 + $0x10] sm:$0xff]
  %v25 = vld [vmem:[%s0 + $0x18] sm:$0xff]
  %v26 = vld [vmem:[%s0 + $0x20] sm:$0xff]
  %v27 = vld [vmem:[%s0 + $0x28] sm:$0xff]
  %v28 = vld [vmem:[%s0 + $0x30] sm:$0xff]
  %v29 = vld [vmem:[%s0 + $0x38] sm:$0xff]
  %v30 = vld [vmem:[%s0 + $0x40] sm:$0xff]
  %v31 = vld [vmem:[%s0 + $0x48] sm:$0xff]
  %v32 = vld [vmem:[%s0 + $0x50] sm:$0xff]
  %v33 = vld [vmem:[%s0 + $0x58] sm:$0xff]
  %v34 = vld [vmem:[%s0 + $0x60] sm:$0xff]
  %v35 = vld [vmem:[%s0 + $0x68] sm:$0xff]
  %v36 = vld [vmem:[%s0 + $0x70] sm:$0xff]
  %v37 = vld [vmem:[%s0 + $0x78] sm:$0xff]
  %v38 = vld [vmem:[%s0 + $0x80] sm:$0xff]
  %v39 = vld [vmem:[%s0 + $0x88] sm:$0xff]
  %v40 = vld [vmem:[%s0 + $0x90] sm:$0xff]
  %v41 = vld [vmem:[%s0 + $0x98] sm:$0xff]
  %v42 = vld [vmem:[%s0 + $0xa0] sm:$0xff]
  %v43 = vld [vmem:[%s0 + $0xa8] sm:$0xff]
  %v44 = vld [vmem:[%s0 + $0xb0] sm:$0xff]
  %v45 = vld [vmem:[%s0 + $0xb8] sm:$0xff]
  %v46 = vld [vmem:[%s0 + $0xc0] sm:$0xff]
  %v47 = vld [vmem:[%s0 + $0xc8] sm:$0xff]
  %v48 = vld [vmem:[%s0 + $0xd0] sm:$0xff]
  %v49 = vld [vmem:[%s0 + $0xd8] sm:$0xff]
  %v50 = vld [vmem:[%s0 + $0xe0] sm:$0xff]
  %v51 = vld [vmem:[%s0 + $0xe8] sm:$0xff]
  %v52 = vld [vmem:[%s0 + $0xf0] sm:$0xff]
  %v53 = vld [vmem:[%s0 + $0xf8] sm:$0xff]
  %v54 = vld [vmem:[%s0 + $0x100] sm:$0xff]
  %v55 = vld [vmem:[%s0 + $0x108] sm:$0xff]
  %v56 = vld [vmem:[%s0 + $0x110] sm:$0xff]
  %v57 = vld [vmem:[%s0 + $0x118] sm:$0xff]
  %v58 = vld [vmem:[%s0 + $0x120] sm:$0xff]
  %v59 = vld [vmem:[%s0 + $0x128] sm:$0xff]
  %v60 = vld [vmem:[%s0 + $0x130] sm:$0xff]
  %v61 = vld [vmem:[%s0 + $0x138] sm:$0xff]
  %v62 = vld [vmem:[%s0 + $0x140] sm:$0xff]
  %v63 = vld [vmem:[%s0 + $0x148] sm:$0xff]
  %v64 = vld [vmem:[%s0 + $0x150] sm:$0xff]
  %v65 = vld [vmem:[%s0 + $0x158] sm:$0xff]
  %v66 = vld [vmem:[%s0 + $0x160] sm:$0xff]
  %v67 = vld [vmem:[%s0 + $0x168] sm:$0xff]
  %v68 = vld [vmem:[%s0 + $0x170] sm:$0xff]
  %v69 = vld [vmem:[%s0 + $0x178] sm:$0xff]
  %v70 = vld [vmem:[%s0 + $0x180] sm:$0xff]
  %v71 = vld [vmem:[%s0 + $0x188] sm:$0xff]
  %v72 = vld [vmem:[%s0 + $0x190] sm:$0xff]
  %v73 = vld [vmem:[%s0 + $0x198] sm:$0xff]
  %v74 = vld [vmem:[%s0 + $0x1a0] sm:$0xff]
  %v75 = vld [vmem:[%s0 + $0x1a8] sm:$0xff]
  %v76 = vld [vmem:[%s0 + $0x1b0] sm:$0xff]
  %v77 = vld [vmem:[%s0 + $0x1b8] sm:$0xff]
  %v78 = vld [vmem:[%s0 + $0x1c0] sm:$0xff]
  %v79 = vld [vmem:[%s0 + $0x1c8] sm:$0xff]
  %v80 = vld [vmem:[%s0 + $0x1d0] sm:$0xff]
  %v81 = vld [vmem:[%s0 + $0x1d8] sm:$0xff]
  %v82 = vld [vmem:[%s0 + $0x1e0] sm:$0xff]
  %v83 = vld [vmem:[%s0 + $0x1e8] sm:$0xff]
  %v84 = vld [vmem:[%s0 + $0x1f0] sm:$0xff]
  %v85 = vld [vmem:[%s0 + $0x1f8] sm:$0xff]
  %v86 = vld [vmem:[%s0 + $0x200] sm:$0xff]
  %v87 = vld [vmem:[%s0 + $0x208] sm:$0xff]
  %v88 = vld [vmem:[%s0 + $0x210] sm:$0xff]
  %v89 = vld [vmem:[%s0 + $0x218] sm:$0xff]
  %v90 = vld [vmem:[%s0 + $0x220] sm:$0xff]
  %v91 = vld [vmem:[%s0 + $0x228] sm:$0xff]
  %v92 = vld [vmem:[%s0 + $0x230] sm:$0xff]
  %v93 = vld [vmem:[%s0 + $0x238] sm:$0xff]
  %v94 = vld [vmem:[%s0 + $0x240] sm:$0xff]
  %v95 = vld [vmem:[%s0 + $0x248] sm:$0xff]
  %v96 = vld [vmem:[%s0 + $0x250] sm:$0xff]
  %v97 = vld [vmem:[%s0 + $0x258] sm:$0xff]
  %v98 = vld [vmem:[%s0 + $0x260] sm:$0xff]
  %v99 = vld [vmem:[%s0 + $0x268] sm:$0xff]
  %v100 = vld [vmem:[%s0 + $0x270] sm:$0xff]
  %v101 = vld [vmem:[%s0 + $0x278] sm:$0xff]
  %v102 = vld [vmem:[%s0 + $0x280] sm:$0xff]
  %v103 = vld [vmem:[%s0 + $0x288] sm:$0xff]
  %v104 = vld [vmem:[%s0 + $0x290] sm:$0xff]
  %v105 = vld [vmem:[%s0 + $0x298] sm:$0xff]
  %v106 = vld [vmem:[%s1] sm:$0xff]
  %v107 = vld [vmem:[%s1 + $0x8] sm:$0xff]
  %v108 = vld [vmem:[%s1 + $0x10] sm:$0xff]
  %v109 = vld [vmem:[%s1 + $0x18] sm:$0xff]
  %v111 = vlaneseq
  %v112 = vshrl.u32 %v111, 7
  %v113 = vsub.s32 0, %v112
  %v114 = vrot.slane %v21, %v113
  %v115 = vlaneseq
  %v116 = vshrl.u32 %v115, 7
  %v117 = vsub.s32 4, %v116
  %v118 = vrot.slane %v21, %v117
  %v121 = vlaneseq
  %v122 = vshrl.u32 %v121, 7
  %v123 = vsub.s32 0, %v122
  %v124 = vrot.slane %v114, %v123
  %v125 = vlaneseq
  %v126 = vshrl.u32 %v125, 7
  %v127 = vsub.s32 0, %v126
  %v128 = vrot.slane %v118, %v127
  %vm129 = vcmask 130048
  %v131 = vsel %vm129, %v22, 0
  %v134 = vsel %vm129, %v23, 0
  %v137 = vsel %vm129, %v24, 0
  %v140 = vsel %vm129, %v25, 0
  %v143 = vsel %vm129, %v26, 0
  %v146 = vsel %vm129, %v27, 0
  %v149 = vsel %vm129, %v28, 0
  %v152 = vsel %vm129, %v29, 0
  %v155 = vsel %vm129, %v30, 0
  %v158 = vsel %vm129, %v31, 0
  %v161 = vsel %vm129, %v32, 0
  %v164 = vsel %vm129, %v33, 0
  %v167 = vsel %vm129, %v34, 0
  %v170 = vsel %vm129, %v35, 0
  %v173 = vsel %vm129, %v36, 0
  %v176 = vsel %vm129, %v37, 0
  %v179 = vsel %vm129, %v38, 0
  %v182 = vsel %vm129, %v39, 0
  %v185 = vsel %vm129, %v40, 0
  %v188 = vsel %vm129, %v41, 0
  %v191 = vsel %vm129, %v42, 0
  %v194 = vsel %vm129, %v43, 0
  %v197 = vsel %vm129, %v44, 0
  %v200 = vsel %vm129, %v45, 0
  %v203 = vsel %vm129, %v46, 0
  %v206 = vsel %vm129, %v47, 0
  %v209 = vsel %vm129, %v48, 0
  %v212 = vsel %vm129, %v49, 0
  %v215 = vsel %vm129, %v50, 0
  %v218 = vsel %vm129, %v51, 0
  %v221 = vsel %vm129, %v52, 0
  %v224 = vsel %vm129, %v53, 0
  %v227 = vsel %vm129, %v54, 0
  %v230 = vsel %vm129, %v55, 0
  %v233 = vsel %vm129, %v56, 0
  %v236 = vsel %vm129, %v57, 0
  %v239 = vsel %vm129, %v58, 0
  %v242 = vsel %vm129, %v59, 0
  %v245 = vsel %vm129, %v60, 0
  %v248 = vsel %vm129, %v61, 0
  %v251 = vsel %vm129, %v62, 0
  %v254 = vsel %vm129, %v63, 0
  %v257 = vsel %vm129, %v64, 0
  %v260 = vsel %vm129, %v65, 0
  %v263 = vsel %vm129, %v66, 0
  %v266 = vsel %vm129, %v67, 0
  %v269 = vsel %vm129, %v68, 0
  %v272 = vsel %vm129, %v69, 0
  %v275 = vsel %vm129, %v70, 0
  %v278 = vsel %vm129, %v71, 0
  %v281 = vsel %vm129, %v72, 0
  %v284 = vsel %vm129, %v73, 0
  %v287 = vsel %vm129, %v74, 0
  %v290 = vsel %vm129, %v75, 0
  %v293 = vsel %vm129, %v76, 0
  %v296 = vsel %vm129, %v77, 0
  %v299 = vsel %vm129, %v78, 0
  %v302 = vsel %vm129, %v79, 0
  %v305 = vsel %vm129, %v80, 0
  %v308 = vsel %vm129, %v81, 0
  %v311 = vsel %vm129, %v82, 0
  %v314 = vsel %vm129, %v83, 0
  %v317 = vsel %vm129, %v84, 0
  %v320 = vsel %vm129, %v85, 0
  %v323 = vsel %vm129, %v86, 0
  %v326 = vsel %vm129, %v87, 0
  %v329 = vsel %vm129, %v88, 0
  %v332 = vsel %vm129, %v89, 0
  %v335 = vsel %vm129, %v90, 0
  %v338 = vsel %vm129, %v91, 0
  %v341 = vsel %vm129, %v92, 0
  %v344 = vsel %vm129, %v93, 0
  %v347 = vsel %vm129, %v94, 0
  %v350 = vsel %vm129, %v95, 0
  %v353 = vsel %vm129, %v96, 0
  %v356 = vsel %vm129, %v97, 0
  %v359 = vsel %vm129, %v98, 0
  %v362 = vsel %vm129, %v99, 0
  %v365 = vsel %vm129, %v100, 0
  %v368 = vsel %vm129, %v101, 0
  %v371 = vsel %vm129, %v102, 0
  %v374 = vsel %vm129, %v103, 0
  %v377 = vsel %vm129, %v104, 0
  %v380 = vsel %vm129, %v105, 0
  %382 = vmatprep.subr.mxu0 %v107
  %383 = vmatpush1.msra.mxu0 %v106
  %384 = vmatprep.subr.mxu0 %v109
  %385 = vmatpush1.msra.mxu0 %v108
  %386 = vmatprep.subr.mxu0 0.0
  %387 = vmatpush1.msra.mxu0 0.0
  %388 = vmatprep.subr.mxu0 0.0
  %389 = vmatpush1.msra.mxu0 0.0
  %390 = vmatprep.subr.mxu0 0.0
  %391 = vmatpush1.msra.mxu0 0.0
  %392 = vmatprep.subr.mxu0 0.0
  %393 = vmatpush1.msra.mxu0 0.0
  %394 = vmatprep.subr.mxu0 0.0
  %395 = vmatpush1.msra.mxu0 0.0
  %396 = vmatprep.subr.mxu0 0.0
  %397 = vmatpush1.msra.mxu0 0.0
  %398 = vmatprep.subr.mxu0 0.0
  %399 = vmatpush1.msra.mxu0 0.0
  %400 = vmatprep.subr.mxu0 0.0
  %401 = vmatpush1.msra.mxu0 0.0
  %402 = vmatprep.subr.mxu0 0.0
  %403 = vmatpush1.msra.mxu0 0.0
  %404 = vmatprep.subr.mxu0 0.0
  %405 = vmatpush1.msra.mxu0 0.0
  %406 = vmatprep.subr.mxu0 0.0
  %407 = vmatpush1.msra.mxu0 0.0
  %408 = vmatprep.subr.mxu0 0.0
  %409 = vmatpush1.msra.mxu0 0.0
  %410 = vmatprep.subr.mxu0 0.0
  %411 = vmatpush1.msra.mxu0 0.0
  %412 = vmatprep.subr.mxu0 0.0
  %413 = vmatpush1.msra.mxu0 0.0
  %414 = vmatprep.subr.mxu0 0.0
  %415 = vmatpush1.msra.mxu0 0.0
  %416 = vmatprep.subr.mxu0 0.0
  %417 = vmatpush1.msra.mxu0 0.0
  %418 = vmatprep.subr.mxu0 0.0
  %419 = vmatpush1.msra.mxu0 0.0
  %420 = vmatprep.subr.mxu0 0.0
  %421 = vmatpush1.msra.mxu0 0.0
  %422 = vmatprep.subr.mxu0 0.0
  %423 = vmatpush1.msra.mxu0 0.0
  %424 = vmatprep.subr.mxu0 0.0
  %425 = vmatpush1.msra.mxu0 0.0
  %426 = vmatprep.subr.mxu0 0.0
  %427 = vmatpush1.msra.mxu0 0.0
  %428 = vmatprep.subr.mxu0 0.0
  %429 = vmatpush1.msra.mxu0 0.0
  %430 = vmatprep.subr.mxu0 0.0
  %431 = vmatpush1.msra.mxu0 0.0
  %432 = vmatprep.subr.mxu0 0.0
  %433 = vmatpush1.msra.mxu0 0.0
  %434 = vmatprep.subr.mxu0 0.0
  %435 = vmatpush1.msra.mxu0 0.0
  %436 = vmatprep.subr.mxu0 0.0
  %437 = vmatpush1.msra.mxu0 0.0
  %438 = vmatprep.subr.mxu0 0.0
  %439 = vmatpush1.msra.mxu0 0.0
  %440 = vmatprep.subr.mxu0 0.0
  %441 = vmatpush1.msra.mxu0 0.0
  %442 = vmatprep.subr.mxu0 0.0
  %443 = vmatpush1.msra.mxu0 0.0
  %444 = vmatprep.subr.mxu0 0.0
  %445 = vmatpush1.msra.mxu0 0.0
  %446 = vmatprep.mubr.f32.mxu0 0.0
  %447 = vmatmul.mubr.f32.gmra.mrb[0].mxu0 %v131
  %v448 = vpop.f32.mrb[0].mxu0
  %v449 = vadd.f32 %v124, %v448
  %v450 = vpop.f32.mrb[0].mxu0
  %v451 = vadd.f32 %v128, %v450
  %452 = vmatprep.mubr.f32.mxu0 0.0
  %453 = vmatmul.mubr.f32.gmra.mrb[0].mxu0 %v134
  %v454 = vpop.f32.mrb[0].mxu0
  %v455 = vadd.f32 %v124, %v454
  %v456 = vpop.f32.mrb[0].mxu0
  %v457 = vadd.f32 %v128, %v456
  %458 = vmatprep.mubr.f32.mxu0 0.0
  %459 = vmatmul.mubr.f32.gmra.mrb[0].mxu0 %v137
  %v460 = vpop.f32.mrb[0].mxu0
  %v461 = vadd.f32 %v124, %v460
  %v462 = vpop.f32.mrb[0].mxu0
  %v463 = vadd.f32 %v128, %v462
  %464 = vmatprep.mubr.f32.mxu0 0.0
  %465 = vmatmul.mubr.f32.gmra.mrb[0].mxu0 %v140
  %v466 = vpop.f32.mrb[0].mxu0
  %v467 = vadd.f32 %v124, %v466
  %v468 = vpop.f32.mrb[0].mxu0
  %v469 = vadd.f32 %v128, %v468
  %470 = vmatprep.mubr.f32.mxu0 0.0
  %471 = vmatmul.mubr.f32.gmra.mrb[0].mxu0 %v143
  %v472 = vpop.f32.mrb[0].mxu0
  %v473 = vadd.f32 %v124, %v472
  %v474 = vpop.f32.mrb[0].mxu0
  %v475 = vadd.f32 %v128, %v474
  %476 = vmatprep.mubr.f32.mxu0 0.0
  %477 = vmatmul.mubr.f32.gmra.mrb[0].mxu0 %v146
  %v478 = vpop.f32.mrb[0].mxu0
  %v479 = vadd.f32 %v124, %v478
  %v480 = vpop.f32.mrb[0].mxu0
  %v481 = vadd.f32 %v128, %v480
  %482 = vmatprep.mubr.f32.mxu0 0.0
  %483 = vmatmul.mubr.f32.gmra.mrb[0].mxu0 %v149
  %v484 = vpop.f32.mrb[0].mxu0
  %v485 = vadd.f32 %v124, %v484
  %v486 = vpop.f32.mrb[0].mxu0
  %v487 = vadd.f32 %v128, %v486
  %488 = vmatprep.mubr.f32.mxu0 0.0
  %489 = vmatmul.mubr.f32.gmra.mrb[0].mxu0 %v152
  %v490 = vpop.f32.mrb[0].mxu0
  %v491 = vadd.f32 %v124, %v490
  %v492 = vpop.f32.mrb[0].mxu0
  %v493 = vadd.f32 %v128, %v492
  %494 = vmatprep.mubr.f32.mxu0 0.0
  %495 = vmatmul.mubr.f32.gmra.mrb[0].mxu0 %v155
  %v496 = vpop.f32.mrb[0].mxu0
  %v497 = vadd.f32 %v124, %v496
  %v498 = vpop.f32.mrb[0].mxu0
  %v499 = vadd.f32 %v128, %v498
  %500 = vmatprep.mubr.f32.mxu0 0.0
  %501 = vmatmul.mubr.f32.gmra.mrb[0].mxu0 %v158
  %v502 = vpop.f32.mrb[0].mxu0
  %v503 = vadd.f32 %v124, %v502
  %v504 = vpop.f32.mrb[0].mxu0
  %v505 = vadd.f32 %v128, %v504
  %506 = vmatprep.mubr.f32.mxu0 0.0
  %507 = vmatmul.mubr.f32.gmra.mrb[0].mxu0 %v161
  %v508 = vpop.f32.mrb[0].mxu0
  %v509 = vadd.f32 %v124, %v508
  %v510 = vpop.f32.mrb[0].mxu0
  %v511 = vadd.f32 %v128, %v510
  %512 = vmatprep.mubr.f32.mxu0 0.0
  %513 = vmatmul.mubr.f32.gmra.mrb[0].mxu0 %v164
  %v514 = vpop.f32.mrb[0].mxu0
  %v515 = vadd.f32 %v124, %v514
  %v516 = vpop.f32.mrb[0].mxu0
  %v517 = vadd.f32 %v128, %v516
  %518 = vmatprep.mubr.f32.mxu0 0.0
  %519 = vmatmul.mubr.f32.gmra.mrb[0].mxu0 %v167
  %v520 = vpop.f32.mrb[0].mxu0
  %v521 = vadd.f32 %v124, %v520
  %v522 = vpop.f32.mrb[0].mxu0
  %v523 = vadd.f32 %v128, %v522
  %524 = vmatprep.mubr.f32.mxu0 0.0
  %525 = vmatmul.mubr.f32.gmra.mrb[0].mxu0 %v170
  %v526 = vpop.f32.mrb[0].mxu0
  %v527 = vadd.f32 %v124, %v526
  %v528 = vpop.f32.mrb[0].mxu0
  %v529 = vadd.f32 %v128, %v528
  %530 = vmatprep.mubr.f32.mxu0 0.0
  %531 = vmatmul.mubr.f32.gmra.mrb[0].mxu0 %v173
  %v532 = vpop.f32.mrb[0].mxu0
  %v533 = vadd.f32 %v124, %v532
  %v534 = vpop.f32.mrb[0].mxu0
  %v535 = vadd.f32 %v128, %v534
  %536 = vmatprep.mubr.f32.mxu0 0.0
  %537 = vmatmul.mubr.f32.gmra.mrb[0].mxu0 %v176
  %v538 = vpop.f32.mrb[0].mxu0
  %v539 = vadd.f32 %v124, %v538
  %v540 = vpop.f32.mrb[0].mxu0
  %v541 = vadd.f32 %v128, %v540
  %542 = vmatprep.mubr.f32.mxu0 0.0
  %543 = vmatmul.mubr.f32.gmra.mrb[0].mxu0 %v179
  %v544 = vpop.f32.mrb[0].mxu0
  %v545 = vadd.f32 %v124, %v544
  %v546 = vpop.f32.mrb[0].mxu0
  %v547 = vadd.f32 %v128, %v546
  %548 = vmatprep.mubr.f32.mxu0 0.0
  %549 = vmatmul.mubr.f32.gmra.mrb[0].mxu0 %v182
  %v550 = vpop.f32.mrb[0].mxu0
  %v551 = vadd.f32 %v124, %v550
  %v552 = vpop.f32.mrb[0].mxu0
  %v553 = vadd.f32 %v128, %v552
  %554 = vmatprep.mubr.f32.mxu0 0.0
  %555 = vmatmul.mubr.f32.gmra.mrb[0].mxu0 %v185
  %v556 = vpop.f32.mrb[0].mxu0
  %v557 = vadd.f32 %v124, %v556
  %v558 = vpop.f32.mrb[0].mxu0
  %v559 = vadd.f32 %v128, %v558
  %560 = vmatprep.mubr.f32.mxu0 0.0
  %561 = vmatmul.mubr.f32.gmra.mrb[0].mxu0 %v188
  %v562 = vpop.f32.mrb[0].mxu0
  %v563 = vadd.f32 %v124, %v562
  %v564 = vpop.f32.mrb[0].mxu0
  %v565 = vadd.f32 %v128, %v564
  %566 = vmatprep.mubr.f32.mxu0 0.0
  %567 = vmatmul.mubr.f32.gmra.mrb[0].mxu0 %v191
  %v568 = vpop.f32.mrb[0].mxu0
  %v569 = vadd.f32 %v124, %v568
  %v570 = vpop.f32.mrb[0].mxu0
  %v571 = vadd.f32 %v128, %v570
  %572 = vmatprep.mubr.f32.mxu0 0.0
  %573 = vmatmul.mubr.f32.gmra.mrb[0].mxu0 %v194
  %v574 = vpop.f32.mrb[0].mxu0
  %v575 = vadd.f32 %v124, %v574
  %v576 = vpop.f32.mrb[0].mxu0
  %v577 = vadd.f32 %v128, %v576
  %578 = vmatprep.mubr.f32.mxu0 0.0
  %579 = vmatmul.mubr.f32.gmra.mrb[0].mxu0 %v197
  %v580 = vpop.f32.mrb[0].mxu0
  %v581 = vadd.f32 %v124, %v580
  %v582 = vpop.f32.mrb[0].mxu0
  %v583 = vadd.f32 %v128, %v582
  %584 = vmatprep.mubr.f32.mxu0 0.0
  %585 = vmatmul.mubr.f32.gmra.mrb[0].mxu0 %v200
  %v586 = vpop.f32.mrb[0].mxu0
  %v587 = vadd.f32 %v124, %v586
  %v588 = vpop.f32.mrb[0].mxu0
  %v589 = vadd.f32 %v128, %v588
  %590 = vmatprep.mubr.f32.mxu0 0.0
  %591 = vmatmul.mubr.f32.gmra.mrb[0].mxu0 %v203
  %v592 = vpop.f32.mrb[0].mxu0
  %v593 = vadd.f32 %v124, %v592
  %v594 = vpop.f32.mrb[0].mxu0
  %v595 = vadd.f32 %v128, %v594
  %596 = vmatprep.mubr.f32.mxu0 0.0
  %597 = vmatmul.mubr.f32.gmra.mrb[0].mxu0 %v206
  %v598 = vpop.f32.mrb[0].mxu0
  %v599 = vadd.f32 %v124, %v598
  %v600 = vpop.f32.mrb[0].mxu0
  %v601 = vadd.f32 %v128, %v600
  %602 = vmatprep.mubr.f32.mxu0 0.0
  %603 = vmatmul.mubr.f32.gmra.mrb[0].mxu0 %v209
  %v604 = vpop.f32.mrb[0].mxu0
  %v605 = vadd.f32 %v124, %v604
  %v606 = vpop.f32.mrb[0].mxu0
  %v607 = vadd.f32 %v128, %v606
  %608 = vmatprep.mubr.f32.mxu0 0.0
  %609 = vmatmul.mubr.f32.gmra.mrb[0].mxu0 %v212
  %v610 = vpop.f32.mrb[0].mxu0
  %v611 = vadd.f32 %v124, %v610
  %v612 = vpop.f32.mrb[0].mxu0
  %v613 = vadd.f32 %v128, %v612
  %614 = vmatprep.mubr.f32.mxu0 0.0
  %615 = vmatmul.mubr.f32.gmra.mrb[0].mxu0 %v215
  %v616 = vpop.f32.mrb[0].mxu0
  %v617 = vadd.f32 %v124, %v616
  %v618 = vpop.f32.mrb[0].mxu0
  %v619 = vadd.f32 %v128, %v618
  %620 = vmatprep.mubr.f32.mxu0 0.0
  %621 = vmatmul.mubr.f32.gmra.mrb[0].mxu0 %v218
  %v622 = vpop.f32.mrb[0].mxu0
  %v623 = vadd.f32 %v124, %v622
  %v624 = vpop.f32.mrb[0].mxu0
  %v625 = vadd.f32 %v128, %v624
  %626 = vmatprep.mubr.f32.mxu0 0.0
  %627 = vmatmul.mubr.f32.gmra.mrb[0].mxu0 %v221
  %v628 = vpop.f32.mrb[0].mxu0
  %v629 = vadd.f32 %v124, %v628
  %v630 = vpop.f32.mrb[0].mxu0
  %v631 = vadd.f32 %v128, %v630
  %632 = vmatprep.mubr.f32.mxu0 0.0
  %633 = vmatmul.mubr.f32.gmra.mrb[0].mxu0 %v224
  %v634 = vpop.f32.mrb[0].mxu0
  %v635 = vadd.f32 %v124, %v634
  %v636 = vpop.f32.mrb[0].mxu0
  %v637 = vadd.f32 %v128, %v636
  %638 = vmatprep.mubr.f32.mxu0 0.0
  %639 = vmatmul.mubr.f32.gmra.mrb[0].mxu0 %v227
  %v640 = vpop.f32.mrb[0].mxu0
  %v641 = vadd.f32 %v124, %v640
  %v642 = vpop.f32.mrb[0].mxu0
  %v643 = vadd.f32 %v128, %v642
  %644 = vmatprep.mubr.f32.mxu0 0.0
  %645 = vmatmul.mubr.f32.gmra.mrb[0].mxu0 %v230
  %v646 = vpop.f32.mrb[0].mxu0
  %v647 = vadd.f32 %v124, %v646
  %v648 = vpop.f32.mrb[0].mxu0
  %v649 = vadd.f32 %v128, %v648
  %650 = vmatprep.mubr.f32.mxu0 0.0
  %651 = vmatmul.mubr.f32.gmra.mrb[0].mxu0 %v233
  %v652 = vpop.f32.mrb[0].mxu0
  %v653 = vadd.f32 %v124, %v652
  %v654 = vpop.f32.mrb[0].mxu0
  %v655 = vadd.f32 %v128, %v654
  %656 = vmatprep.mubr.f32.mxu0 0.0
  %657 = vmatmul.mubr.f32.gmra.mrb[0].mxu0 %v236
  %v658 = vpop.f32.mrb[0].mxu0
  %v659 = vadd.f32 %v124, %v658
  %v660 = vpop.f32.mrb[0].mxu0
  %v661 = vadd.f32 %v128, %v660
  %662 = vmatprep.mubr.f32.mxu0 0.0
  %663 = vmatmul.mubr.f32.gmra.mrb[0].mxu0 %v239
  %v664 = vpop.f32.mrb[0].mxu0
  %v665 = vadd.f32 %v124, %v664
  %v666 = vpop.f32.mrb[0].mxu0
  %v667 = vadd.f32 %v128, %v666
  %668 = vmatprep.mubr.f32.mxu0 0.0
  %669 = vmatmul.mubr.f32.gmra.mrb[0].mxu0 %v242
  %v670 = vpop.f32.mrb[0].mxu0
  %v671 = vadd.f32 %v124, %v670
  %v672 = vpop.f32.mrb[0].mxu0
  %v673 = vadd.f32 %v128, %v672
  %674 = vmatprep.mubr.f32.mxu0 0.0
  %675 = vmatmul.mubr.f32.gmra.mrb[0].mxu0 %v245
  %v676 = vpop.f32.mrb[0].mxu0
  %v677 = vadd.f32 %v124, %v676
  %v678 = vpop.f32.mrb[0].mxu0
  %v679 = vadd.f32 %v128, %v678
  %680 = vmatprep.mubr.f32.mxu0 0.0
  %681 = vmatmul.mubr.f32.gmra.mrb[0].mxu0 %v248
  %v682 = vpop.f32.mrb[0].mxu0
  %v683 = vadd.f32 %v124, %v682
  %v684 = vpop.f32.mrb[0].mxu0
  %v685 = vadd.f32 %v128, %v684
  %686 = vmatprep.mubr.f32.mxu0 0.0
  %687 = vmatmul.mubr.f32.gmra.mrb[0].mxu0 %v251
  %v688 = vpop.f32.mrb[0].mxu0
  %v689 = vadd.f32 %v124, %v688
  %v690 = vpop.f32.mrb[0].mxu0
  %v691 = vadd.f32 %v128, %v690
  %692 = vmatprep.mubr.f32.mxu0 0.0
  %693 = vmatmul.mubr.f32.gmra.mrb[0].mxu0 %v254
  %v694 = vpop.f32.mrb[0].mxu0
  %v695 = vadd.f32 %v124, %v694
  %v696 = vpop.f32.mrb[0].mxu0
  %v697 = vadd.f32 %v128, %v696
  %698 = vmatprep.mubr.f32.mxu0 0.0
  %699 = vmatmul.mubr.f32.gmra.mrb[0].mxu0 %v257
  %v700 = vpop.f32.mrb[0].mxu0
  %v701 = vadd.f32 %v124, %v700
  %v702 = vpop.f32.mrb[0].mxu0
  %v703 = vadd.f32 %v128, %v702
  %704 = vmatprep.mubr.f32.mxu0 0.0
  %705 = vmatmul.mubr.f32.gmra.mrb[0].mxu0 %v260
  %v706 = vpop.f32.mrb[0].mxu0
  %v707 = vadd.f32 %v124, %v706
  %v708 = vpop.f32.mrb[0].mxu0
  %v709 = vadd.f32 %v128, %v708
  %710 = vmatprep.mubr.f32.mxu0 0.0
  %711 = vmatmul.mubr.f32.gmra.mrb[0].mxu0 %v263
  %v712 = vpop.f32.mrb[0].mxu0
  %v713 = vadd.f32 %v124, %v712
  %v714 = vpop.f32.mrb[0].mxu0
  %v715 = vadd.f32 %v128, %v714
  %716 = vmatprep.mubr.f32.mxu0 0.0
  %717 = vmatmul.mubr.f32.gmra.mrb[0].mxu0 %v266
  %v718 = vpop.f32.mrb[0].mxu0
  %v719 = vadd.f32 %v124, %v718
  %v720 = vpop.f32.mrb[0].mxu0
  %v721 = vadd.f32 %v128, %v720
  %722 = vmatprep.mubr.f32.mxu0 0.0
  %723 = vmatmul.mubr.f32.gmra.mrb[0].mxu0 %v269
  %v724 = vpop.f32.mrb[0].mxu0
  %v725 = vadd.f32 %v124, %v724
  %v726 = vpop.f32.mrb[0].mxu0
  %v727 = vadd.f32 %v128, %v726
  %728 = vmatprep.mubr.f32.mxu0 0.0
  %729 = vmatmul.mubr.f32.gmra.mrb[0].mxu0 %v272
  %v730 = vpop.f32.mrb[0].mxu0
  %v731 = vadd.f32 %v124, %v730
  %v732 = vpop.f32.mrb[0].mxu0
  %v733 = vadd.f32 %v128, %v732
  %734 = vmatprep.mubr.f32.mxu0 0.0
  %735 = vmatmul.mubr.f32.gmra.mrb[0].mxu0 %v275
  %v736 = vpop.f32.mrb[0].mxu0
  %v737 = vadd.f32 %v124, %v736
  %v738 = vpop.f32.mrb[0].mxu0
  %v739 = vadd.f32 %v128, %v738
  %740 = vmatprep.mubr.f32.mxu0 0.0
  %741 = vmatmul.mubr.f32.gmra.mrb[0].mxu0 %v278
  %v742 = vpop.f32.mrb[0].mxu0
  %v743 = vadd.f32 %v124, %v742
  %v744 = vpop.f32.mrb[0].mxu0
  %v745 = vadd.f32 %v128, %v744
  %746 = vmatprep.mubr.f32.mxu0 0.0
  %747 = vmatmul.mubr.f32.gmra.mrb[0].mxu0 %v281
  %v748 = vpop.f32.mrb[0].mxu0
  %v749 = vadd.f32 %v124, %v748
  %v750 = vpop.f32.mrb[0].mxu0
  %v751 = vadd.f32 %v128, %v750
  %752 = vmatprep.mubr.f32.mxu0 0.0
  %753 = vmatmul.mubr.f32.gmra.mrb[0].mxu0 %v284
  %v754 = vpop.f32.mrb[0].mxu0
  %v755 = vadd.f32 %v124, %v754
  %v756 = vpop.f32.mrb[0].mxu0
  %v757 = vadd.f32 %v128, %v756
  %758 = vmatprep.mubr.f32.mxu0 0.0
  %759 = vmatmul.mubr.f32.gmra.mrb[0].mxu0 %v287
  %v760 = vpop.f32.mrb[0].mxu0
  %v761 = vadd.f32 %v124, %v760
  %v762 = vpop.f32.mrb[0].mxu0
  %v763 = vadd.f32 %v128, %v762
  %764 = vmatprep.mubr.f32.mxu0 0.0
  %765 = vmatmul.mubr.f32.gmra.mrb[0].mxu0 %v290
  %v766 = vpop.f32.mrb[0].mxu0
  %v767 = vadd.f32 %v124, %v766
  %v768 = vpop.f32.mrb[0].mxu0
  %v769 = vadd.f32 %v128, %v768
  %770 = vmatprep.mubr.f32.mxu0 0.0
  %771 = vmatmul.mubr.f32.gmra.mrb[0].mxu0 %v293
  %v772 = vpop.f32.mrb[0].mxu0
  %v773 = vadd.f32 %v124, %v772
  %v774 = vpop.f32.mrb[0].mxu0
  %v775 = vadd.f32 %v128, %v774
  %776 = vmatprep.mubr.f32.mxu0 0.0
  %777 = vmatmul.mubr.f32.gmra.mrb[0].mxu0 %v296
  %v778 = vpop.f32.mrb[0].mxu0
  %v779 = vadd.f32 %v124, %v778
  %v780 = vpop.f32.mrb[0].mxu0
  %v781 = vadd.f32 %v128, %v780
  %782 = vmatprep.mubr.f32.mxu0 0.0
  %783 = vmatmul.mubr.f32.gmra.mrb[0].mxu0 %v299
  %v784 = vpop.f32.mrb[0].mxu0
  %v785 = vadd.f32 %v124, %v784
  %v786 = vpop.f32.mrb[0].mxu0
  %v787 = vadd.f32 %v128, %v786
  %788 = vmatprep.mubr.f32.mxu0 0.0
  %789 = vmatmul.mubr.f32.gmra.mrb[0].mxu0 %v302
  %v790 = vpop.f32.mrb[0].mxu0
  %v791 = vadd.f32 %v124, %v790
  %v792 = vpop.f32.mrb[0].mxu0
  %v793 = vadd.f32 %v128, %v792
  %794 = vmatprep.mubr.f32.mxu0 0.0
  %795 = vmatmul.mubr.f32.gmra.mrb[0].mxu0 %v305
  %v796 = vpop.f32.mrb[0].mxu0
  %v797 = vadd.f32 %v124, %v796
  %v798 = vpop.f32.mrb[0].mxu0
  %v799 = vadd.f32 %v128, %v798
  %800 = vmatprep.mubr.f32.mxu0 0.0
  %801 = vmatmul.mubr.f32.gmra.mrb[0].mxu0 %v308
  %v802 = vpop.f32.mrb[0].mxu0
  %v803 = vadd.f32 %v124, %v802
  %v804 = vpop.f32.mrb[0].mxu0
  %v805 = vadd.f32 %v128, %v804
  %806 = vmatprep.mubr.f32.mxu0 0.0
  %807 = vmatmul.mubr.f32.gmra.mrb[0].mxu0 %v311
  %v808 = vpop.f32.mrb[0].mxu0
  %v809 = vadd.f32 %v124, %v808
  %v810 = vpop.f32.mrb[0].mxu0
  %v811 = vadd.f32 %v128, %v810
  %812 = vmatprep.mubr.f32.mxu0 0.0
  %813 = vmatmul.mubr.f32.gmra.mrb[0].mxu0 %v314
  %v814 = vpop.f32.mrb[0].mxu0
  %v815 = vadd.f32 %v124, %v814
  %v816 = vpop.f32.mrb[0].mxu0
  %v817 = vadd.f32 %v128, %v816
  %818 = vmatprep.mubr.f32.mxu0 0.0
  %819 = vmatmul.mubr.f32.gmra.mrb[0].mxu0 %v317
  %v820 = vpop.f32.mrb[0].mxu0
  %v821 = vadd.f32 %v124, %v820
  %v822 = vpop.f32.mrb[0].mxu0
  %v823 = vadd.f32 %v128, %v822
  %824 = vmatprep.mubr.f32.mxu0 0.0
  %825 = vmatmul.mubr.f32.gmra.mrb[0].mxu0 %v320
  %v826 = vpop.f32.mrb[0].mxu0
  %v827 = vadd.f32 %v124, %v826
  %v828 = vpop.f32.mrb[0].mxu0
  %v829 = vadd.f32 %v128, %v828
  %830 = vmatprep.mubr.f32.mxu0 0.0
  %831 = vmatmul.mubr.f32.gmra.mrb[0].mxu0 %v323
  %v832 = vpop.f32.mrb[0].mxu0
  %v833 = vadd.f32 %v124, %v832
  %v834 = vpop.f32.mrb[0].mxu0
  %v835 = vadd.f32 %v128, %v834
  %836 = vmatprep.mubr.f32.mxu0 0.0
  %837 = vmatmul.mubr.f32.gmra.mrb[0].mxu0 %v326
  %v838 = vpop.f32.mrb[0].mxu0
  %v839 = vadd.f32 %v124, %v838
  %v840 = vpop.f32.mrb[0].mxu0
  %v841 = vadd.f32 %v128, %v840
  %842 = vmatprep.mubr.f32.mxu0 0.0
  %843 = vmatmul.mubr.f32.gmra.mrb[0].mxu0 %v329
  %v844 = vpop.f32.mrb[0].mxu0
  %v845 = vadd.f32 %v124, %v844
  %v846 = vpop.f32.mrb[0].mxu0
  %v847 = vadd.f32 %v128, %v846
  %848 = vmatprep.mubr.f32.mxu0 0.0
  %849 = vmatmul.mubr.f32.gmra.mrb[0].mxu0 %v332
  %v850 = vpop.f32.mrb[0].mxu0
  %v851 = vadd.f32 %v124, %v850
  %v852 = vpop.f32.mrb[0].mxu0
  %v853 = vadd.f32 %v128, %v852
  %854 = vmatprep.mubr.f32.mxu0 0.0
  %855 = vmatmul.mubr.f32.gmra.mrb[0].mxu0 %v335
  %v856 = vpop.f32.mrb[0].mxu0
  %v857 = vadd.f32 %v124, %v856
  %v858 = vpop.f32.mrb[0].mxu0
  %v859 = vadd.f32 %v128, %v858
  %860 = vmatprep.mubr.f32.mxu0 0.0
  %861 = vmatmul.mubr.f32.gmra.mrb[0].mxu0 %v338
  %v862 = vpop.f32.mrb[0].mxu0
  %v863 = vadd.f32 %v124, %v862
  %v864 = vpop.f32.mrb[0].mxu0
  %v865 = vadd.f32 %v128, %v864
  %866 = vmatprep.mubr.f32.mxu0 0.0
  %867 = vmatmul.mubr.f32.gmra.mrb[0].mxu0 %v341
  %v868 = vpop.f32.mrb[0].mxu0
  %v869 = vadd.f32 %v124, %v868
  %v870 = vpop.f32.mrb[0].mxu0
  %v871 = vadd.f32 %v128, %v870
  %872 = vmatprep.mubr.f32.mxu0 0.0
  %873 = vmatmul.mubr.f32.gmra.mrb[0].mxu0 %v344
  %v874 = vpop.f32.mrb[0].mxu0
  %v875 = vadd.f32 %v124, %v874
  %v876 = vpop.f32.mrb[0].mxu0
  %v877 = vadd.f32 %v128, %v876
  %878 = vmatprep.mubr.f32.mxu0 0.0
  %879 = vmatmul.mubr.f32.gmra.mrb[0].mxu0 %v347
  %v880 = vpop.f32.mrb[0].mxu0
  %v881 = vadd.f32 %v124, %v880
  %v882 = vpop.f32.mrb[0].mxu0
  %v883 = vadd.f32 %v128, %v882
  %884 = vmatprep.mubr.f32.mxu0 0.0
  %885 = vmatmul.mubr.f32.gmra.mrb[0].mxu0 %v350
  %v886 = vpop.f32.mrb[0].mxu0
  %v887 = vadd.f32 %v124, %v886
  %v888 = vpop.f32.mrb[0].mxu0
  %v889 = vadd.f32 %v128, %v888
  %890 = vmatprep.mubr.f32.mxu0 0.0
  %891 = vmatmul.mubr.f32.gmra.mrb[0].mxu0 %v353
  %v892 = vpop.f32.mrb[0].mxu0
  %v893 = vadd.f32 %v124, %v892
  %v894 = vpop.f32.mrb[0].mxu0
  %v895 = vadd.f32 %v128, %v894
  %896 = vmatprep.mubr.f32.mxu0 0.0
  %897 = vmatmul.mubr.f32.gmra.mrb[0].mxu0 %v356
  %v898 = vpop.f32.mrb[0].mxu0
  %v899 = vadd.f32 %v124, %v898
  %v900 = vpop.f32.mrb[0].mxu0
  %v901 = vadd.f32 %v128, %v900
  %902 = vmatprep.mubr.f32.mxu0 0.0
  %903 = vmatmul.mubr.f32.gmra.mrb[0].mxu0 %v359
  %v904 = vpop.f32.mrb[0].mxu0
  %v905 = vadd.f32 %v124, %v904
  %v906 = vpop.f32.mrb[0].mxu0
  %v907 = vadd.f32 %v128, %v906
  %908 = vmatprep.mubr.f32.mxu0 0.0
  %909 = vmatmul.mubr.f32.gmra.mrb[0].mxu0 %v362
  %v910 = vpop.f32.mrb[0].mxu0
  %v911 = vadd.f32 %v124, %v910
  %v912 = vpop.f32.mrb[0].mxu0
  %v913 = vadd.f32 %v128, %v912
  %914 = vmatprep.mubr.f32.mxu0 0.0
  %915 = vmatmul.mubr.f32.gmra.mrb[0].mxu0 %v365
  %v916 = vpop.f32.mrb[0].mxu0
  %v917 = vadd.f32 %v124, %v916
  %v918 = vpop.f32.mrb[0].mxu0
  %v919 = vadd.f32 %v128, %v918
  %920 = vmatprep.mubr.f32.mxu0 0.0
  %921 = vmatmul.mubr.f32.gmra.mrb[0].mxu0 %v368
  %v922 = vpop.f32.mrb[0].mxu0
  %v923 = vadd.f32 %v124, %v922
  %v924 = vpop.f32.mrb[0].mxu0
  %v925 = vadd.f32 %v128, %v924
  %926 = vmatprep.mubr.f32.mxu0 0.0
  %927 = vmatmul.mubr.f32.gmra.mrb[0].mxu0 %v371
  %v928 = vpop.f32.mrb[0].mxu0
  %v929 = vadd.f32 %v124, %v928
  %v930 = vpop.f32.mrb[0].mxu0
  %v931 = vadd.f32 %v128, %v930
  %932 = vmatprep.mubr.f32.mxu0 0.0
  %933 = vmatmul.mubr.f32.gmra.mrb[0].mxu0 %v374
  %v934 = vpop.f32.mrb[0].mxu0
  %v935 = vadd.f32 %v124, %v934
  %v936 = vpop.f32.mrb[0].mxu0
  %v937 = vadd.f32 %v128, %v936
  %938 = vmatprep.mubr.f32.mxu0 0.0
  %939 = vmatmul.mubr.f32.gmra.mrb[0].mxu0 %v377
  %v940 = vpop.f32.mrb[0].mxu0
  %v941 = vadd.f32 %v124, %v940
  %v942 = vpop.f32.mrb[0].mxu0
  %v943 = vadd.f32 %v128, %v942
  %944 = vmatprep.mubr.f32.mxu0 0.0
  %945 = vmatmul.mubr.f32.gmra.mrb[0].mxu0 %v380
  %v946 = vpop.f32.mrb[0].mxu0
  %v947 = vadd.f32 %v124, %v946
  %v948 = vpop.f32.mrb[0].mxu0
  %v949 = vadd.f32 %v128, %v948
  %950 = vdwg.mxu0
  %v951 = vmul.f32 %v449, 0.01
  %v952 = vmul.f32 %v451, 0.01
  %v953 = vmul.f32 %v455, 0.01
  %v954 = vmul.f32 %v457, 0.01
  %v955 = vmul.f32 %v461, 0.01
  %v956 = vmul.f32 %v463, 0.01
  %v957 = vmul.f32 %v467, 0.01
  %v958 = vmul.f32 %v469, 0.01
  %v959 = vmul.f32 %v473, 0.01
  %v960 = vmul.f32 %v475, 0.01
  %v961 = vmul.f32 %v479, 0.01
  %v962 = vmul.f32 %v481, 0.01
  %v963 = vmul.f32 %v485, 0.01
  %v964 = vmul.f32 %v487, 0.01
  %v965 = vmul.f32 %v491, 0.01
  %v966 = vmul.f32 %v493, 0.01
  %v967 = vmul.f32 %v497, 0.01
  %v968 = vmul.f32 %v499, 0.01
  %v969 = vmul.f32 %v503, 0.01
  %v970 = vmul.f32 %v505, 0.01
  %v971 = vmul.f32 %v509, 0.01
  %v972 = vmul.f32 %v511, 0.01
  %v973 = vmul.f32 %v515, 0.01
  %v974 = vmul.f32 %v517, 0.01
  %v975 = vmul.f32 %v521, 0.01
  %v976 = vmul.f32 %v523, 0.01
  %v977 = vmul.f32 %v527, 0.01
  %v978 = vmul.f32 %v529, 0.01
  %v979 = vmul.f32 %v533, 0.01
  %v980 = vmul.f32 %v535, 0.01
  %v981 = vmul.f32 %v539, 0.01
  %v982 = vmul.f32 %v541, 0.01
  %v983 = vmul.f32 %v545, 0.01
  %v984 = vmul.f32 %v547, 0.01
  %v985 = vmul.f32 %v551, 0.01
  %v986 = vmul.f32 %v553, 0.01
  %v987 = vmul.f32 %v557, 0.01
  %v988 = vmul.f32 %v559, 0.01
  %v989 = vmul.f32 %v563, 0.01
  %v990 = vmul.f32 %v565, 0.01
  %v991 = vmul.f32 %v569, 0.01
  %v992 = vmul.f32 %v571, 0.01
  %v993 = vmul.f32 %v575, 0.01
  %v994 = vmul.f32 %v577, 0.01
  %v995 = vmul.f32 %v581, 0.01
  %v996 = vmul.f32 %v583, 0.01
  %v997 = vmul.f32 %v587, 0.01
  %v998 = vmul.f32 %v589, 0.01
  %v999 = vmul.f32 %v593, 0.01
  %v1000 = vmul.f32 %v595, 0.01
  %v1001 = vmul.f32 %v599, 0.01
  %v1002 = vmul.f32 %v601, 0.01
  %v1003 = vmul.f32 %v605, 0.01
  %v1004 = vmul.f32 %v607, 0.01
  %v1005 = vmul.f32 %v611, 0.01
  %v1006 = vmul.f32 %v613, 0.01
  %v1007 = vmul.f32 %v617, 0.01
  %v1008 = vmul.f32 %v619, 0.01
  %v1009 = vmul.f32 %v623, 0.01
  %v1010 = vmul.f32 %v625, 0.01
  %v1011 = vmul.f32 %v629, 0.01
  %v1012 = vmul.f32 %v631, 0.01
  %v1013 = vmul.f32 %v635, 0.01
  %v1014 = vmul.f32 %v637, 0.01
  %v1015 = vmul.f32 %v641, 0.01
  %v1016 = vmul.f32 %v643, 0.01
  %v1017 = vmul.f32 %v647, 0.01
  %v1018 = vmul.f32 %v649, 0.01
  %v1019 = vmul.f32 %v653, 0.01
  %v1020 = vmul.f32 %v655, 0.01
  %v1021 = vmul.f32 %v659, 0.01
  %v1022 = vmul.f32 %v661, 0.01
  %v1023 = vmul.f32 %v665, 0.01
  %v1024 = vmul.f32 %v667, 0.01
  %v1025 = vmul.f32 %v671, 0.01
  %v1026 = vmul.f32 %v673, 0.01
  %v1027 = vmul.f32 %v677, 0.01
  %v1028 = vmul.f32 %v679, 0.01
  %v1029 = vmul.f32 %v683, 0.01
  %v1030 = vmul.f32 %v685, 0.01
  %v1031 = vmul.f32 %v689, 0.01
  %v1032 = vmul.f32 %v691, 0.01
  %v1033 = vmul.f32 %v695, 0.01
  %v1034 = vmul.f32 %v697, 0.01
  %v1035 = vmul.f32 %v701, 0.01
  %v1036 = vmul.f32 %v703, 0.01
  %v1037 = vmul.f32 %v707, 0.01
  %v1038 = vmul.f32 %v709, 0.01
  %v1039 = vmul.f32 %v713, 0.01
  %v1040 = vmul.f32 %v715, 0.01
  %v1041 = vmul.f32 %v719, 0.01
  %v1042 = vmul.f32 %v721, 0.01
  %v1043 = vmul.f32 %v725, 0.01
  %v1044 = vmul.f32 %v727, 0.01
  %v1045 = vmul.f32 %v731, 0.01
  %v1046 = vmul.f32 %v733, 0.01
  %v1047 = vmul.f32 %v737, 0.01
  %v1048 = vmul.f32 %v739, 0.01
  %v1049 = vmul.f32 %v743, 0.01
  %v1050 = vmul.f32 %v745, 0.01
  %v1051 = vmul.f32 %v749, 0.01
  %v1052 = vmul.f32 %v751, 0.01
  %v1053 = vmul.f32 %v755, 0.01
  %v1054 = vmul.f32 %v757, 0.01
  %v1055 = vmul.f32 %v761, 0.01
  %v1056 = vmul.f32 %v763, 0.01
  %v1057 = vmul.f32 %v767, 0.01
  %v1058 = vmul.f32 %v769, 0.01
  %v1059 = vmul.f32 %v773, 0.01
  %v1060 = vmul.f32 %v775, 0.01
  %v1061 = vmul.f32 %v779, 0.01
  %v1062 = vmul.f32 %v781, 0.01
  %v1063 = vmul.f32 %v785, 0.01
  %v1064 = vmul.f32 %v787, 0.01
  %v1065 = vmul.f32 %v791, 0.01
  %v1066 = vmul.f32 %v793, 0.01
  %v1067 = vmul.f32 %v797, 0.01
  %v1068 = vmul.f32 %v799, 0.01
  %v1069 = vmul.f32 %v803, 0.01
  %v1070 = vmul.f32 %v805, 0.01
  %v1071 = vmul.f32 %v809, 0.01
  %v1072 = vmul.f32 %v811, 0.01
  %v1073 = vmul.f32 %v815, 0.01
  %v1074 = vmul.f32 %v817, 0.01
  %v1075 = vmul.f32 %v821, 0.01
  %v1076 = vmul.f32 %v823, 0.01
  %v1077 = vmul.f32 %v827, 0.01
  %v1078 = vmul.f32 %v829, 0.01
  %v1079 = vmul.f32 %v833, 0.01
  %v1080 = vmul.f32 %v835, 0.01
  %v1081 = vmul.f32 %v839, 0.01
  %v1082 = vmul.f32 %v841, 0.01
  %v1083 = vmul.f32 %v845, 0.01
  %v1084 = vmul.f32 %v847, 0.01
  %v1085 = vmul.f32 %v851, 0.01
  %v1086 = vmul.f32 %v853, 0.01
  %v1087 = vmul.f32 %v857, 0.01
  %v1088 = vmul.f32 %v859, 0.01
  %v1089 = vmul.f32 %v863, 0.01
  %v1090 = vmul.f32 %v865, 0.01
  %v1091 = vmul.f32 %v869, 0.01
  %v1092 = vmul.f32 %v871, 0.01
  %v1093 = vmul.f32 %v875, 0.01
  %v1094 = vmul.f32 %v877, 0.01
  %v1095 = vmul.f32 %v881, 0.01
  %v1096 = vmul.f32 %v883, 0.01
  %v1097 = vmul.f32 %v887, 0.01
  %v1098 = vmul.f32 %v889, 0.01
  %v1099 = vmul.f32 %v893, 0.01
  %v1100 = vmul.f32 %v895, 0.01
  %v1101 = vmul.f32 %v899, 0.01
  %v1102 = vmul.f32 %v901, 0.01
  %v1103 = vmul.f32 %v905, 0.01
  %v1104 = vmul.f32 %v907, 0.01
  %v1105 = vmul.f32 %v911, 0.01
  %v1106 = vmul.f32 %v913, 0.01
  %v1107 = vmul.f32 %v917, 0.01
  %v1108 = vmul.f32 %v919, 0.01
  %v1109 = vmul.f32 %v923, 0.01
  %v1110 = vmul.f32 %v925, 0.01
  %v1111 = vmul.f32 %v929, 0.01
  %v1112 = vmul.f32 %v931, 0.01
  %v1113 = vmul.f32 %v935, 0.01
  %v1114 = vmul.f32 %v937, 0.01
  %v1115 = vmul.f32 %v941, 0.01
  %v1116 = vmul.f32 %v943, 0.01
  %v1117 = vmul.f32 %v947, 0.01
  %v1118 = vmul.f32 %v949, 0.01
  %v1119 = vmax.f32 %v449, %v951
  %v1120 = vmax.f32 %v451, %v952
  %v1121 = vmax.f32 %v455, %v953
  %v1122 = vmax.f32 %v457, %v954
  %v1123 = vmax.f32 %v461, %v955
  %v1124 = vmax.f32 %v463, %v956
  %v1125 = vmax.f32 %v467, %v957
  %v1126 = vmax.f32 %v469, %v958
  %v1127 = vmax.f32 %v473, %v959
  %v1128 = vmax.f32 %v475, %v960
  %v1129 = vmax.f32 %v479, %v961
  %v1130 = vmax.f32 %v481, %v962
  %v1131 = vmax.f32 %v485, %v963
  %v1132 = vmax.f32 %v487, %v964
  %v1133 = vmax.f32 %v491, %v965
  %v1134 = vmax.f32 %v493, %v966
  %v1135 = vmax.f32 %v497, %v967
  %v1136 = vmax.f32 %v499, %v968
  %v1137 = vmax.f32 %v503, %v969
  %v1138 = vmax.f32 %v505, %v970
  %v1139 = vmax.f32 %v509, %v971
  %v1140 = vmax.f32 %v511, %v972
  %v1141 = vmax.f32 %v515, %v973
  %v1142 = vmax.f32 %v517, %v974
  %v1143 = vmax.f32 %v521, %v975
  %v1144 = vmax.f32 %v523, %v976
  %v1145 = vmax.f32 %v527, %v977
  %v1146 = vmax.f32 %v529, %v978
  %v1147 = vmax.f32 %v533, %v979
  %v1148 = vmax.f32 %v535, %v980
  %v1149 = vmax.f32 %v539, %v981
  %v1150 = vmax.f32 %v541, %v982
  %v1151 = vmax.f32 %v545, %v983
  %v1152 = vmax.f32 %v547, %v984
  %v1153 = vmax.f32 %v551, %v985
  %v1154 = vmax.f32 %v553, %v986
  %v1155 = vmax.f32 %v557, %v987
  %v1156 = vmax.f32 %v559, %v988
  %v1157 = vmax.f32 %v563, %v989
  %v1158 = vmax.f32 %v565, %v990
  %v1159 = vmax.f32 %v569, %v991
  %v1160 = vmax.f32 %v571, %v992
  %v1161 = vmax.f32 %v575, %v993
  %v1162 = vmax.f32 %v577, %v994
  %v1163 = vmax.f32 %v581, %v995
  %v1164 = vmax.f32 %v583, %v996
  %v1165 = vmax.f32 %v587, %v997
  %v1166 = vmax.f32 %v589, %v998
  %v1167 = vmax.f32 %v593, %v999
  %v1168 = vmax.f32 %v595, %v1000
  %v1169 = vmax.f32 %v599, %v1001
  %v1170 = vmax.f32 %v601, %v1002
  %v1171 = vmax.f32 %v605, %v1003
  %v1172 = vmax.f32 %v607, %v1004
  %v1173 = vmax.f32 %v611, %v1005
  %v1174 = vmax.f32 %v613, %v1006
  %v1175 = vmax.f32 %v617, %v1007
  %v1176 = vmax.f32 %v619, %v1008
  %v1177 = vmax.f32 %v623, %v1009
  %v1178 = vmax.f32 %v625, %v1010
  %v1179 = vmax.f32 %v629, %v1011
  %v1180 = vmax.f32 %v631, %v1012
  %v1181 = vmax.f32 %v635, %v1013
  %v1182 = vmax.f32 %v637, %v1014
  %v1183 = vmax.f32 %v641, %v1015
  %v1184 = vmax.f32 %v643, %v1016
  %v1185 = vmax.f32 %v647, %v1017
  %v1186 = vmax.f32 %v649, %v1018
  %v1187 = vmax.f32 %v653, %v1019
  %v1188 = vmax.f32 %v655, %v1020
  %v1189 = vmax.f32 %v659, %v1021
  %v1190 = vmax.f32 %v661, %v1022
  %v1191 = vmax.f32 %v665, %v1023
  %v1192 = vmax.f32 %v667, %v1024
  %v1193 = vmax.f32 %v671, %v1025
  %v1194 = vmax.f32 %v673, %v1026
  %v1195 = vmax.f32 %v677, %v1027
  %v1196 = vmax.f32 %v679, %v1028
  %v1197 = vmax.f32 %v683, %v1029
  %v1198 = vmax.f32 %v685, %v1030
  %v1199 = vmax.f32 %v689, %v1031
  %v1200 = vmax.f32 %v691, %v1032
  %v1201 = vmax.f32 %v695, %v1033
  %v1202 = vmax.f32 %v697, %v1034
  %v1203 = vmax.f32 %v701, %v1035
  %v1204 = vmax.f32 %v703, %v1036
  %v1205 = vmax.f32 %v707, %v1037
  %v1206 = vmax.f32 %v709, %v1038
  %v1207 = vmax.f32 %v713, %v1039
  %v1208 = vmax.f32 %v715, %v1040
  %v1209 = vmax.f32 %v719, %v1041
  %v1210 = vmax.f32 %v721, %v1042
  %v1211 = vmax.f32 %v725, %v1043
  %v1212 = vmax.f32 %v727, %v1044
  %v1213 = vmax.f32 %v731, %v1045
  %v1214 = vmax.f32 %v733, %v1046
  %v1215 = vmax.f32 %v737, %v1047
  %v1216 = vmax.f32 %v739, %v1048
  %v1217 = vmax.f32 %v743, %v1049
  %v1218 = vmax.f32 %v745, %v1050
  %v1219 = vmax.f32 %v749, %v1051
  %v1220 = vmax.f32 %v751, %v1052
  %v1221 = vmax.f32 %v755, %v1053
  %v1222 = vmax.f32 %v757, %v1054
  %v1223 = vmax.f32 %v761, %v1055
  %v1224 = vmax.f32 %v763, %v1056
  %v1225 = vmax.f32 %v767, %v1057
  %v1226 = vmax.f32 %v769, %v1058
  %v1227 = vmax.f32 %v773, %v1059
  %v1228 = vmax.f32 %v775, %v1060
  %v1229 = vmax.f32 %v779, %v1061
  %v1230 = vmax.f32 %v781, %v1062
  %v1231 = vmax.f32 %v785, %v1063
  %v1232 = vmax.f32 %v787, %v1064
  %v1233 = vmax.f32 %v791, %v1065
  %v1234 = vmax.f32 %v793, %v1066
  %v1235 = vmax.f32 %v797, %v1067
  %v1236 = vmax.f32 %v799, %v1068
  %v1237 = vmax.f32 %v803, %v1069
  %v1238 = vmax.f32 %v805, %v1070
  %v1239 = vmax.f32 %v809, %v1071
  %v1240 = vmax.f32 %v811, %v1072
  %v1241 = vmax.f32 %v815, %v1073
  %v1242 = vmax.f32 %v817, %v1074
  %v1243 = vmax.f32 %v821, %v1075
  %v1244 = vmax.f32 %v823, %v1076
  %v1245 = vmax.f32 %v827, %v1077
  %v1246 = vmax.f32 %v829, %v1078
  %v1247 = vmax.f32 %v833, %v1079
  %v1248 = vmax.f32 %v835, %v1080
  %v1249 = vmax.f32 %v839, %v1081
  %v1250 = vmax.f32 %v841, %v1082
  %v1251 = vmax.f32 %v845, %v1083
  %v1252 = vmax.f32 %v847, %v1084
  %v1253 = vmax.f32 %v851, %v1085
  %v1254 = vmax.f32 %v853, %v1086
  %v1255 = vmax.f32 %v857, %v1087
  %v1256 = vmax.f32 %v859, %v1088
  %v1257 = vmax.f32 %v863, %v1089
  %v1258 = vmax.f32 %v865, %v1090
  %v1259 = vmax.f32 %v869, %v1091
  %v1260 = vmax.f32 %v871, %v1092
  %v1261 = vmax.f32 %v875, %v1093
  %v1262 = vmax.f32 %v877, %v1094
  %v1263 = vmax.f32 %v881, %v1095
  %v1264 = vmax.f32 %v883, %v1096
  %v1265 = vmax.f32 %v887, %v1097
  %v1266 = vmax.f32 %v889, %v1098
  %v1267 = vmax.f32 %v893, %v1099
  %v1268 = vmax.f32 %v895, %v1100
  %v1269 = vmax.f32 %v899, %v1101
  %v1270 = vmax.f32 %v901, %v1102
  %v1271 = vmax.f32 %v905, %v1103
  %v1272 = vmax.f32 %v907, %v1104
  %v1273 = vmax.f32 %v911, %v1105
  %v1274 = vmax.f32 %v913, %v1106
  %v1275 = vmax.f32 %v917, %v1107
  %v1276 = vmax.f32 %v919, %v1108
  %v1277 = vmax.f32 %v923, %v1109
  %v1278 = vmax.f32 %v925, %v1110
  %v1279 = vmax.f32 %v929, %v1111
  %v1280 = vmax.f32 %v931, %v1112
  %v1281 = vmax.f32 %v935, %v1113
  %v1282 = vmax.f32 %v937, %v1114
  %v1283 = vmax.f32 %v941, %v1115
  %v1284 = vmax.f32 %v943, %v1116
  %v1285 = vmax.f32 %v947, %v1117
  %v1286 = vmax.f32 %v949, %v1118
  %v1287 = vld [vmem:[%s2] sm:$0xff]
  %v1288 = vld [vmem:[%s2 + $0x8] sm:$0xff]
  %v1289 = vld [vmem:[%s2 + $0x10] sm:$0xff]
  %v1290 = vld [vmem:[%s2 + $0x18] sm:$0xff]
  %v1291 = vld [vmem:[%s2 + $0x20] sm:$0xff]
  %v1292 = vld [vmem:[%s2 + $0x28] sm:$0xff]
  %v1293 = vld [vmem:[%s2 + $0x30] sm:$0xff]
  %v1294 = vld [vmem:[%s2 + $0x38] sm:$0xff]
  %v1295 = vld [vmem:[%s2 + $0x40] sm:$0xff]
  %v1296 = vld [vmem:[%s2 + $0x48] sm:$0xff]
  %v1297 = vld [vmem:[%s2 + $0x50] sm:$0xff]
  %v1298 = vld [vmem:[%s2 + $0x58] sm:$0xff]
  %v1299 = vld [vmem:[%s2 + $0x60] sm:$0xff]
  %v1300 = vld [vmem:[%s2 + $0x68] sm:$0xff]
  %v1301 = vld [vmem:[%s2 + $0x70] sm:$0xff]
  %v1302 = vld [vmem:[%s2 + $0x78] sm:$0xff]
  %v1303 = vld [vmem:[%s2 + $0x80] sm:$0xff]
  %v1304 = vld [vmem:[%s2 + $0x88] sm:$0xff]
  %v1305 = vld [vmem:[%s2 + $0x90] sm:$0xff]
  %v1306 = vld [vmem:[%s2 + $0x98] sm:$0xff]
  %v1307 = vld [vmem:[%s2 + $0xa0] sm:$0xff]
  %v1308 = vld [vmem:[%s2 + $0xa8] sm:$0xff]
  %v1309 = vld [vmem:[%s2 + $0xb0] sm:$0xff]
  %v1310 = vld [vmem:[%s2 + $0xb8] sm:$0xff]
  %v1311 = vld [vmem:[%s2 + $0xc0] sm:$0xff]
  %v1312 = vld [vmem:[%s2 + $0xc8] sm:$0xff]
  %v1313 = vld [vmem:[%s2 + $0xd0] sm:$0xff]
  %v1314 = vld [vmem:[%s2 + $0xd8] sm:$0xff]
  %v1315 = vld [vmem:[%s2 + $0xe0] sm:$0xff]
  %v1316 = vld [vmem:[%s2 + $0xe8] sm:$0xff]
  %v1317 = vld [vmem:[%s2 + $0xf0] sm:$0xff]
  %v1318 = vld [vmem:[%s2 + $0xf8] sm:$0xff]
  %v1319 = vld [vmem:[%s2 + $0x100] sm:$0xff]
  %v1320 = vld [vmem:[%s2 + $0x108] sm:$0xff]
  %v1321 = vld [vmem:[%s2 + $0x110] sm:$0xff]
  %v1322 = vld [vmem:[%s2 + $0x118] sm:$0xff]
  %v1323 = vld [vmem:[%s2 + $0x120] sm:$0xff]
  %v1324 = vld [vmem:[%s2 + $0x128] sm:$0xff]
  %v1325 = vld [vmem:[%s2 + $0x130] sm:$0xff]
  %v1326 = vld [vmem:[%s2 + $0x138] sm:$0xff]
  %v1327 = vld [vmem:[%s2 + $0x140] sm:$0xff]
  %v1328 = vld [vmem:[%s2 + $0x148] sm:$0xff]
  %v1329 = vld [vmem:[%s2 + $0x150] sm:$0xff]
  %v1330 = vld [vmem:[%s2 + $0x158] sm:$0xff]
  %v1331 = vld [vmem:[%s2 + $0x160] sm:$0xff]
  %v1332 = vld [vmem:[%s2 + $0x168] sm:$0xff]
  %v1333 = vld [vmem:[%s2 + $0x170] sm:$0xff]
  %v1334 = vld [vmem:[%s2 + $0x178] sm:$0xff]
  %v1335 = vld [vmem:[%s2 + $0x180] sm:$0xff]
  %v1336 = vld [vmem:[%s2 + $0x188] sm:$0xff]
  %v1337 = vld [vmem:[%s2 + $0x190] sm:$0xff]
  %v1338 = vld [vmem:[%s2 + $0x198] sm:$0xff]
  %v1339 = vld [vmem:[%s2 + $0x1a0] sm:$0xff]
  %v1340 = vld [vmem:[%s2 + $0x1a8] sm:$0xff]
  %v1341 = vld [vmem:[%s2 + $0x1b0] sm:$0xff]
  %v1342 = vld [vmem:[%s2 + $0x1b8] sm:$0xff]
  %v1343 = vld [vmem:[%s2 + $0x1c0] sm:$0xff]
  %v1344 = vld [vmem:[%s2 + $0x1c8] sm:$0xff]
  %v1345 = vld [vmem:[%s2 + $0x1d0] sm:$0xff]
  %v1346 = vld [vmem:[%s2 + $0x1d8] sm:$0xff]
  %v1347 = vld [vmem:[%s2 + $0x1e0] sm:$0xff]
  %v1348 = vld [vmem:[%s2 + $0x1e8] sm:$0xff]
  %v1349 = vld [vmem:[%s2 + $0x1f0] sm:$0xff]
  %v1350 = vld [vmem:[%s2 + $0x1f8] sm:$0xff]
  %1351 = vmatprep.subr.mxu0 %v1288
  %1352 = vmatpush1.msra.mxu0 %v1287
  %1353 = vmatprep.subr.mxu0 %v1290
  %1354 = vmatpush1.msra.mxu0 %v1289
  %1355 = vmatprep.subr.mxu0 %v1292
  %1356 = vmatpush1.msra.mxu0 %v1291
  %1357 = vmatprep.subr.mxu0 %v1294
  %1358 = vmatpush1.msra.mxu0 %v1293
  %1359 = vmatprep.subr.mxu0 %v1296
  %1360 = vmatpush1.msra.mxu0 %v1295
  %1361 = vmatprep.subr.mxu0 %v1298
  %1362 = vmatpush1.msra.mxu0 %v1297
  %1363 = vmatprep.subr.mxu0 %v1300
  %1364 = vmatpush1.msra.mxu0 %v1299
  %1365 = vmatprep.subr.mxu0 %v1302
  %1366 = vmatpush1.msra.mxu0 %v1301
  %1367 = vmatprep.subr.mxu0 %v1304
  %1368 = vmatpush1.msra.mxu0 %v1303
  %1369 = vmatprep.subr.mxu0 %v1306
  %1370 = vmatpush1.msra.mxu0 %v1305
  %1371 = vmatprep.subr.mxu0 %v1308
  %1372 = vmatpush1.msra.mxu0 %v1307
  %1373 = vmatprep.subr.mxu0 %v1310
  %1374 = vmatpush1.msra.mxu0 %v1309
  %1375 = vmatprep.subr.mxu0 %v1312
  %1376 = vmatpush1.msra.mxu0 %v1311
  %1377 = vmatprep.subr.mxu0 %v1314
  %1378 = vmatpush1.msra.mxu0 %v1313
  %1379 = vmatprep.subr.mxu0 %v1316
  %1380 = vmatpush1.msra.mxu0 %v1315
  %1381 = vmatprep.subr.mxu0 %v1318
  %1382 = vmatpush1.msra.mxu0 %v1317
  %1383 = vmatprep.subr.mxu0 %v1320
  %1384 = vmatpush1.msra.mxu0 %v1319
  %1385 = vmatprep.subr.mxu0 %v1322
  %1386 = vmatpush1.msra.mxu0 %v1321
  %1387 = vmatprep.subr.mxu0 %v1324
  %1388 = vmatpush1.msra.mxu0 %v1323
  %1389 = vmatprep.subr.mxu0 %v1326
  %1390 = vmatpush1.msra.mxu0 %v1325
  %1391 = vmatprep.subr.mxu0 %v1328
  %1392 = vmatpush1.msra.mxu0 %v1327
  %1393 = vmatprep.subr.mxu0 %v1330
  %1394 = vmatpush1.msra.mxu0 %v1329
  %1395 = vmatprep.subr.mxu0 %v1332
  %1396 = vmatpush1.msra.mxu0 %v1331
  %1397 = vmatprep.subr.mxu0 %v1334
  %1398 = vmatpush1.msra.mxu0 %v1333
  %1399 = vmatprep.subr.mxu0 %v1336
  %1400 = vmatpush1.msra.mxu0 %v1335
  %1401 = vmatprep.subr.mxu0 %v1338
  %1402 = vmatpush1.msra.mxu0 %v1337
  %1403 = vmatprep.subr.mxu0 %v1340
  %1404 = vmatpush1.msra.mxu0 %v1339
  %1405 = vmatprep.subr.mxu0 %v1342
  %1406 = vmatpush1.msra.mxu0 %v1341
  %1407 = vmatprep.subr.mxu0 %v1344
  %1408 = vmatpush1.msra.mxu0 %v1343
  %1409 = vmatprep.subr.mxu0 %v1346
  %1410 = vmatpush1.msra.mxu0 %v1345
  %1411 = vmatprep.subr.mxu0 %v1348
  %1412 = vmatpush1.msra.mxu0 %v1347
  %1413 = vmatprep.subr.mxu0 %v1350
  %1414 = vmatpush1.msra.mxu0 %v1349
  %1415 = vmatprep.mubr.f32.mxu0 %v1120
  %1416 = vmatmul.mubr.f32.gmra.mrb[0].mxu0 %v1119
  %v1417 = vpop.f32.mrb[0].mxu0
  %v1418 = vadd.f32 0.0, %v1417
  %v1419 = vpop.f32.mrb[0].mxu0
  %v1420 = vadd.f32 0.0, %v1419
  %1421 = vmatprep.mubr.f32.mxu0 %v1122
  %1422 = vmatmul.mubr.f32.gmra.mrb[0].mxu0 %v1121
  %v1423 = vpop.f32.mrb[0].mxu0
  %v1424 = vadd.f32 0.0, %v1423
  %v1425 = vpop.f32.mrb[0].mxu0
  %v1426 = vadd.f32 0.0, %v1425
  %1427 = vmatprep.mubr.f32.mxu0 %v1124
  %1428 = vmatmul.mubr.f32.gmra.mrb[0].mxu0 %v1123
  %v1429 = vpop.f32.mrb[0].mxu0
  %v1430 = vadd.f32 0.0, %v1429
  %v1431 = vpop.f32.mrb[0].mxu0
  %v1432 = vadd.f32 0.0, %v1431
  %1433 = vmatprep.mubr.f32.mxu0 %v1126
  %1434 = vmatmul.mubr.f32.gmra.mrb[0].mxu0 %v1125
  %v1435 = vpop.f32.mrb[0].mxu0
  %v1436 = vadd.f32 0.0, %v1435
  %v1437 = vpop.f32.mrb[0].mxu0
  %v1438 = vadd.f32 0.0, %v1437
  %1439 = vmatprep.mubr.f32.mxu0 %v1128
  %1440 = vmatmul.mubr.f32.gmra.mrb[0].mxu0 %v1127
  %v1441 = vpop.f32.mrb[0].mxu0
  %v1442 = vadd.f32 0.0, %v1441
  %v1443 = vpop.f32.mrb[0].mxu0
  %v1444 = vadd.f32 0.0, %v1443
  %1445 = vmatprep.mubr.f32.mxu0 %v1130
  %1446 = vmatmul.mubr.f32.gmra.mrb[0].mxu0 %v1129
  %v1447 = vpop.f32.mrb[0].mxu0
  %v1448 = vadd.f32 0.0, %v1447
  %v1449 = vpop.f32.mrb[0].mxu0
  %v1450 = vadd.f32 0.0, %v1449
  %1451 = vmatprep.mubr.f32.mxu0 %v1132
  %1452 = vmatmul.mubr.f32.gmra.mrb[0].mxu0 %v1131
  %v1453 = vpop.f32.mrb[0].mxu0
  %v1454 = vadd.f32 0.0, %v1453
  %v1455 = vpop.f32.mrb[0].mxu0
  %v1456 = vadd.f32 0.0, %v1455
  %1457 = vmatprep.mubr.f32.mxu0 %v1134
  %1458 = vmatmul.mubr.f32.gmra.mrb[0].mxu0 %v1133
  %v1459 = vpop.f32.mrb[0].mxu0
  %v1460 = vadd.f32 0.0, %v1459
  %v1461 = vpop.f32.mrb[0].mxu0
  %v1462 = vadd.f32 0.0, %v1461
  %1463 = vmatprep.mubr.f32.mxu0 %v1136
  %1464 = vmatmul.mubr.f32.gmra.mrb[0].mxu0 %v1135
  %v1465 = vpop.f32.mrb[0].mxu0
  %v1466 = vadd.f32 0.0, %v1465
  %v1467 = vpop.f32.mrb[0].mxu0
  %v1468 = vadd.f32 0.0, %v1467
  %1469 = vmatprep.mubr.f32.mxu0 %v1138
  %1470 = vmatmul.mubr.f32.gmra.mrb[0].mxu0 %v1137
  %v1471 = vpop.f32.mrb[0].mxu0
  %v1472 = vadd.f32 0.0, %v1471
  %v1473 = vpop.f32.mrb[0].mxu0
  %v1474 = vadd.f32 0.0, %v1473
  %1475 = vmatprep.mubr.f32.mxu0 %v1140
  %1476 = vmatmul.mubr.f32.gmra.mrb[0].mxu0 %v1139
  %v1477 = vpop.f32.mrb[0].mxu0
  %v1478 = vadd.f32 0.0, %v1477
  %v1479 = vpop.f32.mrb[0].mxu0
  %v1480 = vadd.f32 0.0, %v1479
  %1481 = vmatprep.mubr.f32.mxu0 %v1142
  %1482 = vmatmul.mubr.f32.gmra.mrb[0].mxu0 %v1141
  %v1483 = vpop.f32.mrb[0].mxu0
  %v1484 = vadd.f32 0.0, %v1483
  %v1485 = vpop.f32.mrb[0].mxu0
  %v1486 = vadd.f32 0.0, %v1485
  %1487 = vmatprep.mubr.f32.mxu0 %v1144
  %1488 = vmatmul.mubr.f32.gmra.mrb[0].mxu0 %v1143
  %v1489 = vpop.f32.mrb[0].mxu0
  %v1490 = vadd.f32 0.0, %v1489
  %v1491 = vpop.f32.mrb[0].mxu0
  %v1492 = vadd.f32 0.0, %v1491
  %1493 = vmatprep.mubr.f32.mxu0 %v1146
  %1494 = vmatmul.mubr.f32.gmra.mrb[0].mxu0 %v1145
  %v1495 = vpop.f32.mrb[0].mxu0
  %v1496 = vadd.f32 0.0, %v1495
  %v1497 = vpop.f32.mrb[0].mxu0
  %v1498 = vadd.f32 0.0, %v1497
  %1499 = vmatprep.mubr.f32.mxu0 %v1148
  %1500 = vmatmul.mubr.f32.gmra.mrb[0].mxu0 %v1147
  %v1501 = vpop.f32.mrb[0].mxu0
  %v1502 = vadd.f32 0.0, %v1501
  %v1503 = vpop.f32.mrb[0].mxu0
  %v1504 = vadd.f32 0.0, %v1503
  %1505 = vmatprep.mubr.f32.mxu0 %v1150
  %1506 = vmatmul.mubr.f32.gmra.mrb[0].mxu0 %v1149
  %v1507 = vpop.f32.mrb[0].mxu0
  %v1508 = vadd.f32 0.0, %v1507
  %v1509 = vpop.f32.mrb[0].mxu0
  %v1510 = vadd.f32 0.0, %v1509
  %1511 = vmatprep.mubr.f32.mxu0 %v1152
  %1512 = vmatmul.mubr.f32.gmra.mrb[0].mxu0 %v1151
  %v1513 = vpop.f32.mrb[0].mxu0
  %v1514 = vadd.f32 0.0, %v1513
  %v1515 = vpop.f32.mrb[0].mxu0
  %v1516 = vadd.f32 0.0, %v1515
  %1517 = vmatprep.mubr.f32.mxu0 %v1154
  %1518 = vmatmul.mubr.f32.gmra.mrb[0].mxu0 %v1153
  %v1519 = vpop.f32.mrb[0].mxu0
  %v1520 = vadd.f32 0.0, %v1519
  %v1521 = vpop.f32.mrb[0].mxu0
  %v1522 = vadd.f32 0.0, %v1521
  %1523 = vmatprep.mubr.f32.mxu0 %v1156
  %1524 = vmatmul.mubr.f32.gmra.mrb[0].mxu0 %v1155
  %v1525 = vpop.f32.mrb[0].mxu0
  %v1526 = vadd.f32 0.0, %v1525
  %v1527 = vpop.f32.mrb[0].mxu0
  %v1528 = vadd.f32 0.0, %v1527
  %1529 = vmatprep.mubr.f32.mxu0 %v1158
  %1530 = vmatmul.mubr.f32.gmra.mrb[0].mxu0 %v1157
  %v1531 = vpop.f32.mrb[0].mxu0
  %v1532 = vadd.f32 0.0, %v1531
  %v1533 = vpop.f32.mrb[0].mxu0
  %v1534 = vadd.f32 0.0, %v1533
  %1535 = vmatprep.mubr.f32.mxu0 %v1160
  %1536 = vmatmul.mubr.f32.gmra.mrb[0].mxu0 %v1159
  %v1537 = vpop.f32.mrb[0].mxu0
  %v1538 = vadd.f32 0.0, %v1537
  %v1539 = vpop.f32.mrb[0].mxu0
  %v1540 = vadd.f32 0.0, %v1539
  %1541 = vmatprep.mubr.f32.mxu0 %v1162
  %1542 = vmatmul.mubr.f32.gmra.mrb[0].mxu0 %v1161
  %v1543 = vpop.f32.mrb[0].mxu0
  %v1544 = vadd.f32 0.0, %v1543
  %v1545 = vpop.f32.mrb[0].mxu0
  %v1546 = vadd.f32 0.0, %v1545
  %1547 = vmatprep.mubr.f32.mxu0 %v1164
  %1548 = vmatmul.mubr.f32.gmra.mrb[0].mxu0 %v1163
  %v1549 = vpop.f32.mrb[0].mxu0
  %v1550 = vadd.f32 0.0, %v1549
  %v1551 = vpop.f32.mrb[0].mxu0
  %v1552 = vadd.f32 0.0, %v1551
  %1553 = vmatprep.mubr.f32.mxu0 %v1166
  %1554 = vmatmul.mubr.f32.gmra.mrb[0].mxu0 %v1165
  %v1555 = vpop.f32.mrb[0].mxu0
  %v1556 = vadd.f32 0.0, %v1555
  %v1557 = vpop.f32.mrb[0].mxu0
  %v1558 = vadd.f32 0.0, %v1557
  %1559 = vmatprep.mubr.f32.mxu0 %v1168
  %1560 = vmatmul.mubr.f32.gmra.mrb[0].mxu0 %v1167
  %v1561 = vpop.f32.mrb[0].mxu0
  %v1562 = vadd.f32 0.0, %v1561
  %v1563 = vpop.f32.mrb[0].mxu0
  %v1564 = vadd.f32 0.0, %v1563
  %1565 = vmatprep.mubr.f32.mxu0 %v1170
  %1566 = vmatmul.mubr.f32.gmra.mrb[0].mxu0 %v1169
  %v1567 = vpop.f32.mrb[0].mxu0
  %v1568 = vadd.f32 0.0, %v1567
  %v1569 = vpop.f32.mrb[0].mxu0
  %v1570 = vadd.f32 0.0, %v1569
  %1571 = vmatprep.mubr.f32.mxu0 %v1172
  %1572 = vmatmul.mubr.f32.gmra.mrb[0].mxu0 %v1171
  %v1573 = vpop.f32.mrb[0].mxu0
  %v1574 = vadd.f32 0.0, %v1573
  %v1575 = vpop.f32.mrb[0].mxu0
  %v1576 = vadd.f32 0.0, %v1575
  %1577 = vmatprep.mubr.f32.mxu0 %v1174
  %1578 = vmatmul.mubr.f32.gmra.mrb[0].mxu0 %v1173
  %v1579 = vpop.f32.mrb[0].mxu0
  %v1580 = vadd.f32 0.0, %v1579
  %v1581 = vpop.f32.mrb[0].mxu0
  %v1582 = vadd.f32 0.0, %v1581
  %1583 = vmatprep.mubr.f32.mxu0 %v1176
  %1584 = vmatmul.mubr.f32.gmra.mrb[0].mxu0 %v1175
  %v1585 = vpop.f32.mrb[0].mxu0
  %v1586 = vadd.f32 0.0, %v1585
  %v1587 = vpop.f32.mrb[0].mxu0
  %v1588 = vadd.f32 0.0, %v1587
  %1589 = vmatprep.mubr.f32.mxu0 %v1178
  %1590 = vmatmul.mubr.f32.gmra.mrb[0].mxu0 %v1177
  %v1591 = vpop.f32.mrb[0].mxu0
  %v1592 = vadd.f32 0.0, %v1591
  %v1593 = vpop.f32.mrb[0].mxu0
  %v1594 = vadd.f32 0.0, %v1593
  %1595 = vmatprep.mubr.f32.mxu0 %v1180
  %1596 = vmatmul.mubr.f32.gmra.mrb[0].mxu0 %v1179
  %v1597 = vpop.f32.mrb[0].mxu0
  %v1598 = vadd.f32 0.0, %v1597
  %v1599 = vpop.f32.mrb[0].mxu0
  %v1600 = vadd.f32 0.0, %v1599
  %1601 = vmatprep.mubr.f32.mxu0 %v1182
  %1602 = vmatmul.mubr.f32.gmra.mrb[0].mxu0 %v1181
  %v1603 = vpop.f32.mrb[0].mxu0
  %v1604 = vadd.f32 0.0, %v1603
  %v1605 = vpop.f32.mrb[0].mxu0
  %v1606 = vadd.f32 0.0, %v1605
  %1607 = vmatprep.mubr.f32.mxu0 %v1184
  %1608 = vmatmul.mubr.f32.gmra.mrb[0].mxu0 %v1183
  %v1609 = vpop.f32.mrb[0].mxu0
  %v1610 = vadd.f32 0.0, %v1609
  %v1611 = vpop.f32.mrb[0].mxu0
  %v1612 = vadd.f32 0.0, %v1611
  %1613 = vmatprep.mubr.f32.mxu0 %v1186
  %1614 = vmatmul.mubr.f32.gmra.mrb[0].mxu0 %v1185
  %v1615 = vpop.f32.mrb[0].mxu0
  %v1616 = vadd.f32 0.0, %v1615
  %v1617 = vpop.f32.mrb[0].mxu0
  %v1618 = vadd.f32 0.0, %v1617
  %1619 = vmatprep.mubr.f32.mxu0 %v1188
  %1620 = vmatmul.mubr.f32.gmra.mrb[0].mxu0 %v1187
  %v1621 = vpop.f32.mrb[0].mxu0
  %v1622 = vadd.f32 0.0, %v1621
  %v1623 = vpop.f32.mrb[0].mxu0
  %v1624 = vadd.f32 0.0, %v1623
  %1625 = vmatprep.mubr.f32.mxu0 %v1190
  %1626 = vmatmul.mubr.f32.gmra.mrb[0].mxu0 %v1189
  %v1627 = vpop.f32.mrb[0].mxu0
  %v1628 = vadd.f32 0.0, %v1627
  %v1629 = vpop.f32.mrb[0].mxu0
  %v1630 = vadd.f32 0.0, %v1629
  %1631 = vmatprep.mubr.f32.mxu0 %v1192
  %1632 = vmatmul.mubr.f32.gmra.mrb[0].mxu0 %v1191
  %v1633 = vpop.f32.mrb[0].mxu0
  %v1634 = vadd.f32 0.0, %v1633
  %v1635 = vpop.f32.mrb[0].mxu0
  %v1636 = vadd.f32 0.0, %v1635
  %1637 = vmatprep.mubr.f32.mxu0 %v1194
  %1638 = vmatmul.mubr.f32.gmra.mrb[0].mxu0 %v1193
  %v1639 = vpop.f32.mrb[0].mxu0
  %v1640 = vadd.f32 0.0, %v1639
  %v1641 = vpop.f32.mrb[0].mxu0
  %v1642 = vadd.f32 0.0, %v1641
  %1643 = vmatprep.mubr.f32.mxu0 %v1196
  %1644 = vmatmul.mubr.f32.gmra.mrb[0].mxu0 %v1195
  %v1645 = vpop.f32.mrb[0].mxu0
  %v1646 = vadd.f32 0.0, %v1645
  %v1647 = vpop.f32.mrb[0].mxu0
  %v1648 = vadd.f32 0.0, %v1647
  %1649 = vmatprep.mubr.f32.mxu0 %v1198
  %1650 = vmatmul.mubr.f32.gmra.mrb[0].mxu0 %v1197
  %v1651 = vpop.f32.mrb[0].mxu0
  %v1652 = vadd.f32 0.0, %v1651
  %v1653 = vpop.f32.mrb[0].mxu0
  %v1654 = vadd.f32 0.0, %v1653
  %1655 = vmatprep.mubr.f32.mxu0 %v1200
  %1656 = vmatmul.mubr.f32.gmra.mrb[0].mxu0 %v1199
  %v1657 = vpop.f32.mrb[0].mxu0
  %v1658 = vadd.f32 0.0, %v1657
  %v1659 = vpop.f32.mrb[0].mxu0
  %v1660 = vadd.f32 0.0, %v1659
  %1661 = vmatprep.mubr.f32.mxu0 %v1202
  %1662 = vmatmul.mubr.f32.gmra.mrb[0].mxu0 %v1201
  %v1663 = vpop.f32.mrb[0].mxu0
  %v1664 = vadd.f32 0.0, %v1663
  %v1665 = vpop.f32.mrb[0].mxu0
  %v1666 = vadd.f32 0.0, %v1665
  %1667 = vmatprep.mubr.f32.mxu0 %v1204
  %1668 = vmatmul.mubr.f32.gmra.mrb[0].mxu0 %v1203
  %v1669 = vpop.f32.mrb[0].mxu0
  %v1670 = vadd.f32 0.0, %v1669
  %v1671 = vpop.f32.mrb[0].mxu0
  %v1672 = vadd.f32 0.0, %v1671
  %1673 = vmatprep.mubr.f32.mxu0 %v1206
  %1674 = vmatmul.mubr.f32.gmra.mrb[0].mxu0 %v1205
  %v1675 = vpop.f32.mrb[0].mxu0
  %v1676 = vadd.f32 0.0, %v1675
  %v1677 = vpop.f32.mrb[0].mxu0
  %v1678 = vadd.f32 0.0, %v1677
  %1679 = vmatprep.mubr.f32.mxu0 %v1208
  %1680 = vmatmul.mubr.f32.gmra.mrb[0].mxu0 %v1207
  %v1681 = vpop.f32.mrb[0].mxu0
  %v1682 = vadd.f32 0.0, %v1681
  %v1683 = vpop.f32.mrb[0].mxu0
  %v1684 = vadd.f32 0.0, %v1683
  %1685 = vmatprep.mubr.f32.mxu0 %v1210
  %1686 = vmatmul.mubr.f32.gmra.mrb[0].mxu0 %v1209
  %v1687 = vpop.f32.mrb[0].mxu0
  %v1688 = vadd.f32 0.0, %v1687
  %v1689 = vpop.f32.mrb[0].mxu0
  %v1690 = vadd.f32 0.0, %v1689
  %1691 = vmatprep.mubr.f32.mxu0 %v1212
  %1692 = vmatmul.mubr.f32.gmra.mrb[0].mxu0 %v1211
  %v1693 = vpop.f32.mrb[0].mxu0
  %v1694 = vadd.f32 0.0, %v1693
  %v1695 = vpop.f32.mrb[0].mxu0
  %v1696 = vadd.f32 0.0, %v1695
  %1697 = vmatprep.mubr.f32.mxu0 %v1214
  %1698 = vmatmul.mubr.f32.gmra.mrb[0].mxu0 %v1213
  %v1699 = vpop.f32.mrb[0].mxu0
  %v1700 = vadd.f32 0.0, %v1699
  %v1701 = vpop.f32.mrb[0].mxu0
  %v1702 = vadd.f32 0.0, %v1701
  %1703 = vmatprep.mubr.f32.mxu0 %v1216
  %1704 = vmatmul.mubr.f32.gmra.mrb[0].mxu0 %v1215
  %v1705 = vpop.f32.mrb[0].mxu0
  %v1706 = vadd.f32 0.0, %v1705
  %v1707 = vpop.f32.mrb[0].mxu0
  %v1708 = vadd.f32 0.0, %v1707
  %1709 = vmatprep.mubr.f32.mxu0 %v1218
  %1710 = vmatmul.mubr.f32.gmra.mrb[0].mxu0 %v1217
  %v1711 = vpop.f32.mrb[0].mxu0
  %v1712 = vadd.f32 0.0, %v1711
  %v1713 = vpop.f32.mrb[0].mxu0
  %v1714 = vadd.f32 0.0, %v1713
  %1715 = vmatprep.mubr.f32.mxu0 %v1220
  %1716 = vmatmul.mubr.f32.gmra.mrb[0].mxu0 %v1219
  %v1717 = vpop.f32.mrb[0].mxu0
  %v1718 = vadd.f32 0.0, %v1717
  %v1719 = vpop.f32.mrb[0].mxu0
  %v1720 = vadd.f32 0.0, %v1719
  %1721 = vmatprep.mubr.f32.mxu0 %v1222
  %1722 = vmatmul.mubr.f32.gmra.mrb[0].mxu0 %v1221
  %v1723 = vpop.f32.mrb[0].mxu0
  %v1724 = vadd.f32 0.0, %v1723
  %v1725 = vpop.f32.mrb[0].mxu0
  %v1726 = vadd.f32 0.0, %v1725
  %1727 = vmatprep.mubr.f32.mxu0 %v1224
  %1728 = vmatmul.mubr.f32.gmra.mrb[0].mxu0 %v1223
  %v1729 = vpop.f32.mrb[0].mxu0
  %v1730 = vadd.f32 0.0, %v1729
  %v1731 = vpop.f32.mrb[0].mxu0
  %v1732 = vadd.f32 0.0, %v1731
  %1733 = vmatprep.mubr.f32.mxu0 %v1226
  %1734 = vmatmul.mubr.f32.gmra.mrb[0].mxu0 %v1225
  %v1735 = vpop.f32.mrb[0].mxu0
  %v1736 = vadd.f32 0.0, %v1735
  %v1737 = vpop.f32.mrb[0].mxu0
  %v1738 = vadd.f32 0.0, %v1737
  %1739 = vmatprep.mubr.f32.mxu0 %v1228
  %1740 = vmatmul.mubr.f32.gmra.mrb[0].mxu0 %v1227
  %v1741 = vpop.f32.mrb[0].mxu0
  %v1742 = vadd.f32 0.0, %v1741
  %v1743 = vpop.f32.mrb[0].mxu0
  %v1744 = vadd.f32 0.0, %v1743
  %1745 = vmatprep.mubr.f32.mxu0 %v1230
  %1746 = vmatmul.mubr.f32.gmra.mrb[0].mxu0 %v1229
  %v1747 = vpop.f32.mrb[0].mxu0
  %v1748 = vadd.f32 0.0, %v1747
  %v1749 = vpop.f32.mrb[0].mxu0
  %v1750 = vadd.f32 0.0, %v1749
  %1751 = vmatprep.mubr.f32.mxu0 %v1232
  %1752 = vmatmul.mubr.f32.gmra.mrb[0].mxu0 %v1231
  %v1753 = vpop.f32.mrb[0].mxu0
  %v1754 = vadd.f32 0.0, %v1753
  %v1755 = vpop.f32.mrb[0].mxu0
  %v1756 = vadd.f32 0.0, %v1755
  %1757 = vmatprep.mubr.f32.mxu0 %v1234
  %1758 = vmatmul.mubr.f32.gmra.mrb[0].mxu0 %v1233
  %v1759 = vpop.f32.mrb[0].mxu0
  %v1760 = vadd.f32 0.0, %v1759
  %v1761 = vpop.f32.mrb[0].mxu0
  %v1762 = vadd.f32 0.0, %v1761
  %1763 = vmatprep.mubr.f32.mxu0 %v1236
  %1764 = vmatmul.mubr.f32.gmra.mrb[0].mxu0 %v1235
  %v1765 = vpop.f32.mrb[0].mxu0
  %v1766 = vadd.f32 0.0, %v1765
  %v1767 = vpop.f32.mrb[0].mxu0
  %v1768 = vadd.f32 0.0, %v1767
  %1769 = vmatprep.mubr.f32.mxu0 %v1238
  %1770 = vmatmul.mubr.f32.gmra.mrb[0].mxu0 %v1237
  %v1771 = vpop.f32.mrb[0].mxu0
  %v1772 = vadd.f32 0.0, %v1771
  %v1773 = vpop.f32.mrb[0].mxu0
  %v1774 = vadd.f32 0.0, %v1773
  %1775 = vmatprep.mubr.f32.mxu0 %v1240
  %1776 = vmatmul.mubr.f32.gmra.mrb[0].mxu0 %v1239
  %v1777 = vpop.f32.mrb[0].mxu0
  %v1778 = vadd.f32 0.0, %v1777
  %v1779 = vpop.f32.mrb[0].mxu0
  %v1780 = vadd.f32 0.0, %v1779
  %1781 = vmatprep.mubr.f32.mxu0 %v1242
  %1782 = vmatmul.mubr.f32.gmra.mrb[0].mxu0 %v1241
  %v1783 = vpop.f32.mrb[0].mxu0
  %v1784 = vadd.f32 0.0, %v1783
  %v1785 = vpop.f32.mrb[0].mxu0
  %v1786 = vadd.f32 0.0, %v1785
  %1787 = vmatprep.mubr.f32.mxu0 %v1244
  %1788 = vmatmul.mubr.f32.gmra.mrb[0].mxu0 %v1243
  %v1789 = vpop.f32.mrb[0].mxu0
  %v1790 = vadd.f32 0.0, %v1789
  %v1791 = vpop.f32.mrb[0].mxu0
  %v1792 = vadd.f32 0.0, %v1791
  %1793 = vmatprep.mubr.f32.mxu0 %v1246
  %1794 = vmatmul.mubr.f32.gmra.mrb[0].mxu0 %v1245
  %v1795 = vpop.f32.mrb[0].mxu0
  %v1796 = vadd.f32 0.0, %v1795
  %v1797 = vpop.f32.mrb[0].mxu0
  %v1798 = vadd.f32 0.0, %v1797
  %1799 = vmatprep.mubr.f32.mxu0 %v1248
  %1800 = vmatmul.mubr.f32.gmra.mrb[0].mxu0 %v1247
  %v1801 = vpop.f32.mrb[0].mxu0
  %v1802 = vadd.f32 0.0, %v1801
  %v1803 = vpop.f32.mrb[0].mxu0
  %v1804 = vadd.f32 0.0, %v1803
  %1805 = vmatprep.mubr.f32.mxu0 %v1250
  %1806 = vmatmul.mubr.f32.gmra.mrb[0].mxu0 %v1249
  %v1807 = vpop.f32.mrb[0].mxu0
  %v1808 = vadd.f32 0.0, %v1807
  %v1809 = vpop.f32.mrb[0].mxu0
  %v1810 = vadd.f32 0.0, %v1809
  %1811 = vmatprep.mubr.f32.mxu0 %v1252
  %1812 = vmatmul.mubr.f32.gmra.mrb[0].mxu0 %v1251
  %v1813 = vpop.f32.mrb[0].mxu0
  %v1814 = vadd.f32 0.0, %v1813
  %v1815 = vpop.f32.mrb[0].mxu0
  %v1816 = vadd.f32 0.0, %v1815
  %1817 = vmatprep.mubr.f32.mxu0 %v1254
  %1818 = vmatmul.mubr.f32.gmra.mrb[0].mxu0 %v1253
  %v1819 = vpop.f32.mrb[0].mxu0
  %v1820 = vadd.f32 0.0, %v1819
  %v1821 = vpop.f32.mrb[0].mxu0
  %v1822 = vadd.f32 0.0, %v1821
  %1823 = vmatprep.mubr.f32.mxu0 %v1256
  %1824 = vmatmul.mubr.f32.gmra.mrb[0].mxu0 %v1255
  %v1825 = vpop.f32.mrb[0].mxu0
  %v1826 = vadd.f32 0.0, %v1825
  %v1827 = vpop.f32.mrb[0].mxu0
  %v1828 = vadd.f32 0.0, %v1827
  %1829 = vmatprep.mubr.f32.mxu0 %v1258
  %1830 = vmatmul.mubr.f32.gmra.mrb[0].mxu0 %v1257
  %v1831 = vpop.f32.mrb[0].mxu0
  %v1832 = vadd.f32 0.0, %v1831
  %v1833 = vpop.f32.mrb[0].mxu0
  %v1834 = vadd.f32 0.0, %v1833
  %1835 = vmatprep.mubr.f32.mxu0 %v1260
  %1836 = vmatmul.mubr.f32.gmra.mrb[0].mxu0 %v1259
  %v1837 = vpop.f32.mrb[0].mxu0
  %v1838 = vadd.f32 0.0, %v1837
  %v1839 = vpop.f32.mrb[0].mxu0
  %v1840 = vadd.f32 0.0, %v1839
  %1841 = vmatprep.mubr.f32.mxu0 %v1262
  %1842 = vmatmul.mubr.f32.gmra.mrb[0].mxu0 %v1261
  %v1843 = vpop.f32.mrb[0].mxu0
  %v1844 = vadd.f32 0.0, %v1843
  %v1845 = vpop.f32.mrb[0].mxu0
  %v1846 = vadd.f32 0.0, %v1845
  %1847 = vmatprep.mubr.f32.mxu0 %v1264
  %1848 = vmatmul.mubr.f32.gmra.mrb[0].mxu0 %v1263
  %v1849 = vpop.f32.mrb[0].mxu0
  %v1850 = vadd.f32 0.0, %v1849
  %v1851 = vpop.f32.mrb[0].mxu0
  %v1852 = vadd.f32 0.0, %v1851
  %1853 = vmatprep.mubr.f32.mxu0 %v1266
  %1854 = vmatmul.mubr.f32.gmra.mrb[0].mxu0 %v1265
  %v1855 = vpop.f32.mrb[0].mxu0
  %v1856 = vadd.f32 0.0, %v1855
  %v1857 = vpop.f32.mrb[0].mxu0
  %v1858 = vadd.f32 0.0, %v1857
  %1859 = vmatprep.mubr.f32.mxu0 %v1268
  %1860 = vmatmul.mubr.f32.gmra.mrb[0].mxu0 %v1267
  %v1861 = vpop.f32.mrb[0].mxu0
  %v1862 = vadd.f32 0.0, %v1861
  %v1863 = vpop.f32.mrb[0].mxu0
  %v1864 = vadd.f32 0.0, %v1863
  %1865 = vmatprep.mubr.f32.mxu0 %v1270
  %1866 = vmatmul.mubr.f32.gmra.mrb[0].mxu0 %v1269
  %v1867 = vpop.f32.mrb[0].mxu0
  %v1868 = vadd.f32 0.0, %v1867
  %v1869 = vpop.f32.mrb[0].mxu0
  %v1870 = vadd.f32 0.0, %v1869
  %1871 = vmatprep.mubr.f32.mxu0 %v1272
  %1872 = vmatmul.mubr.f32.gmra.mrb[0].mxu0 %v1271
  %v1873 = vpop.f32.mrb[0].mxu0
  %v1874 = vadd.f32 0.0, %v1873
  %v1875 = vpop.f32.mrb[0].mxu0
  %v1876 = vadd.f32 0.0, %v1875
  %1877 = vmatprep.mubr.f32.mxu0 %v1274
  %1878 = vmatmul.mubr.f32.gmra.mrb[0].mxu0 %v1273
  %v1879 = vpop.f32.mrb[0].mxu0
  %v1880 = vadd.f32 0.0, %v1879
  %v1881 = vpop.f32.mrb[0].mxu0
  %v1882 = vadd.f32 0.0, %v1881
  %1883 = vmatprep.mubr.f32.mxu0 %v1276
  %1884 = vmatmul.mubr.f32.gmra.mrb[0].mxu0 %v1275
  %v1885 = vpop.f32.mrb[0].mxu0
  %v1886 = vadd.f32 0.0, %v1885
  %v1887 = vpop.f32.mrb[0].mxu0
  %v1888 = vadd.f32 0.0, %v1887
  %1889 = vmatprep.mubr.f32.mxu0 %v1278
  %1890 = vmatmul.mubr.f32.gmra.mrb[0].mxu0 %v1277
  %v1891 = vpop.f32.mrb[0].mxu0
  %v1892 = vadd.f32 0.0, %v1891
  %v1893 = vpop.f32.mrb[0].mxu0
  %v1894 = vadd.f32 0.0, %v1893
  %1895 = vmatprep.mubr.f32.mxu0 %v1280
  %1896 = vmatmul.mubr.f32.gmra.mrb[0].mxu0 %v1279
  %v1897 = vpop.f32.mrb[0].mxu0
  %v1898 = vadd.f32 0.0, %v1897
  %v1899 = vpop.f32.mrb[0].mxu0
  %v1900 = vadd.f32 0.0, %v1899
  %1901 = vmatprep.mubr.f32.mxu0 %v1282
  %1902 = vmatmul.mubr.f32.gmra.mrb[0].mxu0 %v1281
  %v1903 = vpop.f32.mrb[0].mxu0
  %v1904 = vadd.f32 0.0, %v1903
  %v1905 = vpop.f32.mrb[0].mxu0
  %v1906 = vadd.f32 0.0, %v1905
  %1907 = vmatprep.mubr.f32.mxu0 %v1284
  %1908 = vmatmul.mubr.f32.gmra.mrb[0].mxu0 %v1283
  %v1909 = vpop.f32.mrb[0].mxu0
  %v1910 = vadd.f32 0.0, %v1909
  %v1911 = vpop.f32.mrb[0].mxu0
  %v1912 = vadd.f32 0.0, %v1911
  %1913 = vmatprep.mubr.f32.mxu0 %v1286
  %1914 = vmatmul.mubr.f32.gmra.mrb[0].mxu0 %v1285
  %v1915 = vpop.f32.mrb[0].mxu0
  %v1916 = vadd.f32 0.0, %v1915
  %v1917 = vpop.f32.mrb[0].mxu0
  %v1918 = vadd.f32 0.0, %v1917
  %1919 = vdwg.mxu0
  %v1920 = vadd.f32 %v1418, %v1424
  %v1921 = vadd.f32 %v1920, %v1430
  %v1922 = vadd.f32 %v1921, %v1436
  %v1923 = vadd.f32 %v1922, %v1442
  %v1924 = vadd.f32 %v1923, %v1448
  %v1925 = vadd.f32 %v1924, %v1454
  %v1926 = vadd.f32 %v1925, %v1460
  %v1927 = vadd.f32 %v1926, %v1466
  %v1928 = vadd.f32 %v1927, %v1472
  %v1929 = vadd.f32 %v1928, %v1478
  %v1930 = vadd.f32 %v1929, %v1484
  %v1931 = vadd.f32 %v1930, %v1490
  %v1932 = vadd.f32 %v1931, %v1496
  %v1933 = vadd.f32 %v1932, %v1502
  %v1934 = vadd.f32 %v1933, %v1508
  %v1935 = vadd.f32 %v1934, %v1514
  %v1936 = vadd.f32 %v1935, %v1520
  %v1937 = vadd.f32 %v1936, %v1526
  %v1938 = vadd.f32 %v1937, %v1532
  %v1939 = vadd.f32 %v1938, %v1538
  %v1940 = vadd.f32 %v1939, %v1544
  %v1941 = vadd.f32 %v1940, %v1550
  %v1942 = vadd.f32 %v1941, %v1556
  %v1943 = vadd.f32 %v1942, %v1562
  %v1944 = vadd.f32 %v1943, %v1568
  %v1945 = vadd.f32 %v1944, %v1574
  %v1946 = vadd.f32 %v1945, %v1580
  %v1947 = vadd.f32 %v1946, %v1586
  %v1948 = vadd.f32 %v1947, %v1592
  %v1949 = vadd.f32 %v1948, %v1598
  %v1950 = vadd.f32 %v1949, %v1604
  %v1951 = vadd.f32 %v1950, %v1610
  %v1952 = vadd.f32 %v1951, %v1616
  %v1953 = vadd.f32 %v1952, %v1622
  %v1954 = vadd.f32 %v1953, %v1628
  %v1955 = vadd.f32 %v1954, %v1634
  %v1956 = vadd.f32 %v1955, %v1640
  %v1957 = vadd.f32 %v1956, %v1646
  %v1958 = vadd.f32 %v1957, %v1652
  %v1959 = vadd.f32 %v1958, %v1658
  %v1960 = vadd.f32 %v1959, %v1664
  %v1961 = vadd.f32 %v1960, %v1670
  %v1962 = vadd.f32 %v1961, %v1676
  %v1963 = vadd.f32 %v1962, %v1682
  %v1964 = vadd.f32 %v1963, %v1688
  %v1965 = vadd.f32 %v1964, %v1694
  %v1966 = vadd.f32 %v1965, %v1700
  %v1967 = vadd.f32 %v1966, %v1706
  %v1968 = vadd.f32 %v1967, %v1712
  %v1969 = vadd.f32 %v1968, %v1718
  %v1970 = vadd.f32 %v1969, %v1724
  %v1971 = vadd.f32 %v1970, %v1730
  %v1972 = vadd.f32 %v1971, %v1736
  %v1973 = vadd.f32 %v1972, %v1742
  %v1974 = vadd.f32 %v1973, %v1748
  %v1975 = vadd.f32 %v1974, %v1754
  %v1976 = vadd.f32 %v1975, %v1760
  %v1977 = vadd.f32 %v1976, %v1766
  %v1978 = vadd.f32 %v1977, %v1772
  %v1979 = vadd.f32 %v1978, %v1778
  %v1980 = vadd.f32 %v1979, %v1784
  %v1981 = vadd.f32 %v1980, %v1790
  %v1982 = vadd.f32 %v1981, %v1796
  %v1983 = vadd.f32 %v1982, %v1802
  %v1984 = vadd.f32 %v1983, %v1808
  %v1985 = vadd.f32 %v1984, %v1814
  %v1986 = vadd.f32 %v1985, %v1820
  %v1987 = vadd.f32 %v1986, %v1826
  %v1988 = vadd.f32 %v1987, %v1832
  %v1989 = vadd.f32 %v1988, %v1838
  %v1990 = vadd.f32 %v1989, %v1844
  %v1991 = vadd.f32 %v1990, %v1850
  %v1992 = vadd.f32 %v1991, %v1856
  %v1993 = vadd.f32 %v1992, %v1862
  %v1994 = vadd.f32 %v1993, %v1868
  %v1995 = vadd.f32 %v1994, %v1874
  %v1996 = vadd.f32 %v1995, %v1880
  %v1997 = vadd.f32 %v1996, %v1886
  %v1998 = vadd.f32 %v1997, %v1892
  %v1999 = vadd.f32 %v1998, %v1898
  %v2000 = vadd.f32 %v1999, %v1904
  %v2001 = vadd.f32 %v2000, %v1910
  %v2002 = vadd.f32 %v2001, %v1916
  %v2003 = vrot.slane %v2002, 4
  %v2004 = vadd.f32 %v2002, %v2003
  %v2005 = vrot.slane %v2004, 2
  %v2006 = vadd.f32 %v2004, %v2005
  %v2007 = vrot.slane %v2006, 1
  %v2008 = vadd.f32 %v2006, %v2007
  %v2009 = vadd.f32 %v1420, %v1426
  %v2010 = vadd.f32 %v2009, %v1432
  %v2011 = vadd.f32 %v2010, %v1438
  %v2012 = vadd.f32 %v2011, %v1444
  %v2013 = vadd.f32 %v2012, %v1450
  %v2014 = vadd.f32 %v2013, %v1456
  %v2015 = vadd.f32 %v2014, %v1462
  %v2016 = vadd.f32 %v2015, %v1468
  %v2017 = vadd.f32 %v2016, %v1474
  %v2018 = vadd.f32 %v2017, %v1480
  %v2019 = vadd.f32 %v2018, %v1486
  %v2020 = vadd.f32 %v2019, %v1492
  %v2021 = vadd.f32 %v2020, %v1498
  %v2022 = vadd.f32 %v2021, %v1504
  %v2023 = vadd.f32 %v2022, %v1510
  %v2024 = vadd.f32 %v2023, %v1516
  %v2025 = vadd.f32 %v2024, %v1522
  %v2026 = vadd.f32 %v2025, %v1528
  %v2027 = vadd.f32 %v2026, %v1534
  %v2028 = vadd.f32 %v2027, %v1540
  %v2029 = vadd.f32 %v2028, %v1546
  %v2030 = vadd.f32 %v2029, %v1552
  %v2031 = vadd.f32 %v2030, %v1558
  %v2032 = vadd.f32 %v2031, %v1564
  %v2033 = vadd.f32 %v2032, %v1570
  %v2034 = vadd.f32 %v2033, %v1576
  %v2035 = vadd.f32 %v2034, %v1582
  %v2036 = vadd.f32 %v2035, %v1588
  %v2037 = vadd.f32 %v2036, %v1594
  %v2038 = vadd.f32 %v2037, %v1600
  %v2039 = vadd.f32 %v2038, %v1606
  %v2040 = vadd.f32 %v2039, %v1612
  %v2041 = vadd.f32 %v2040, %v1618
  %v2042 = vadd.f32 %v2041, %v1624
  %v2043 = vadd.f32 %v2042, %v1630
  %v2044 = vadd.f32 %v2043, %v1636
  %v2045 = vadd.f32 %v2044, %v1642
  %v2046 = vadd.f32 %v2045, %v1648
  %v2047 = vadd.f32 %v2046, %v1654
  %v2048 = vadd.f32 %v2047, %v1660
  %v2049 = vadd.f32 %v2048, %v1666
  %v2050 = vadd.f32 %v2049, %v1672
  %v2051 = vadd.f32 %v2050, %v1678
  %v2052 = vadd.f32 %v2051, %v1684
  %v2053 = vadd.f32 %v2052, %v1690
  %v2054 = vadd.f32 %v2053, %v1696
  %v2055 = vadd.f32 %v2054, %v1702
  %v2056 = vadd.f32 %v2055, %v1708
  %v2057 = vadd.f32 %v2056, %v1714
  %v2058 = vadd.f32 %v2057, %v1720
  %v2059 = vadd.f32 %v2058, %v1726
  %v2060 = vadd.f32 %v2059, %v1732
  %v2061 = vadd.f32 %v2060, %v1738
  %v2062 = vadd.f32 %v2061, %v1744
  %v2063 = vadd.f32 %v2062, %v1750
  %v2064 = vadd.f32 %v2063, %v1756
  %v2065 = vadd.f32 %v2064, %v1762
  %v2066 = vadd.f32 %v2065, %v1768
  %v2067 = vadd.f32 %v2066, %v1774
  %v2068 = vadd.f32 %v2067, %v1780
  %v2069 = vadd.f32 %v2068, %v1786
  %v2070 = vadd.f32 %v2069, %v1792
  %v2071 = vadd.f32 %v2070, %v1798
  %v2072 = vadd.f32 %v2071, %v1804
  %v2073 = vadd.f32 %v2072, %v1810
  %v2074 = vadd.f32 %v2073, %v1816
  %v2075 = vadd.f32 %v2074, %v1822
  %v2076 = vadd.f32 %v2075, %v1828
  %v2077 = vadd.f32 %v2076, %v1834
  %v2078 = vadd.f32 %v2077, %v1840
  %v2079 = vadd.f32 %v2078, %v1846
  %v2080 = vadd.f32 %v2079, %v1852
  %v2081 = vadd.f32 %v2080, %v1858
  %v2082 = vadd.f32 %v2081, %v1864
  %v2083 = vadd.f32 %v2082, %v1870
  %v2084 = vadd.f32 %v2083, %v1876
  %v2085 = vadd.f32 %v2084, %v1882
  %v2086 = vadd.f32 %v2085, %v1888
  %v2087 = vadd.f32 %v2086, %v1894
  %v2088 = vadd.f32 %v2087, %v1900
  %v2089 = vadd.f32 %v2088, %v1906
  %v2090 = vadd.f32 %v2089, %v1912
  %v2091 = vadd.f32 %v2090, %v1918
  %v2092 = vrot.slane %v2091, 4
  %v2093 = vadd.f32 %v2091, %v2092
  %v2094 = vrot.slane %v2093, 2
  %v2095 = vadd.f32 %v2093, %v2094
  %v2096 = vrot.slane %v2095, 1
  %v2097 = vadd.f32 %v2095, %v2096
  %v2098 = vmul.f32 %v2008, 0.0014880953
  %v2099 = vmul.f32 %v2097, 0.0014880953
  %v2100 = vmul.f32 %v1418, %v1418
  %v2101 = vmul.f32 %v1420, %v1420
  %v2102 = vmul.f32 %v1424, %v1424
  %v2103 = vmul.f32 %v1426, %v1426
  %v2104 = vmul.f32 %v1430, %v1430
  %v2105 = vmul.f32 %v1432, %v1432
  %v2106 = vmul.f32 %v1436, %v1436
  %v2107 = vmul.f32 %v1438, %v1438
  %v2108 = vmul.f32 %v1442, %v1442
  %v2109 = vmul.f32 %v1444, %v1444
  %v2110 = vmul.f32 %v1448, %v1448
  %v2111 = vmul.f32 %v1450, %v1450
  %v2112 = vmul.f32 %v1454, %v1454
  %v2113 = vmul.f32 %v1456, %v1456
  %v2114 = vmul.f32 %v1460, %v1460
  %v2115 = vmul.f32 %v1462, %v1462
  %v2116 = vmul.f32 %v1466, %v1466
  %v2117 = vmul.f32 %v1468, %v1468
  %v2118 = vmul.f32 %v1472, %v1472
  %v2119 = vmul.f32 %v1474, %v1474
  %v2120 = vmul.f32 %v1478, %v1478
  %v2121 = vmul.f32 %v1480, %v1480
  %v2122 = vmul.f32 %v1484, %v1484
  %v2123 = vmul.f32 %v1486, %v1486
  %v2124 = vmul.f32 %v1490, %v1490
  %v2125 = vmul.f32 %v1492, %v1492
  %v2126 = vmul.f32 %v1496, %v1496
  %v2127 = vmul.f32 %v1498, %v1498
  %v2128 = vmul.f32 %v1502, %v1502
  %v2129 = vmul.f32 %v1504, %v1504
  %v2130 = vmul.f32 %v1508, %v1508
  %v2131 = vmul.f32 %v1510, %v1510
  %v2132 = vmul.f32 %v1514, %v1514
  %v2133 = vmul.f32 %v1516, %v1516
  %v2134 = vmul.f32 %v1520, %v1520
  %v2135 = vmul.f32 %v1522, %v1522
  %v2136 = vmul.f32 %v1526, %v1526
  %v2137 = vmul.f32 %v1528, %v1528
  %v2138 = vmul.f32 %v1532, %v1532
  %v2139 = vmul.f32 %v1534, %v1534
  %v2140 = vmul.f32 %v1538, %v1538
  %v2141 = vmul.f32 %v1540, %v1540
  %v2142 = vmul.f32 %v1544, %v1544
  %v2143 = vmul.f32 %v1546, %v1546
  %v2144 = vmul.f32 %v1550, %v1550
  %v2145 = vmul.f32 %v1552, %v1552
  %v2146 = vmul.f32 %v1556, %v1556
  %v2147 = vmul.f32 %v1558, %v1558
  %v2148 = vmul.f32 %v1562, %v1562
  %v2149 = vmul.f32 %v1564, %v1564
  %v2150 = vmul.f32 %v1568, %v1568
  %v2151 = vmul.f32 %v1570, %v1570
  %v2152 = vmul.f32 %v1574, %v1574
  %v2153 = vmul.f32 %v1576, %v1576
  %v2154 = vmul.f32 %v1580, %v1580
  %v2155 = vmul.f32 %v1582, %v1582
  %v2156 = vmul.f32 %v1586, %v1586
  %v2157 = vmul.f32 %v1588, %v1588
  %v2158 = vmul.f32 %v1592, %v1592
  %v2159 = vmul.f32 %v1594, %v1594
  %v2160 = vmul.f32 %v1598, %v1598
  %v2161 = vmul.f32 %v1600, %v1600
  %v2162 = vmul.f32 %v1604, %v1604
  %v2163 = vmul.f32 %v1606, %v1606
  %v2164 = vmul.f32 %v1610, %v1610
  %v2165 = vmul.f32 %v1612, %v1612
  %v2166 = vmul.f32 %v1616, %v1616
  %v2167 = vmul.f32 %v1618, %v1618
  %v2168 = vmul.f32 %v1622, %v1622
  %v2169 = vmul.f32 %v1624, %v1624
  %v2170 = vmul.f32 %v1628, %v1628
  %v2171 = vmul.f32 %v1630, %v1630
  %v2172 = vmul.f32 %v1634, %v1634
  %v2173 = vmul.f32 %v1636, %v1636
  %v2174 = vmul.f32 %v1640, %v1640
  %v2175 = vmul.f32 %v1642, %v1642
  %v2176 = vmul.f32 %v1646, %v1646
  %v2177 = vmul.f32 %v1648, %v1648
  %v2178 = vmul.f32 %v1652, %v1652
  %v2179 = vmul.f32 %v1654, %v1654
  %v2180 = vmul.f32 %v1658, %v1658
  %v2181 = vmul.f32 %v1660, %v1660
  %v2182 = vmul.f32 %v1664, %v1664
  %v2183 = vmul.f32 %v1666, %v1666
  %v2184 = vmul.f32 %v1670, %v1670
  %v2185 = vmul.f32 %v1672, %v1672
  %v2186 = vmul.f32 %v1676, %v1676
  %v2187 = vmul.f32 %v1678, %v1678
  %v2188 = vmul.f32 %v1682, %v1682
  %v2189 = vmul.f32 %v1684, %v1684
  %v2190 = vmul.f32 %v1688, %v1688
  %v2191 = vmul.f32 %v1690, %v1690
  %v2192 = vmul.f32 %v1694, %v1694
  %v2193 = vmul.f32 %v1696, %v1696
  %v2194 = vmul.f32 %v1700, %v1700
  %v2195 = vmul.f32 %v1702, %v1702
  %v2196 = vmul.f32 %v1706, %v1706
  %v2197 = vmul.f32 %v1708, %v1708
  %v2198 = vmul.f32 %v1712, %v1712
  %v2199 = vmul.f32 %v1714, %v1714
  %v2200 = vmul.f32 %v1718, %v1718
  %v2201 = vmul.f32 %v1720, %v1720
  %v2202 = vmul.f32 %v1724, %v1724
  %v2203 = vmul.f32 %v1726, %v1726
  %v2204 = vmul.f32 %v1730, %v1730
  %v2205 = vmul.f32 %v1732, %v1732
  %v2206 = vmul.f32 %v1736, %v1736
  %v2207 = vmul.f32 %v1738, %v1738
  %v2208 = vmul.f32 %v1742, %v1742
  %v2209 = vmul.f32 %v1744, %v1744
  %v2210 = vmul.f32 %v1748, %v1748
  %v2211 = vmul.f32 %v1750, %v1750
  %v2212 = vmul.f32 %v1754, %v1754
  %v2213 = vmul.f32 %v1756, %v1756
  %v2214 = vmul.f32 %v1760, %v1760
  %v2215 = vmul.f32 %v1762, %v1762
  %v2216 = vmul.f32 %v1766, %v1766
  %v2217 = vmul.f32 %v1768, %v1768
  %v2218 = vmul.f32 %v1772, %v1772
  %v2219 = vmul.f32 %v1774, %v1774
  %v2220 = vmul.f32 %v1778, %v1778
  %v2221 = vmul.f32 %v1780, %v1780
  %v2222 = vmul.f32 %v1784, %v1784
  %v2223 = vmul.f32 %v1786, %v1786
  %v2224 = vmul.f32 %v1790, %v1790
  %v2225 = vmul.f32 %v1792, %v1792
  %v2226 = vmul.f32 %v1796, %v1796
  %v2227 = vmul.f32 %v1798, %v1798
  %v2228 = vmul.f32 %v1802, %v1802
  %v2229 = vmul.f32 %v1804, %v1804
  %v2230 = vmul.f32 %v1808, %v1808
  %v2231 = vmul.f32 %v1810, %v1810
  %v2232 = vmul.f32 %v1814, %v1814
  %v2233 = vmul.f32 %v1816, %v1816
  %v2234 = vmul.f32 %v1820, %v1820
  %v2235 = vmul.f32 %v1822, %v1822
  %v2236 = vmul.f32 %v1826, %v1826
  %v2237 = vmul.f32 %v1828, %v1828
  %v2238 = vmul.f32 %v1832, %v1832
  %v2239 = vmul.f32 %v1834, %v1834
  %v2240 = vmul.f32 %v1838, %v1838
  %v2241 = vmul.f32 %v1840, %v1840
  %v2242 = vmul.f32 %v1844, %v1844
  %v2243 = vmul.f32 %v1846, %v1846
  %v2244 = vmul.f32 %v1850, %v1850
  %v2245 = vmul.f32 %v1852, %v1852
  %v2246 = vmul.f32 %v1856, %v1856
  %v2247 = vmul.f32 %v1858, %v1858
  %v2248 = vmul.f32 %v1862, %v1862
  %v2249 = vmul.f32 %v1864, %v1864
  %v2250 = vmul.f32 %v1868, %v1868
  %v2251 = vmul.f32 %v1870, %v1870
  %v2252 = vmul.f32 %v1874, %v1874
  %v2253 = vmul.f32 %v1876, %v1876
  %v2254 = vmul.f32 %v1880, %v1880
  %v2255 = vmul.f32 %v1882, %v1882
  %v2256 = vmul.f32 %v1886, %v1886
  %v2257 = vmul.f32 %v1888, %v1888
  %v2258 = vmul.f32 %v1892, %v1892
  %v2259 = vmul.f32 %v1894, %v1894
  %v2260 = vmul.f32 %v1898, %v1898
  %v2261 = vmul.f32 %v1900, %v1900
  %v2262 = vmul.f32 %v1904, %v1904
  %v2263 = vmul.f32 %v1906, %v1906
  %v2264 = vmul.f32 %v1910, %v1910
  %v2265 = vmul.f32 %v1912, %v1912
  %v2266 = vmul.f32 %v1916, %v1916
  %v2267 = vmul.f32 %v1918, %v1918
  %v2268 = vadd.f32 %v2100, %v2102
  %v2269 = vadd.f32 %v2268, %v2104
  %v2270 = vadd.f32 %v2269, %v2106
  %v2271 = vadd.f32 %v2270, %v2108
  %v2272 = vadd.f32 %v2271, %v2110
  %v2273 = vadd.f32 %v2272, %v2112
  %v2274 = vadd.f32 %v2273, %v2114
  %v2275 = vadd.f32 %v2274, %v2116
  %v2276 = vadd.f32 %v2275, %v2118
  %v2277 = vadd.f32 %v2276, %v2120
  %v2278 = vadd.f32 %v2277, %v2122
  %v2279 = vadd.f32 %v2278, %v2124
  %v2280 = vadd.f32 %v2279, %v2126
  %v2281 = vadd.f32 %v2280, %v2128
  %v2282 = vadd.f32 %v2281, %v2130
  %v2283 = vadd.f32 %v2282, %v2132
  %v2284 = vadd.f32 %v2283, %v2134
  %v2285 = vadd.f32 %v2284, %v2136
  %v2286 = vadd.f32 %v2285, %v2138
  %v2287 = vadd.f32 %v2286, %v2140
  %v2288 = vadd.f32 %v2287, %v2142
  %v2289 = vadd.f32 %v2288, %v2144
  %v2290 = vadd.f32 %v2289, %v2146
  %v2291 = vadd.f32 %v2290, %v2148
  %v2292 = vadd.f32 %v2291, %v2150
  %v2293 = vadd.f32 %v2292, %v2152
  %v2294 = vadd.f32 %v2293, %v2154
  %v2295 = vadd.f32 %v2294, %v2156
  %v2296 = vadd.f32 %v2295, %v2158
  %v2297 = vadd.f32 %v2296, %v2160
  %v2298 = vadd.f32 %v2297, %v2162
  %v2299 = vadd.f32 %v2298, %v2164
  %v2300 = vadd.f32 %v2299, %v2166
  %v2301 = vadd.f32 %v2300, %v2168
  %v2302 = vadd.f32 %v2301, %v2170
  %v2303 = vadd.f32 %v2302, %v2172
  %v2304 = vadd.f32 %v2303, %v2174
  %v2305 = vadd.f32 %v2304, %v2176
  %v2306 = vadd.f32 %v2305, %v2178
  %v2307 = vadd.f32 %v2306, %v2180
  %v2308 = vadd.f32 %v2307, %v2182
  %v2309 = vadd.f32 %v2308, %v2184
  %v2310 = vadd.f32 %v2309, %v2186
  %v2311 = vadd.f32 %v2310, %v2188
  %v2312 = vadd.f32 %v2311, %v2190
  %v2313 = vadd.f32 %v2312, %v2192
  %v2314 = vadd.f32 %v2313, %v2194
  %v2315 = vadd.f32 %v2314, %v2196
  %v2316 = vadd.f32 %v2315, %v2198
  %v2317 = vadd.f32 %v2316, %v2200
  %v2318 = vadd.f32 %v2317, %v2202
  %v2319 = vadd.f32 %v2318, %v2204
  %v2320 = vadd.f32 %v2319, %v2206
  %v2321 = vadd.f32 %v2320, %v2208
  %v2322 = vadd.f32 %v2321, %v2210
  %v2323 = vadd.f32 %v2322, %v2212
  %v2324 = vadd.f32 %v2323, %v2214
  %v2325 = vadd.f32 %v2324, %v2216
  %v2326 = vadd.f32 %v2325, %v2218
  %v2327 = vadd.f32 %v2326, %v2220
  %v2328 = vadd.f32 %v2327, %v2222
  %v2329 = vadd.f32 %v2328, %v2224
  %v2330 = vadd.f32 %v2329, %v2226
  %v2331 = vadd.f32 %v2330, %v2228
  %v2332 = vadd.f32 %v2331, %v2230
  %v2333 = vadd.f32 %v2332, %v2232
  %v2334 = vadd.f32 %v2333, %v2234
  %v2335 = vadd.f32 %v2334, %v2236
  %v2336 = vadd.f32 %v2335, %v2238
  %v2337 = vadd.f32 %v2336, %v2240
  %v2338 = vadd.f32 %v2337, %v2242
  %v2339 = vadd.f32 %v2338, %v2244
  %v2340 = vadd.f32 %v2339, %v2246
  %v2341 = vadd.f32 %v2340, %v2248
  %v2342 = vadd.f32 %v2341, %v2250
  %v2343 = vadd.f32 %v2342, %v2252
  %v2344 = vadd.f32 %v2343, %v2254
  %v2345 = vadd.f32 %v2344, %v2256
  %v2346 = vadd.f32 %v2345, %v2258
  %v2347 = vadd.f32 %v2346, %v2260
  %v2348 = vadd.f32 %v2347, %v2262
  %v2349 = vadd.f32 %v2348, %v2264
  %v2350 = vadd.f32 %v2349, %v2266
  %v2351 = vrot.slane %v2350, 4
  %v2352 = vadd.f32 %v2350, %v2351
  %v2353 = vrot.slane %v2352, 2
  %v2354 = vadd.f32 %v2352, %v2353
  %v2355 = vrot.slane %v2354, 1
  %v2356 = vadd.f32 %v2354, %v2355
  %v2357 = vadd.f32 %v2101, %v2103
  %v2358 = vadd.f32 %v2357, %v2105
  %v2359 = vadd.f32 %v2358, %v2107
  %v2360 = vadd.f32 %v2359, %v2109
  %v2361 = vadd.f32 %v2360, %v2111
  %v2362 = vadd.f32 %v2361, %v2113
  %v2363 = vadd.f32 %v2362, %v2115
  %v2364 = vadd.f32 %v2363, %v2117
  %v2365 = vadd.f32 %v2364, %v2119
  %v2366 = vadd.f32 %v2365, %v2121
  %v2367 = vadd.f32 %v2366, %v2123
  %v2368 = vadd.f32 %v2367, %v2125
  %v2369 = vadd.f32 %v2368, %v2127
  %v2370 = vadd.f32 %v2369, %v2129
  %v2371 = vadd.f32 %v2370, %v2131
  %v2372 = vadd.f32 %v2371, %v2133
  %v2373 = vadd.f32 %v2372, %v2135
  %v2374 = vadd.f32 %v2373, %v2137
  %v2375 = vadd.f32 %v2374, %v2139
  %v2376 = vadd.f32 %v2375, %v2141
  %v2377 = vadd.f32 %v2376, %v2143
  %v2378 = vadd.f32 %v2377, %v2145
  %v2379 = vadd.f32 %v2378, %v2147
  %v2380 = vadd.f32 %v2379, %v2149
  %v2381 = vadd.f32 %v2380, %v2151
  %v2382 = vadd.f32 %v2381, %v2153
  %v2383 = vadd.f32 %v2382, %v2155
  %v2384 = vadd.f32 %v2383, %v2157
  %v2385 = vadd.f32 %v2384, %v2159
  %v2386 = vadd.f32 %v2385, %v2161
  %v2387 = vadd.f32 %v2386, %v2163
  %v2388 = vadd.f32 %v2387, %v2165
  %v2389 = vadd.f32 %v2388, %v2167
  %v2390 = vadd.f32 %v2389, %v2169
  %v2391 = vadd.f32 %v2390, %v2171
  %v2392 = vadd.f32 %v2391, %v2173
  %v2393 = vadd.f32 %v2392, %v2175
  %v2394 = vadd.f32 %v2393, %v2177
  %v2395 = vadd.f32 %v2394, %v2179
  %v2396 = vadd.f32 %v2395, %v2181
  %v2397 = vadd.f32 %v2396, %v2183
  %v2398 = vadd.f32 %v2397, %v2185
  %v2399 = vadd.f32 %v2398, %v2187
  %v2400 = vadd.f32 %v2399, %v2189
  %v2401 = vadd.f32 %v2400, %v2191
  %v2402 = vadd.f32 %v2401, %v2193
  %v2403 = vadd.f32 %v2402, %v2195
  %v2404 = vadd.f32 %v2403, %v2197
  %v2405 = vadd.f32 %v2404, %v2199
  %v2406 = vadd.f32 %v2405, %v2201
  %v2407 = vadd.f32 %v2406, %v2203
  %v2408 = vadd.f32 %v2407, %v2205
  %v2409 = vadd.f32 %v2408, %v2207
  %v2410 = vadd.f32 %v2409, %v2209
  %v2411 = vadd.f32 %v2410, %v2211
  %v2412 = vadd.f32 %v2411, %v2213
  %v2413 = vadd.f32 %v2412, %v2215
  %v2414 = vadd.f32 %v2413, %v2217
  %v2415 = vadd.f32 %v2414, %v2219
  %v2416 = vadd.f32 %v2415, %v2221
  %v2417 = vadd.f32 %v2416, %v2223
  %v2418 = vadd.f32 %v2417, %v2225
  %v2419 = vadd.f32 %v2418, %v2227
  %v2420 = vadd.f32 %v2419, %v2229
  %v2421 = vadd.f32 %v2420, %v2231
  %v2422 = vadd.f32 %v2421, %v2233
  %v2423 = vadd.f32 %v2422, %v2235
  %v2424 = vadd.f32 %v2423, %v2237
  %v2425 = vadd.f32 %v2424, %v2239
  %v2426 = vadd.f32 %v2425, %v2241
  %v2427 = vadd.f32 %v2426, %v2243
  %v2428 = vadd.f32 %v2427, %v2245
  %v2429 = vadd.f32 %v2428, %v2247
  %v2430 = vadd.f32 %v2429, %v2249
  %v2431 = vadd.f32 %v2430, %v2251
  %v2432 = vadd.f32 %v2431, %v2253
  %v2433 = vadd.f32 %v2432, %v2255
  %v2434 = vadd.f32 %v2433, %v2257
  %v2435 = vadd.f32 %v2434, %v2259
  %v2436 = vadd.f32 %v2435, %v2261
  %v2437 = vadd.f32 %v2436, %v2263
  %v2438 = vadd.f32 %v2437, %v2265
  %v2439 = vadd.f32 %v2438, %v2267
  %v2440 = vrot.slane %v2439, 4
  %v2441 = vadd.f32 %v2439, %v2440
  %v2442 = vrot.slane %v2441, 2
  %v2443 = vadd.f32 %v2441, %v2442
  %v2444 = vrot.slane %v2443, 1
  %v2445 = vadd.f32 %v2443, %v2444
  %v2446 = vmul.f32 %v2356, 0.0014880953
  %v2447 = vmul.f32 %v2445, 0.0014880953
  %v2448 = vmul.f32 %v2098, %v2098
  %v2449 = vmul.f32 %v2099, %v2099
  %v2450 = vsub.f32 %v2446, %v2448
  %v2451 = vsub.f32 %v2447, %v2449
  %v2452 = vadd.f32 %v2450, 1e-05
  %v2453 = vadd.f32 %v2451, 1e-05
  %v2454 = vrsqrt.pop %v2452
  %v2455 = vrsqrt.pop %v2453
  %v2458 = vcombine.low %v2454, %v2455
  %v2459 = vrot.slane %v2458, 7
  %v2461 = vmul.f32 %v21, %v2459
  %v2463 = vlaneseq
  %v2464 = vshrl.u32 %v2463, 7
  %v2465 = vsub.s32 1, %v2464
  %v2466 = vrot.slane %v2461, %v2465
  %v2467 = vlaneseq
  %v2468 = vshrl.u32 %v2467, 7
  %v2469 = vsub.s32 5, %v2468
  %v2470 = vrot.slane %v2461, %v2469
  %v2473 = vmul.f32 %v2098, %v2466
  %v2474 = vmul.f32 %v2099, %v2470
  %v2477 = vcombine.low %v2473, %v2474
  %v2478 = vrot.slane %v2477, 6
  %v2480 = vsub.f32 %v21, %v2478
  %v2481 = vlaneseq
  %v2482 = vshrl.u32 %v2481, 7
  %v2483 = vsub.s32 1, %v2482
  %v2484 = vrot.slane %v2466, %v2483
  %v2485 = vlaneseq
  %v2486 = vshrl.u32 %v2485, 7
  %v2487 = vsub.s32 1, %v2486
  %v2488 = vrot.slane %v2470, %v2487
  %v2489 = vmul.f32 %v1418, %v2484
  %v2490 = vmul.f32 %v1420, %v2488
  %v2491 = vmul.f32 %v1424, %v2484
  %v2492 = vmul.f32 %v1426, %v2488
  %v2493 = vmul.f32 %v1430, %v2484
  %v2494 = vmul.f32 %v1432, %v2488
  %v2495 = vmul.f32 %v1436, %v2484
  %v2496 = vmul.f32 %v1438, %v2488
  %v2497 = vmul.f32 %v1442, %v2484
  %v2498 = vmul.f32 %v1444, %v2488
  %v2499 = vmul.f32 %v1448, %v2484
  %v2500 = vmul.f32 %v1450, %v2488
  %v2501 = vmul.f32 %v1454, %v2484
  %v2502 = vmul.f32 %v1456, %v2488
  %v2503 = vmul.f32 %v1460, %v2484
  %v2504 = vmul.f32 %v1462, %v2488
  %v2505 = vmul.f32 %v1466, %v2484
  %v2506 = vmul.f32 %v1468, %v2488
  %v2507 = vmul.f32 %v1472, %v2484
  %v2508 = vmul.f32 %v1474, %v2488
  %v2509 = vmul.f32 %v1478, %v2484
  %v2510 = vmul.f32 %v1480, %v2488
  %v2511 = vmul.f32 %v1484, %v2484
  %v2512 = vmul.f32 %v1486, %v2488
  %v2513 = vmul.f32 %v1490, %v2484
  %v2514 = vmul.f32 %v1492, %v2488
  %v2515 = vmul.f32 %v1496, %v2484
  %v2516 = vmul.f32 %v1498, %v2488
  %v2517 = vmul.f32 %v1502, %v2484
  %v2518 = vmul.f32 %v1504, %v2488
  %v2519 = vmul.f32 %v1508, %v2484
  %v2520 = vmul.f32 %v1510, %v2488
  %v2521 = vmul.f32 %v1514, %v2484
  %v2522 = vmul.f32 %v1516, %v2488
  %v2523 = vmul.f32 %v1520, %v2484
  %v2524 = vmul.f32 %v1522, %v2488
  %v2525 = vmul.f32 %v1526, %v2484
  %v2526 = vmul.f32 %v1528, %v2488
  %v2527 = vmul.f32 %v1532, %v2484
  %v2528 = vmul.f32 %v1534, %v2488
  %v2529 = vmul.f32 %v1538, %v2484
  %v2530 = vmul.f32 %v1540, %v2488
  %v2531 = vmul.f32 %v1544, %v2484
  %v2532 = vmul.f32 %v1546, %v2488
  %v2533 = vmul.f32 %v1550, %v2484
  %v2534 = vmul.f32 %v1552, %v2488
  %v2535 = vmul.f32 %v1556, %v2484
  %v2536 = vmul.f32 %v1558, %v2488
  %v2537 = vmul.f32 %v1562, %v2484
  %v2538 = vmul.f32 %v1564, %v2488
  %v2539 = vmul.f32 %v1568, %v2484
  %v2540 = vmul.f32 %v1570, %v2488
  %v2541 = vmul.f32 %v1574, %v2484
  %v2542 = vmul.f32 %v1576, %v2488
  %v2543 = vmul.f32 %v1580, %v2484
  %v2544 = vmul.f32 %v1582, %v2488
  %v2545 = vmul.f32 %v1586, %v2484
  %v2546 = vmul.f32 %v1588, %v2488
  %v2547 = vmul.f32 %v1592, %v2484
  %v2548 = vmul.f32 %v1594, %v2488
  %v2549 = vmul.f32 %v1598, %v2484
  %v2550 = vmul.f32 %v1600, %v2488
  %v2551 = vmul.f32 %v1604, %v2484
  %v2552 = vmul.f32 %v1606, %v2488
  %v2553 = vmul.f32 %v1610, %v2484
  %v2554 = vmul.f32 %v1612, %v2488
  %v2555 = vmul.f32 %v1616, %v2484
  %v2556 = vmul.f32 %v1618, %v2488
  %v2557 = vmul.f32 %v1622, %v2484
  %v2558 = vmul.f32 %v1624, %v2488
  %v2559 = vmul.f32 %v1628, %v2484
  %v2560 = vmul.f32 %v1630, %v2488
  %v2561 = vmul.f32 %v1634, %v2484
  %v2562 = vmul.f32 %v1636, %v2488
  %v2563 = vmul.f32 %v1640, %v2484
  %v2564 = vmul.f32 %v1642, %v2488
  %v2565 = vmul.f32 %v1646, %v2484
  %v2566 = vmul.f32 %v1648, %v2488
  %v2567 = vmul.f32 %v1652, %v2484
  %v2568 = vmul.f32 %v1654, %v2488
  %v2569 = vmul.f32 %v1658, %v2484
  %v2570 = vmul.f32 %v1660, %v2488
  %v2571 = vmul.f32 %v1664, %v2484
  %v2572 = vmul.f32 %v1666, %v2488
  %v2573 = vmul.f32 %v1670, %v2484
  %v2574 = vmul.f32 %v1672, %v2488
  %v2575 = vmul.f32 %v1676, %v2484
  %v2576 = vmul.f32 %v1678, %v2488
  %v2577 = vmul.f32 %v1682, %v2484
  %v2578 = vmul.f32 %v1684, %v2488
  %v2579 = vmul.f32 %v1688, %v2484
  %v2580 = vmul.f32 %v1690, %v2488
  %v2581 = vmul.f32 %v1694, %v2484
  %v2582 = vmul.f32 %v1696, %v2488
  %v2583 = vmul.f32 %v1700, %v2484
  %v2584 = vmul.f32 %v1702, %v2488
  %v2585 = vmul.f32 %v1706, %v2484
  %v2586 = vmul.f32 %v1708, %v2488
  %v2587 = vmul.f32 %v1712, %v2484
  %v2588 = vmul.f32 %v1714, %v2488
  %v2589 = vmul.f32 %v1718, %v2484
  %v2590 = vmul.f32 %v1720, %v2488
  %v2591 = vmul.f32 %v1724, %v2484
  %v2592 = vmul.f32 %v1726, %v2488
  %v2593 = vmul.f32 %v1730, %v2484
  %v2594 = vmul.f32 %v1732, %v2488
  %v2595 = vmul.f32 %v1736, %v2484
  %v2596 = vmul.f32 %v1738, %v2488
  %v2597 = vmul.f32 %v1742, %v2484
  %v2598 = vmul.f32 %v1744, %v2488
  %v2599 = vmul.f32 %v1748, %v2484
  %v2600 = vmul.f32 %v1750, %v2488
  %v2601 = vmul.f32 %v1754, %v2484
  %v2602 = vmul.f32 %v1756, %v2488
  %v2603 = vmul.f32 %v1760, %v2484
  %v2604 = vmul.f32 %v1762, %v2488
  %v2605 = vmul.f32 %v1766, %v2484
  %v2606 = vmul.f32 %v1768, %v2488
  %v2607 = vmul.f32 %v1772, %v2484
  %v2608 = vmul.f32 %v1774, %v2488
  %v2609 = vmul.f32 %v1778, %v2484
  %v2610 = vmul.f32 %v1780, %v2488
  %v2611 = vmul.f32 %v1784, %v2484
  %v2612 = vmul.f32 %v1786, %v2488
  %v2613 = vmul.f32 %v1790, %v2484
  %v2614 = vmul.f32 %v1792, %v2488
  %v2615 = vmul.f32 %v1796, %v2484
  %v2616 = vmul.f32 %v1798, %v2488
  %v2617 = vmul.f32 %v1802, %v2484
  %v2618 = vmul.f32 %v1804, %v2488
  %v2619 = vmul.f32 %v1808, %v2484
  %v2620 = vmul.f32 %v1810, %v2488
  %v2621 = vmul.f32 %v1814, %v2484
  %v2622 = vmul.f32 %v1816, %v2488
  %v2623 = vmul.f32 %v1820, %v2484
  %v2624 = vmul.f32 %v1822, %v2488
  %v2625 = vmul.f32 %v1826, %v2484
  %v2626 = vmul.f32 %v1828, %v2488
  %v2627 = vmul.f32 %v1832, %v2484
  %v2628 = vmul.f32 %v1834, %v2488
  %v2629 = vmul.f32 %v1838, %v2484
  %v2630 = vmul.f32 %v1840, %v2488
  %v2631 = vmul.f32 %v1844, %v2484
  %v2632 = vmul.f32 %v1846, %v2488
  %v2633 = vmul.f32 %v1850, %v2484
  %v2634 = vmul.f32 %v1852, %v2488
  %v2635 = vmul.f32 %v1856, %v2484
  %v2636 = vmul.f32 %v1858, %v2488
  %v2637 = vmul.f32 %v1862, %v2484
  %v2638 = vmul.f32 %v1864, %v2488
  %v2639 = vmul.f32 %v1868, %v2484
  %v2640 = vmul.f32 %v1870, %v2488
  %v2641 = vmul.f32 %v1874, %v2484
  %v2642 = vmul.f32 %v1876, %v2488
  %v2643 = vmul.f32 %v1880, %v2484
  %v2644 = vmul.f32 %v1882, %v2488
  %v2645 = vmul.f32 %v1886, %v2484
  %v2646 = vmul.f32 %v1888, %v2488
  %v2647 = vmul.f32 %v1892, %v2484
  %v2648 = vmul.f32 %v1894, %v2488
  %v2649 = vmul.f32 %v1898, %v2484
  %v2650 = vmul.f32 %v1900, %v2488
  %v2651 = vmul.f32 %v1904, %v2484
  %v2652 = vmul.f32 %v1906, %v2488
  %v2653 = vmul.f32 %v1910, %v2484
  %v2654 = vmul.f32 %v1912, %v2488
  %v2655 = vmul.f32 %v1916, %v2484
  %v2656 = vmul.f32 %v1918, %v2488
  %v2658 = vlaneseq
  %v2659 = vshrl.u32 %v2658, 7
  %v2660 = vsub.s32 2, %v2659
  %v2661 = vrot.slane %v2480, %v2660
  %v2662 = vlaneseq
  %v2663 = vshrl.u32 %v2662, 7
  %v2664 = vsub.s32 6, %v2663
  %v2665 = vrot.slane %v2480, %v2664
  %v2668 = vlaneseq
  %v2669 = vshrl.u32 %v2668, 7
  %v2670 = vsub.s32 2, %v2669
  %v2671 = vrot.slane %v2661, %v2670
  %v2672 = vlaneseq
  %v2673 = vshrl.u32 %v2672, 7
  %v2674 = vsub.s32 2, %v2673
  %v2675 = vrot.slane %v2665, %v2674
  %v2676 = vadd.f32 %v2489, %v2671
  %v2677 = vadd.f32 %v2490, %v2675
  %v2678 = vadd.f32 %v2491, %v2671
  %v2679 = vadd.f32 %v2492, %v2675
  %v2680 = vadd.f32 %v2493, %v2671
  %v2681 = vadd.f32 %v2494, %v2675
  %v2682 = vadd.f32 %v2495, %v2671
  %v2683 = vadd.f32 %v2496, %v2675
  %v2684 = vadd.f32 %v2497, %v2671
  %v2685 = vadd.f32 %v2498, %v2675
  %v2686 = vadd.f32 %v2499, %v2671
  %v2687 = vadd.f32 %v2500, %v2675
  %v2688 = vadd.f32 %v2501, %v2671
  %v2689 = vadd.f32 %v2502, %v2675
  %v2690 = vadd.f32 %v2503, %v2671
  %v2691 = vadd.f32 %v2504, %v2675
  %v2692 = vadd.f32 %v2505, %v2671
  %v2693 = vadd.f32 %v2506, %v2675
  %v2694 = vadd.f32 %v2507, %v2671
  %v2695 = vadd.f32 %v2508, %v2675
  %v2696 = vadd.f32 %v2509, %v2671
  %v2697 = vadd.f32 %v2510, %v2675
  %v2698 = vadd.f32 %v2511, %v2671
  %v2699 = vadd.f32 %v2512, %v2675
  %v2700 = vadd.f32 %v2513, %v2671
  %v2701 = vadd.f32 %v2514, %v2675
  %v2702 = vadd.f32 %v2515, %v2671
  %v2703 = vadd.f32 %v2516, %v2675
  %v2704 = vadd.f32 %v2517, %v2671
  %v2705 = vadd.f32 %v2518, %v2675
  %v2706 = vadd.f32 %v2519, %v2671
  %v2707 = vadd.f32 %v2520, %v2675
  %v2708 = vadd.f32 %v2521, %v2671
  %v2709 = vadd.f32 %v2522, %v2675
  %v2710 = vadd.f32 %v2523, %v2671
  %v2711 = vadd.f32 %v2524, %v2675
  %v2712 = vadd.f32 %v2525, %v2671
  %v2713 = vadd.f32 %v2526, %v2675
  %v2714 = vadd.f32 %v2527, %v2671
  %v2715 = vadd.f32 %v2528, %v2675
  %v2716 = vadd.f32 %v2529, %v2671
  %v2717 = vadd.f32 %v2530, %v2675
  %v2718 = vadd.f32 %v2531, %v2671
  %v2719 = vadd.f32 %v2532, %v2675
  %v2720 = vadd.f32 %v2533, %v2671
  %v2721 = vadd.f32 %v2534, %v2675
  %v2722 = vadd.f32 %v2535, %v2671
  %v2723 = vadd.f32 %v2536, %v2675
  %v2724 = vadd.f32 %v2537, %v2671
  %v2725 = vadd.f32 %v2538, %v2675
  %v2726 = vadd.f32 %v2539, %v2671
  %v2727 = vadd.f32 %v2540, %v2675
  %v2728 = vadd.f32 %v2541, %v2671
  %v2729 = vadd.f32 %v2542, %v2675
  %v2730 = vadd.f32 %v2543, %v2671
  %v2731 = vadd.f32 %v2544, %v2675
  %v2732 = vadd.f32 %v2545, %v2671
  %v2733 = vadd.f32 %v2546, %v2675
  %v2734 = vadd.f32 %v2547, %v2671
  %v2735 = vadd.f32 %v2548, %v2675
  %v2736 = vadd.f32 %v2549, %v2671
  %v2737 = vadd.f32 %v2550, %v2675
  %v2738 = vadd.f32 %v2551, %v2671
  %v2739 = vadd.f32 %v2552, %v2675
  %v2740 = vadd.f32 %v2553, %v2671
  %v2741 = vadd.f32 %v2554, %v2675
  %v2742 = vadd.f32 %v2555, %v2671
  %v2743 = vadd.f32 %v2556, %v2675
  %v2744 = vadd.f32 %v2557, %v2671
  %v2745 = vadd.f32 %v2558, %v2675
  %v2746 = vadd.f32 %v2559, %v2671
  %v2747 = vadd.f32 %v2560, %v2675
  %v2748 = vadd.f32 %v2561, %v2671
  %v2749 = vadd.f32 %v2562, %v2675
  %v2750 = vadd.f32 %v2563, %v2671
  %v2751 = vadd.f32 %v2564, %v2675
  %v2752 = vadd.f32 %v2565, %v2671
  %v2753 = vadd.f32 %v2566, %v2675
  %v2754 = vadd.f32 %v2567, %v2671
  %v2755 = vadd.f32 %v2568, %v2675
  %v2756 = vadd.f32 %v2569, %v2671
  %v2757 = vadd.f32 %v2570, %v2675
  %v2758 = vadd.f32 %v2571, %v2671
  %v2759 = vadd.f32 %v2572, %v2675
  %v2760 = vadd.f32 %v2573, %v2671
  %v2761 = vadd.f32 %v2574, %v2675
  %v2762 = vadd.f32 %v2575, %v2671
  %v2763 = vadd.f32 %v2576, %v2675
  %v2764 = vadd.f32 %v2577, %v2671
  %v2765 = vadd.f32 %v2578, %v2675
  %v2766 = vadd.f32 %v2579, %v2671
  %v2767 = vadd.f32 %v2580, %v2675
  %v2768 = vadd.f32 %v2581, %v2671
  %v2769 = vadd.f32 %v2582, %v2675
  %v2770 = vadd.f32 %v2583, %v2671
  %v2771 = vadd.f32 %v2584, %v2675
  %v2772 = vadd.f32 %v2585, %v2671
  %v2773 = vadd.f32 %v2586, %v2675
  %v2774 = vadd.f32 %v2587, %v2671
  %v2775 = vadd.f32 %v2588, %v2675
  %v2776 = vadd.f32 %v2589, %v2671
  %v2777 = vadd.f32 %v2590, %v2675
  %v2778 = vadd.f32 %v2591, %v2671
  %v2779 = vadd.f32 %v2592, %v2675
  %v2780 = vadd.f32 %v2593, %v2671
  %v2781 = vadd.f32 %v2594, %v2675
  %v2782 = vadd.f32 %v2595, %v2671
  %v2783 = vadd.f32 %v2596, %v2675
  %v2784 = vadd.f32 %v2597, %v2671
  %v2785 = vadd.f32 %v2598, %v2675
  %v2786 = vadd.f32 %v2599, %v2671
  %v2787 = vadd.f32 %v2600, %v2675
  %v2788 = vadd.f32 %v2601, %v2671
  %v2789 = vadd.f32 %v2602, %v2675
  %v2790 = vadd.f32 %v2603, %v2671
  %v2791 = vadd.f32 %v2604, %v2675
  %v2792 = vadd.f32 %v2605, %v2671
  %v2793 = vadd.f32 %v2606, %v2675
  %v2794 = vadd.f32 %v2607, %v2671
  %v2795 = vadd.f32 %v2608, %v2675
  %v2796 = vadd.f32 %v2609, %v2671
  %v2797 = vadd.f32 %v2610, %v2675
  %v2798 = vadd.f32 %v2611, %v2671
  %v2799 = vadd.f32 %v2612, %v2675
  %v2800 = vadd.f32 %v2613, %v2671
  %v2801 = vadd.f32 %v2614, %v2675
  %v2802 = vadd.f32 %v2615, %v2671
  %v2803 = vadd.f32 %v2616, %v2675
  %v2804 = vadd.f32 %v2617, %v2671
  %v2805 = vadd.f32 %v2618, %v2675
  %v2806 = vadd.f32 %v2619, %v2671
  %v2807 = vadd.f32 %v2620, %v2675
  %v2808 = vadd.f32 %v2621, %v2671
  %v2809 = vadd.f32 %v2622, %v2675
  %v2810 = vadd.f32 %v2623, %v2671
  %v2811 = vadd.f32 %v2624, %v2675
  %v2812 = vadd.f32 %v2625, %v2671
  %v2813 = vadd.f32 %v2626, %v2675
  %v2814 = vadd.f32 %v2627, %v2671
  %v2815 = vadd.f32 %v2628, %v2675
  %v2816 = vadd.f32 %v2629, %v2671
  %v2817 = vadd.f32 %v2630, %v2675
  %v2818 = vadd.f32 %v2631, %v2671
  %v2819 = vadd.f32 %v2632, %v2675
  %v2820 = vadd.f32 %v2633, %v2671
  %v2821 = vadd.f32 %v2634, %v2675
  %v2822 = vadd.f32 %v2635, %v2671
  %v2823 = vadd.f32 %v2636, %v2675
  %v2824 = vadd.f32 %v2637, %v2671
  %v2825 = vadd.f32 %v2638, %v2675
  %v2826 = vadd.f32 %v2639, %v2671
  %v2827 = vadd.f32 %v2640, %v2675
  %v2828 = vadd.f32 %v2641, %v2671
  %v2829 = vadd.f32 %v2642, %v2675
  %v2830 = vadd.f32 %v2643, %v2671
  %v2831 = vadd.f32 %v2644, %v2675
  %v2832 = vadd.f32 %v2645, %v2671
  %v2833 = vadd.f32 %v2646, %v2675
  %v2834 = vadd.f32 %v2647, %v2671
  %v2835 = vadd.f32 %v2648, %v2675
  %v2836 = vadd.f32 %v2649, %v2671
  %v2837 = vadd.f32 %v2650, %v2675
  %v2838 = vadd.f32 %v2651, %v2671
  %v2839 = vadd.f32 %v2652, %v2675
  %v2840 = vadd.f32 %v2653, %v2671
  %v2841 = vadd.f32 %v2654, %v2675
  %v2842 = vadd.f32 %v2655, %v2671
  %v2843 = vadd.f32 %v2656, %v2675
  %v2844 = vmul.f32 %v2676, 0.01
  %v2845 = vmul.f32 %v2677, 0.01
  %v2846 = vmul.f32 %v2678, 0.01
  %v2847 = vmul.f32 %v2679, 0.01
  %v2848 = vmul.f32 %v2680, 0.01
  %v2849 = vmul.f32 %v2681, 0.01
  %v2850 = vmul.f32 %v2682, 0.01
  %v2851 = vmul.f32 %v2683, 0.01
  %v2852 = vmul.f32 %v2684, 0.01
  %v2853 = vmul.f32 %v2685, 0.01
  %v2854 = vmul.f32 %v2686, 0.01
  %v2855 = vmul.f32 %v2687, 0.01
  %v2856 = vmul.f32 %v2688, 0.01
  %v2857 = vmul.f32 %v2689, 0.01
  %v2858 = vmul.f32 %v2690, 0.01
  %v2859 = vmul.f32 %v2691, 0.01
  %v2860 = vmul.f32 %v2692, 0.01
  %v2861 = vmul.f32 %v2693, 0.01
  %v2862 = vmul.f32 %v2694, 0.01
  %v2863 = vmul.f32 %v2695, 0.01
  %v2864 = vmul.f32 %v2696, 0.01
  %v2865 = vmul.f32 %v2697, 0.01
  %v2866 = vmul.f32 %v2698, 0.01
  %v2867 = vmul.f32 %v2699, 0.01
  %v2868 = vmul.f32 %v2700, 0.01
  %v2869 = vmul.f32 %v2701, 0.01
  %v2870 = vmul.f32 %v2702, 0.01
  %v2871 = vmul.f32 %v2703, 0.01
  %v2872 = vmul.f32 %v2704, 0.01
  %v2873 = vmul.f32 %v2705, 0.01
  %v2874 = vmul.f32 %v2706, 0.01
  %v2875 = vmul.f32 %v2707, 0.01
  %v2876 = vmul.f32 %v2708, 0.01
  %v2877 = vmul.f32 %v2709, 0.01
  %v2878 = vmul.f32 %v2710, 0.01
  %v2879 = vmul.f32 %v2711, 0.01
  %v2880 = vmul.f32 %v2712, 0.01
  %v2881 = vmul.f32 %v2713, 0.01
  %v2882 = vmul.f32 %v2714, 0.01
  %v2883 = vmul.f32 %v2715, 0.01
  %v2884 = vmul.f32 %v2716, 0.01
  %v2885 = vmul.f32 %v2717, 0.01
  %v2886 = vmul.f32 %v2718, 0.01
  %v2887 = vmul.f32 %v2719, 0.01
  %v2888 = vmul.f32 %v2720, 0.01
  %v2889 = vmul.f32 %v2721, 0.01
  %v2890 = vmul.f32 %v2722, 0.01
  %v2891 = vmul.f32 %v2723, 0.01
  %v2892 = vmul.f32 %v2724, 0.01
  %v2893 = vmul.f32 %v2725, 0.01
  %v2894 = vmul.f32 %v2726, 0.01
  %v2895 = vmul.f32 %v2727, 0.01
  %v2896 = vmul.f32 %v2728, 0.01
  %v2897 = vmul.f32 %v2729, 0.01
  %v2898 = vmul.f32 %v2730, 0.01
  %v2899 = vmul.f32 %v2731, 0.01
  %v2900 = vmul.f32 %v2732, 0.01
  %v2901 = vmul.f32 %v2733, 0.01
  %v2902 = vmul.f32 %v2734, 0.01
  %v2903 = vmul.f32 %v2735, 0.01
  %v2904 = vmul.f32 %v2736, 0.01
  %v2905 = vmul.f32 %v2737, 0.01
  %v2906 = vmul.f32 %v2738, 0.01
  %v2907 = vmul.f32 %v2739, 0.01
  %v2908 = vmul.f32 %v2740, 0.01
  %v2909 = vmul.f32 %v2741, 0.01
  %v2910 = vmul.f32 %v2742, 0.01
  %v2911 = vmul.f32 %v2743, 0.01
  %v2912 = vmul.f32 %v2744, 0.01
  %v2913 = vmul.f32 %v2745, 0.01
  %v2914 = vmul.f32 %v2746, 0.01
  %v2915 = vmul.f32 %v2747, 0.01
  %v2916 = vmul.f32 %v2748, 0.01
  %v2917 = vmul.f32 %v2749, 0.01
  %v2918 = vmul.f32 %v2750, 0.01
  %v2919 = vmul.f32 %v2751, 0.01
  %v2920 = vmul.f32 %v2752, 0.01
  %v2921 = vmul.f32 %v2753, 0.01
  %v2922 = vmul.f32 %v2754, 0.01
  %v2923 = vmul.f32 %v2755, 0.01
  %v2924 = vmul.f32 %v2756, 0.01
  %v2925 = vmul.f32 %v2757, 0.01
  %v2926 = vmul.f32 %v2758, 0.01
  %v2927 = vmul.f32 %v2759, 0.01
  %v2928 = vmul.f32 %v2760, 0.01
  %v2929 = vmul.f32 %v2761, 0.01
  %v2930 = vmul.f32 %v2762, 0.01
  %v2931 = vmul.f32 %v2763, 0.01
  %v2932 = vmul.f32 %v2764, 0.01
  %v2933 = vmul.f32 %v2765, 0.01
  %v2934 = vmul.f32 %v2766, 0.01
  %v2935 = vmul.f32 %v2767, 0.01
  %v2936 = vmul.f32 %v2768, 0.01
  %v2937 = vmul.f32 %v2769, 0.01
  %v2938 = vmul.f32 %v2770, 0.01
  %v2939 = vmul.f32 %v2771, 0.01
  %v2940 = vmul.f32 %v2772, 0.01
  %v2941 = vmul.f32 %v2773, 0.01
  %v2942 = vmul.f32 %v2774, 0.01
  %v2943 = vmul.f32 %v2775, 0.01
  %v2944 = vmul.f32 %v2776, 0.01
  %v2945 = vmul.f32 %v2777, 0.01
  %v2946 = vmul.f32 %v2778, 0.01
  %v2947 = vmul.f32 %v2779, 0.01
  %v2948 = vmul.f32 %v2780, 0.01
  %v2949 = vmul.f32 %v2781, 0.01
  %v2950 = vmul.f32 %v2782, 0.01
  %v2951 = vmul.f32 %v2783, 0.01
  %v2952 = vmul.f32 %v2784, 0.01
  %v2953 = vmul.f32 %v2785, 0.01
  %v2954 = vmul.f32 %v2786, 0.01
  %v2955 = vmul.f32 %v2787, 0.01
  %v2956 = vmul.f32 %v2788, 0.01
  %v2957 = vmul.f32 %v2789, 0.01
  %v2958 = vmul.f32 %v2790, 0.01
  %v2959 = vmul.f32 %v2791, 0.01
  %v2960 = vmul.f32 %v2792, 0.01
  %v2961 = vmul.f32 %v2793, 0.01
  %v2962 = vmul.f32 %v2794, 0.01
  %v2963 = vmul.f32 %v2795, 0.01
  %v2964 = vmul.f32 %v2796, 0.01
  %v2965 = vmul.f32 %v2797, 0.01
  %v2966 = vmul.f32 %v2798, 0.01
  %v2967 = vmul.f32 %v2799, 0.01
  %v2968 = vmul.f32 %v2800, 0.01
  %v2969 = vmul.f32 %v2801, 0.01
  %v2970 = vmul.f32 %v2802, 0.01
  %v2971 = vmul.f32 %v2803, 0.01
  %v2972 = vmul.f32 %v2804, 0.01
  %v2973 = vmul.f32 %v2805, 0.01
  %v2974 = vmul.f32 %v2806, 0.01
  %v2975 = vmul.f32 %v2807, 0.01
  %v2976 = vmul.f32 %v2808, 0.01
  %v2977 = vmul.f32 %v2809, 0.01
  %v2978 = vmul.f32 %v2810, 0.01
  %v2979 = vmul.f32 %v2811, 0.01
  %v2980 = vmul.f32 %v2812, 0.01
  %v2981 = vmul.f32 %v2813, 0.01
  %v2982 = vmul.f32 %v2814, 0.01
  %v2983 = vmul.f32 %v2815, 0.01
  %v2984 = vmul.f32 %v2816, 0.01
  %v2985 = vmul.f32 %v2817, 0.01
  %v2986 = vmul.f32 %v2818, 0.01
  %v2987 = vmul.f32 %v2819, 0.01
  %v2988 = vmul.f32 %v2820, 0.01
  %v2989 = vmul.f32 %v2821, 0.01
  %v2990 = vmul.f32 %v2822, 0.01
  %v2991 = vmul.f32 %v2823, 0.01
  %v2992 = vmul.f32 %v2824, 0.01
  %v2993 = vmul.f32 %v2825, 0.01
  %v2994 = vmul.f32 %v2826, 0.01
  %v2995 = vmul.f32 %v2827, 0.01
  %v2996 = vmul.f32 %v2828, 0.01
  %v2997 = vmul.f32 %v2829, 0.01
  %v2998 = vmul.f32 %v2830, 0.01
  %v2999 = vmul.f32 %v2831, 0.01
  %v3000 = vmul.f32 %v2832, 0.01
  %v3001 = vmul.f32 %v2833, 0.01
  %v3002 = vmul.f32 %v2834, 0.01
  %v3003 = vmul.f32 %v2835, 0.01
  %v3004 = vmul.f32 %v2836, 0.01
  %v3005 = vmul.f32 %v2837, 0.01
  %v3006 = vmul.f32 %v2838, 0.01
  %v3007 = vmul.f32 %v2839, 0.01
  %v3008 = vmul.f32 %v2840, 0.01
  %v3009 = vmul.f32 %v2841, 0.01
  %v3010 = vmul.f32 %v2842, 0.01
  %v3011 = vmul.f32 %v2843, 0.01
  %v3012 = vmax.f32 %v2676, %v2844
  %v3013 = vmax.f32 %v2677, %v2845
  %v3014 = vmax.f32 %v2678, %v2846
  %v3015 = vmax.f32 %v2679, %v2847
  %v3016 = vmax.f32 %v2680, %v2848
  %v3017 = vmax.f32 %v2681, %v2849
  %v3018 = vmax.f32 %v2682, %v2850
  %v3019 = vmax.f32 %v2683, %v2851
  %v3020 = vmax.f32 %v2684, %v2852
  %v3021 = vmax.f32 %v2685, %v2853
  %v3022 = vmax.f32 %v2686, %v2854
  %v3023 = vmax.f32 %v2687, %v2855
  %v3024 = vmax.f32 %v2688, %v2856
  %v3025 = vmax.f32 %v2689, %v2857
  %v3026 = vmax.f32 %v2690, %v2858
  %v3027 = vmax.f32 %v2691, %v2859
  %v3028 = vmax.f32 %v2692, %v2860
  %v3029 = vmax.f32 %v2693, %v2861
  %v3030 = vmax.f32 %v2694, %v2862
  %v3031 = vmax.f32 %v2695, %v2863
  %v3032 = vmax.f32 %v2696, %v2864
  %v3033 = vmax.f32 %v2697, %v2865
  %v3034 = vmax.f32 %v2698, %v2866
  %v3035 = vmax.f32 %v2699, %v2867
  %v3036 = vmax.f32 %v2700, %v2868
  %v3037 = vmax.f32 %v2701, %v2869
  %v3038 = vmax.f32 %v2702, %v2870
  %v3039 = vmax.f32 %v2703, %v2871
  %v3040 = vmax.f32 %v2704, %v2872
  %v3041 = vmax.f32 %v2705, %v2873
  %v3042 = vmax.f32 %v2706, %v2874
  %v3043 = vmax.f32 %v2707, %v2875
  %v3044 = vmax.f32 %v2708, %v2876
  %v3045 = vmax.f32 %v2709, %v2877
  %v3046 = vmax.f32 %v2710, %v2878
  %v3047 = vmax.f32 %v2711, %v2879
  %v3048 = vmax.f32 %v2712, %v2880
  %v3049 = vmax.f32 %v2713, %v2881
  %v3050 = vmax.f32 %v2714, %v2882
  %v3051 = vmax.f32 %v2715, %v2883
  %v3052 = vmax.f32 %v2716, %v2884
  %v3053 = vmax.f32 %v2717, %v2885
  %v3054 = vmax.f32 %v2718, %v2886
  %v3055 = vmax.f32 %v2719, %v2887
  %v3056 = vmax.f32 %v2720, %v2888
  %v3057 = vmax.f32 %v2721, %v2889
  %v3058 = vmax.f32 %v2722, %v2890
  %v3059 = vmax.f32 %v2723, %v2891
  %v3060 = vmax.f32 %v2724, %v2892
  %v3061 = vmax.f32 %v2725, %v2893
  %v3062 = vmax.f32 %v2726, %v2894
  %v3063 = vmax.f32 %v2727, %v2895
  %v3064 = vmax.f32 %v2728, %v2896
  %v3065 = vmax.f32 %v2729, %v2897
  %v3066 = vmax.f32 %v2730, %v2898
  %v3067 = vmax.f32 %v2731, %v2899
  %v3068 = vmax.f32 %v2732, %v2900
  %v3069 = vmax.f32 %v2733, %v2901
  %v3070 = vmax.f32 %v2734, %v2902
  %v3071 = vmax.f32 %v2735, %v2903
  %v3072 = vmax.f32 %v2736, %v2904
  %v3073 = vmax.f32 %v2737, %v2905
  %v3074 = vmax.f32 %v2738, %v2906
  %v3075 = vmax.f32 %v2739, %v2907
  %v3076 = vmax.f32 %v2740, %v2908
  %v3077 = vmax.f32 %v2741, %v2909
  %v3078 = vmax.f32 %v2742, %v2910
  %v3079 = vmax.f32 %v2743, %v2911
  %v3080 = vmax.f32 %v2744, %v2912
  %v3081 = vmax.f32 %v2745, %v2913
  %v3082 = vmax.f32 %v2746, %v2914
  %v3083 = vmax.f32 %v2747, %v2915
  %v3084 = vmax.f32 %v2748, %v2916
  %v3085 = vmax.f32 %v2749, %v2917
  %v3086 = vmax.f32 %v2750, %v2918
  %v3087 = vmax.f32 %v2751, %v2919
  %v3088 = vmax.f32 %v2752, %v2920
  %v3089 = vmax.f32 %v2753, %v2921
  %v3090 = vmax.f32 %v2754, %v2922
  %v3091 = vmax.f32 %v2755, %v2923
  %v3092 = vmax.f32 %v2756, %v2924
  %v3093 = vmax.f32 %v2757, %v2925
  %v3094 = vmax.f32 %v2758, %v2926
  %v3095 = vmax.f32 %v2759, %v2927
  %v3096 = vmax.f32 %v2760, %v2928
  %v3097 = vmax.f32 %v2761, %v2929
  %v3098 = vmax.f32 %v2762, %v2930
  %v3099 = vmax.f32 %v2763, %v2931
  %v3100 = vmax.f32 %v2764, %v2932
  %v3101 = vmax.f32 %v2765, %v2933
  %v3102 = vmax.f32 %v2766, %v2934
  %v3103 = vmax.f32 %v2767, %v2935
  %v3104 = vmax.f32 %v2768, %v2936
  %v3105 = vmax.f32 %v2769, %v2937
  %v3106 = vmax.f32 %v2770, %v2938
  %v3107 = vmax.f32 %v2771, %v2939
  %v3108 = vmax.f32 %v2772, %v2940
  %v3109 = vmax.f32 %v2773, %v2941
  %v3110 = vmax.f32 %v2774, %v2942
  %v3111 = vmax.f32 %v2775, %v2943
  %v3112 = vmax.f32 %v2776, %v2944
  %v3113 = vmax.f32 %v2777, %v2945
  %v3114 = vmax.f32 %v2778, %v2946
  %v3115 = vmax.f32 %v2779, %v2947
  %v3116 = vmax.f32 %v2780, %v2948
  %v3117 = vmax.f32 %v2781, %v2949
  %v3118 = vmax.f32 %v2782, %v2950
  %v3119 = vmax.f32 %v2783, %v2951
  %v3120 = vmax.f32 %v2784, %v2952
  %v3121 = vmax.f32 %v2785, %v2953
  %v3122 = vmax.f32 %v2786, %v2954
  %v3123 = vmax.f32 %v2787, %v2955
  %v3124 = vmax.f32 %v2788, %v2956
  %v3125 = vmax.f32 %v2789, %v2957
  %v3126 = vmax.f32 %v2790, %v2958
  %v3127 = vmax.f32 %v2791, %v2959
  %v3128 = vmax.f32 %v2792, %v2960
  %v3129 = vmax.f32 %v2793, %v2961
  %v3130 = vmax.f32 %v2794, %v2962
  %v3131 = vmax.f32 %v2795, %v2963
  %v3132 = vmax.f32 %v2796, %v2964
  %v3133 = vmax.f32 %v2797, %v2965
  %v3134 = vmax.f32 %v2798, %v2966
  %v3135 = vmax.f32 %v2799, %v2967
  %v3136 = vmax.f32 %v2800, %v2968
  %v3137 = vmax.f32 %v2801, %v2969
  %v3138 = vmax.f32 %v2802, %v2970
  %v3139 = vmax.f32 %v2803, %v2971
  %v3140 = vmax.f32 %v2804, %v2972
  %v3141 = vmax.f32 %v2805, %v2973
  %v3142 = vmax.f32 %v2806, %v2974
  %v3143 = vmax.f32 %v2807, %v2975
  %v3144 = vmax.f32 %v2808, %v2976
  %v3145 = vmax.f32 %v2809, %v2977
  %v3146 = vmax.f32 %v2810, %v2978
  %v3147 = vmax.f32 %v2811, %v2979
  %v3148 = vmax.f32 %v2812, %v2980
  %v3149 = vmax.f32 %v2813, %v2981
  %v3150 = vmax.f32 %v2814, %v2982
  %v3151 = vmax.f32 %v2815, %v2983
  %v3152 = vmax.f32 %v2816, %v2984
  %v3153 = vmax.f32 %v2817, %v2985
  %v3154 = vmax.f32 %v2818, %v2986
  %v3155 = vmax.f32 %v2819, %v2987
  %v3156 = vmax.f32 %v2820, %v2988
  %v3157 = vmax.f32 %v2821, %v2989
  %v3158 = vmax.f32 %v2822, %v2990
  %v3159 = vmax.f32 %v2823, %v2991
  %v3160 = vmax.f32 %v2824, %v2992
  %v3161 = vmax.f32 %v2825, %v2993
  %v3162 = vmax.f32 %v2826, %v2994
  %v3163 = vmax.f32 %v2827, %v2995
  %v3164 = vmax.f32 %v2828, %v2996
  %v3165 = vmax.f32 %v2829, %v2997
  %v3166 = vmax.f32 %v2830, %v2998
  %v3167 = vmax.f32 %v2831, %v2999
  %v3168 = vmax.f32 %v2832, %v3000
  %v3169 = vmax.f32 %v2833, %v3001
  %v3170 = vmax.f32 %v2834, %v3002
  %v3171 = vmax.f32 %v2835, %v3003
  %v3172 = vmax.f32 %v2836, %v3004
  %v3173 = vmax.f32 %v2837, %v3005
  %v3174 = vmax.f32 %v2838, %v3006
  %v3175 = vmax.f32 %v2839, %v3007
  %v3176 = vmax.f32 %v2840, %v3008
  %v3177 = vmax.f32 %v2841, %v3009
  %v3178 = vmax.f32 %v2842, %v3010
  %v3179 = vmax.f32 %v2843, %v3011
  %v3180 = vlaneseq
  %v3181 = vshrl.u32 %v3180, 7
  %v3182 = vsub.s32 3, %v3181
  %v3183 = vrot.slane %v21, %v3182
  %v3184 = vlaneseq
  %v3185 = vshrl.u32 %v3184, 7
  %v3186 = vsub.s32 7, %v3185
  %v3187 = vrot.slane %v21, %v3186
  %v3190 = vlaneseq
  %v3191 = vshrl.u32 %v3190, 7
  %v3192 = vsub.s32 3, %v3191
  %v3193 = vrot.slane %v3183, %v3192
  %v3194 = vlaneseq
  %v3195 = vshrl.u32 %v3194, 7
  %v3196 = vsub.s32 3, %v3195
  %v3197 = vrot.slane %v3187, %v3196
  %v3198 = vmul.f32 %v3012, %v3193
  %v3199 = vmul.f32 %v3013, %v3197
  %v3200 = vmul.f32 %v3014, %v3193
  %v3201 = vmul.f32 %v3015, %v3197
  %v3202 = vmul.f32 %v3016, %v3193
  %v3203 = vmul.f32 %v3017, %v3197
  %v3204 = vmul.f32 %v3018, %v3193
  %v3205 = vmul.f32 %v3019, %v3197
  %v3206 = vmul.f32 %v3020, %v3193
  %v3207 = vmul.f32 %v3021, %v3197
  %v3208 = vmul.f32 %v3022, %v3193
  %v3209 = vmul.f32 %v3023, %v3197
  %v3210 = vmul.f32 %v3024, %v3193
  %v3211 = vmul.f32 %v3025, %v3197
  %v3212 = vmul.f32 %v3026, %v3193
  %v3213 = vmul.f32 %v3027, %v3197
  %v3214 = vmul.f32 %v3028, %v3193
  %v3215 = vmul.f32 %v3029, %v3197
  %v3216 = vmul.f32 %v3030, %v3193
  %v3217 = vmul.f32 %v3031, %v3197
  %v3218 = vmul.f32 %v3032, %v3193
  %v3219 = vmul.f32 %v3033, %v3197
  %v3220 = vmul.f32 %v3034, %v3193
  %v3221 = vmul.f32 %v3035, %v3197
  %v3222 = vmul.f32 %v3036, %v3193
  %v3223 = vmul.f32 %v3037, %v3197
  %v3224 = vmul.f32 %v3038, %v3193
  %v3225 = vmul.f32 %v3039, %v3197
  %v3226 = vmul.f32 %v3040, %v3193
  %v3227 = vmul.f32 %v3041, %v3197
  %v3228 = vmul.f32 %v3042, %v3193
  %v3229 = vmul.f32 %v3043, %v3197
  %v3230 = vmul.f32 %v3044, %v3193
  %v3231 = vmul.f32 %v3045, %v3197
  %v3232 = vmul.f32 %v3046, %v3193
  %v3233 = vmul.f32 %v3047, %v3197
  %v3234 = vmul.f32 %v3048, %v3193
  %v3235 = vmul.f32 %v3049, %v3197
  %v3236 = vmul.f32 %v3050, %v3193
  %v3237 = vmul.f32 %v3051, %v3197
  %v3238 = vmul.f32 %v3052, %v3193
  %v3239 = vmul.f32 %v3053, %v3197
  %v3240 = vmul.f32 %v3054, %v3193
  %v3241 = vmul.f32 %v3055, %v3197
  %v3242 = vmul.f32 %v3056, %v3193
  %v3243 = vmul.f32 %v3057, %v3197
  %v3244 = vmul.f32 %v3058, %v3193
  %v3245 = vmul.f32 %v3059, %v3197
  %v3246 = vmul.f32 %v3060, %v3193
  %v3247 = vmul.f32 %v3061, %v3197
  %v3248 = vmul.f32 %v3062, %v3193
  %v3249 = vmul.f32 %v3063, %v3197
  %v3250 = vmul.f32 %v3064, %v3193
  %v3251 = vmul.f32 %v3065, %v3197
  %v3252 = vmul.f32 %v3066, %v3193
  %v3253 = vmul.f32 %v3067, %v3197
  %v3254 = vmul.f32 %v3068, %v3193
  %v3255 = vmul.f32 %v3069, %v3197
  %v3256 = vmul.f32 %v3070, %v3193
  %v3257 = vmul.f32 %v3071, %v3197
  %v3258 = vmul.f32 %v3072, %v3193
  %v3259 = vmul.f32 %v3073, %v3197
  %v3260 = vmul.f32 %v3074, %v3193
  %v3261 = vmul.f32 %v3075, %v3197
  %v3262 = vmul.f32 %v3076, %v3193
  %v3263 = vmul.f32 %v3077, %v3197
  %v3264 = vmul.f32 %v3078, %v3193
  %v3265 = vmul.f32 %v3079, %v3197
  %v3266 = vmul.f32 %v3080, %v3193
  %v3267 = vmul.f32 %v3081, %v3197
  %v3268 = vmul.f32 %v3082, %v3193
  %v3269 = vmul.f32 %v3083, %v3197
  %v3270 = vmul.f32 %v3084, %v3193
  %v3271 = vmul.f32 %v3085, %v3197
  %v3272 = vmul.f32 %v3086, %v3193
  %v3273 = vmul.f32 %v3087, %v3197
  %v3274 = vmul.f32 %v3088, %v3193
  %v3275 = vmul.f32 %v3089, %v3197
  %v3276 = vmul.f32 %v3090, %v3193
  %v3277 = vmul.f32 %v3091, %v3197
  %v3278 = vmul.f32 %v3092, %v3193
  %v3279 = vmul.f32 %v3093, %v3197
  %v3280 = vmul.f32 %v3094, %v3193
  %v3281 = vmul.f32 %v3095, %v3197
  %v3282 = vmul.f32 %v3096, %v3193
  %v3283 = vmul.f32 %v3097, %v3197
  %v3284 = vmul.f32 %v3098, %v3193
  %v3285 = vmul.f32 %v3099, %v3197
  %v3286 = vmul.f32 %v3100, %v3193
  %v3287 = vmul.f32 %v3101, %v3197
  %v3288 = vmul.f32 %v3102, %v3193
  %v3289 = vmul.f32 %v3103, %v3197
  %v3290 = vmul.f32 %v3104, %v3193
  %v3291 = vmul.f32 %v3105, %v3197
  %v3292 = vmul.f32 %v3106, %v3193
  %v3293 = vmul.f32 %v3107, %v3197
  %v3294 = vmul.f32 %v3108, %v3193
  %v3295 = vmul.f32 %v3109, %v3197
  %v3296 = vmul.f32 %v3110, %v3193
  %v3297 = vmul.f32 %v3111, %v3197
  %v3298 = vmul.f32 %v3112, %v3193
  %v3299 = vmul.f32 %v3113, %v3197
  %v3300 = vmul.f32 %v3114, %v3193
  %v3301 = vmul.f32 %v3115, %v3197
  %v3302 = vmul.f32 %v3116, %v3193
  %v3303 = vmul.f32 %v3117, %v3197
  %v3304 = vmul.f32 %v3118, %v3193
  %v3305 = vmul.f32 %v3119, %v3197
  %v3306 = vmul.f32 %v3120, %v3193
  %v3307 = vmul.f32 %v3121, %v3197
  %v3308 = vmul.f32 %v3122, %v3193
  %v3309 = vmul.f32 %v3123, %v3197
  %v3310 = vmul.f32 %v3124, %v3193
  %v3311 = vmul.f32 %v3125, %v3197
  %v3312 = vmul.f32 %v3126, %v3193
  %v3313 = vmul.f32 %v3127, %v3197
  %v3314 = vmul.f32 %v3128, %v3193
  %v3315 = vmul.f32 %v3129, %v3197
  %v3316 = vmul.f32 %v3130, %v3193
  %v3317 = vmul.f32 %v3131, %v3197
  %v3318 = vmul.f32 %v3132, %v3193
  %v3319 = vmul.f32 %v3133, %v3197
  %v3320 = vmul.f32 %v3134, %v3193
  %v3321 = vmul.f32 %v3135, %v3197
  %v3322 = vmul.f32 %v3136, %v3193
  %v3323 = vmul.f32 %v3137, %v3197
  %v3324 = vmul.f32 %v3138, %v3193
  %v3325 = vmul.f32 %v3139, %v3197
  %v3326 = vmul.f32 %v3140, %v3193
  %v3327 = vmul.f32 %v3141, %v3197
  %v3328 = vmul.f32 %v3142, %v3193
  %v3329 = vmul.f32 %v3143, %v3197
  %v3330 = vmul.f32 %v3144, %v3193
  %v3331 = vmul.f32 %v3145, %v3197
  %v3332 = vmul.f32 %v3146, %v3193
  %v3333 = vmul.f32 %v3147, %v3197
  %v3334 = vmul.f32 %v3148, %v3193
  %v3335 = vmul.f32 %v3149, %v3197
  %v3336 = vmul.f32 %v3150, %v3193
  %v3337 = vmul.f32 %v3151, %v3197
  %v3338 = vmul.f32 %v3152, %v3193
  %v3339 = vmul.f32 %v3153, %v3197
  %v3340 = vmul.f32 %v3154, %v3193
  %v3341 = vmul.f32 %v3155, %v3197
  %v3342 = vmul.f32 %v3156, %v3193
  %v3343 = vmul.f32 %v3157, %v3197
  %v3344 = vmul.f32 %v3158, %v3193
  %v3345 = vmul.f32 %v3159, %v3197
  %v3346 = vmul.f32 %v3160, %v3193
  %v3347 = vmul.f32 %v3161, %v3197
  %v3348 = vmul.f32 %v3162, %v3193
  %v3349 = vmul.f32 %v3163, %v3197
  %v3350 = vmul.f32 %v3164, %v3193
  %v3351 = vmul.f32 %v3165, %v3197
  %v3352 = vmul.f32 %v3166, %v3193
  %v3353 = vmul.f32 %v3167, %v3197
  %v3354 = vmul.f32 %v3168, %v3193
  %v3355 = vmul.f32 %v3169, %v3197
  %v3356 = vmul.f32 %v3170, %v3193
  %v3357 = vmul.f32 %v3171, %v3197
  %v3358 = vmul.f32 %v3172, %v3193
  %v3359 = vmul.f32 %v3173, %v3197
  %v3360 = vmul.f32 %v3174, %v3193
  %v3361 = vmul.f32 %v3175, %v3197
  %v3362 = vmul.f32 %v3176, %v3193
  %v3363 = vmul.f32 %v3177, %v3197
  %v3364 = vmul.f32 %v3178, %v3193
  %v3365 = vmul.f32 %v3179, %v3197
  %v3366 = vadd.f32 %v3198, %v3199
  %3367 = vadd.xlane.f32.xlu0 %v3366
  %v3368 = vpop.xlane.xlu0 %3367
  %v3369 = vadd.f32 %v3200, %v3201
  %3370 = vadd.xlane.f32.xlu0 %v3369
  %v3371 = vpop.xlane.xlu0 %3370
  %v3372 = vadd.f32 %v3202, %v3203
  %3373 = vadd.xlane.f32.xlu0 %v3372
  %v3374 = vpop.xlane.xlu0 %3373
  %v3375 = vadd.f32 %v3204, %v3205
  %3376 = vadd.xlane.f32.xlu0 %v3375
  %v3377 = vpop.xlane.xlu0 %3376
  %v3378 = vadd.f32 %v3206, %v3207
  %3379 = vadd.xlane.f32.xlu0 %v3378
  %v3380 = vpop.xlane.xlu0 %3379
  %v3381 = vadd.f32 %v3208, %v3209
  %3382 = vadd.xlane.f32.xlu0 %v3381
  %v3383 = vpop.xlane.xlu0 %3382
  %v3384 = vadd.f32 %v3210, %v3211
  %3385 = vadd.xlane.f32.xlu0 %v3384
  %v3386 = vpop.xlane.xlu0 %3385
  %v3387 = vadd.f32 %v3212, %v3213
  %3388 = vadd.xlane.f32.xlu0 %v3387
  %v3389 = vpop.xlane.xlu0 %3388
  %v3390 = vadd.f32 %v3214, %v3215
  %3391 = vadd.xlane.f32.xlu0 %v3390
  %v3392 = vpop.xlane.xlu0 %3391
  %v3393 = vadd.f32 %v3216, %v3217
  %3394 = vadd.xlane.f32.xlu0 %v3393
  %v3395 = vpop.xlane.xlu0 %3394
  %v3396 = vadd.f32 %v3218, %v3219
  %3397 = vadd.xlane.f32.xlu0 %v3396
  %v3398 = vpop.xlane.xlu0 %3397
  %v3399 = vadd.f32 %v3220, %v3221
  %3400 = vadd.xlane.f32.xlu0 %v3399
  %v3401 = vpop.xlane.xlu0 %3400
  %v3402 = vadd.f32 %v3222, %v3223
  %3403 = vadd.xlane.f32.xlu0 %v3402
  %v3404 = vpop.xlane.xlu0 %3403
  %v3405 = vadd.f32 %v3224, %v3225
  %3406 = vadd.xlane.f32.xlu0 %v3405
  %v3407 = vpop.xlane.xlu0 %3406
  %v3408 = vadd.f32 %v3226, %v3227
  %3409 = vadd.xlane.f32.xlu0 %v3408
  %v3410 = vpop.xlane.xlu0 %3409
  %v3411 = vadd.f32 %v3228, %v3229
  %3412 = vadd.xlane.f32.xlu0 %v3411
  %v3413 = vpop.xlane.xlu0 %3412
  %v3414 = vadd.f32 %v3230, %v3231
  %3415 = vadd.xlane.f32.xlu0 %v3414
  %v3416 = vpop.xlane.xlu0 %3415
  %v3417 = vadd.f32 %v3232, %v3233
  %3418 = vadd.xlane.f32.xlu0 %v3417
  %v3419 = vpop.xlane.xlu0 %3418
  %v3420 = vadd.f32 %v3234, %v3235
  %3421 = vadd.xlane.f32.xlu0 %v3420
  %v3422 = vpop.xlane.xlu0 %3421
  %v3423 = vadd.f32 %v3236, %v3237
  %3424 = vadd.xlane.f32.xlu0 %v3423
  %v3425 = vpop.xlane.xlu0 %3424
  %v3426 = vadd.f32 %v3238, %v3239
  %3427 = vadd.xlane.f32.xlu0 %v3426
  %v3428 = vpop.xlane.xlu0 %3427
  %v3429 = vadd.f32 %v3240, %v3241
  %3430 = vadd.xlane.f32.xlu0 %v3429
  %v3431 = vpop.xlane.xlu0 %3430
  %v3432 = vadd.f32 %v3242, %v3243
  %3433 = vadd.xlane.f32.xlu0 %v3432
  %v3434 = vpop.xlane.xlu0 %3433
  %v3435 = vadd.f32 %v3244, %v3245
  %3436 = vadd.xlane.f32.xlu0 %v3435
  %v3437 = vpop.xlane.xlu0 %3436
  %v3438 = vadd.f32 %v3246, %v3247
  %3439 = vadd.xlane.f32.xlu0 %v3438
  %v3440 = vpop.xlane.xlu0 %3439
  %v3441 = vadd.f32 %v3248, %v3249
  %3442 = vadd.xlane.f32.xlu0 %v3441
  %v3443 = vpop.xlane.xlu0 %3442
  %v3444 = vadd.f32 %v3250, %v3251
  %3445 = vadd.xlane.f32.xlu0 %v3444
  %v3446 = vpop.xlane.xlu0 %3445
  %v3447 = vadd.f32 %v3252, %v3253
  %3448 = vadd.xlane.f32.xlu0 %v3447
  %v3449 = vpop.xlane.xlu0 %3448
  %v3450 = vadd.f32 %v3254, %v3255
  %3451 = vadd.xlane.f32.xlu0 %v3450
  %v3452 = vpop.xlane.xlu0 %3451
  %v3453 = vadd.f32 %v3256, %v3257
  %3454 = vadd.xlane.f32.xlu0 %v3453
  %v3455 = vpop.xlane.xlu0 %3454
  %v3456 = vadd.f32 %v3258, %v3259
  %3457 = vadd.xlane.f32.xlu0 %v3456
  %v3458 = vpop.xlane.xlu0 %3457
  %v3459 = vadd.f32 %v3260, %v3261
  %3460 = vadd.xlane.f32.xlu0 %v3459
  %v3461 = vpop.xlane.xlu0 %3460
  %v3462 = vadd.f32 %v3262, %v3263
  %3463 = vadd.xlane.f32.xlu0 %v3462
  %v3464 = vpop.xlane.xlu0 %3463
  %v3465 = vadd.f32 %v3264, %v3265
  %3466 = vadd.xlane.f32.xlu0 %v3465
  %v3467 = vpop.xlane.xlu0 %3466
  %v3468 = vadd.f32 %v3266, %v3267
  %3469 = vadd.xlane.f32.xlu0 %v3468
  %v3470 = vpop.xlane.xlu0 %3469
  %v3471 = vadd.f32 %v3268, %v3269
  %3472 = vadd.xlane.f32.xlu0 %v3471
  %v3473 = vpop.xlane.xlu0 %3472
  %v3474 = vadd.f32 %v3270, %v3271
  %3475 = vadd.xlane.f32.xlu0 %v3474
  %v3476 = vpop.xlane.xlu0 %3475
  %v3477 = vadd.f32 %v3272, %v3273
  %3478 = vadd.xlane.f32.xlu0 %v3477
  %v3479 = vpop.xlane.xlu0 %3478
  %v3480 = vadd.f32 %v3274, %v3275
  %3481 = vadd.xlane.f32.xlu0 %v3480
  %v3482 = vpop.xlane.xlu0 %3481
  %v3483 = vadd.f32 %v3276, %v3277
  %3484 = vadd.xlane.f32.xlu0 %v3483
  %v3485 = vpop.xlane.xlu0 %3484
  %v3486 = vadd.f32 %v3278, %v3279
  %3487 = vadd.xlane.f32.xlu0 %v3486
  %v3488 = vpop.xlane.xlu0 %3487
  %v3489 = vadd.f32 %v3280, %v3281
  %3490 = vadd.xlane.f32.xlu0 %v3489
  %v3491 = vpop.xlane.xlu0 %3490
  %v3492 = vadd.f32 %v3282, %v3283
  %3493 = vadd.xlane.f32.xlu0 %v3492
  %v3494 = vpop.xlane.xlu0 %3493
  %v3495 = vadd.f32 %v3284, %v3285
  %3496 = vadd.xlane.f32.xlu0 %v3495
  %v3497 = vpop.xlane.xlu0 %3496
  %v3498 = vadd.f32 %v3286, %v3287
  %3499 = vadd.xlane.f32.xlu0 %v3498
  %v3500 = vpop.xlane.xlu0 %3499
  %v3501 = vadd.f32 %v3288, %v3289
  %3502 = vadd.xlane.f32.xlu0 %v3501
  %v3503 = vpop.xlane.xlu0 %3502
  %v3504 = vadd.f32 %v3290, %v3291
  %3505 = vadd.xlane.f32.xlu0 %v3504
  %v3506 = vpop.xlane.xlu0 %3505
  %v3507 = vadd.f32 %v3292, %v3293
  %3508 = vadd.xlane.f32.xlu0 %v3507
  %v3509 = vpop.xlane.xlu0 %3508
  %v3510 = vadd.f32 %v3294, %v3295
  %3511 = vadd.xlane.f32.xlu0 %v3510
  %v3512 = vpop.xlane.xlu0 %3511
  %v3513 = vadd.f32 %v3296, %v3297
  %3514 = vadd.xlane.f32.xlu0 %v3513
  %v3515 = vpop.xlane.xlu0 %3514
  %v3516 = vadd.f32 %v3298, %v3299
  %3517 = vadd.xlane.f32.xlu0 %v3516
  %v3518 = vpop.xlane.xlu0 %3517
  %v3519 = vadd.f32 %v3300, %v3301
  %3520 = vadd.xlane.f32.xlu0 %v3519
  %v3521 = vpop.xlane.xlu0 %3520
  %v3522 = vadd.f32 %v3302, %v3303
  %3523 = vadd.xlane.f32.xlu0 %v3522
  %v3524 = vpop.xlane.xlu0 %3523
  %v3525 = vadd.f32 %v3304, %v3305
  %3526 = vadd.xlane.f32.xlu0 %v3525
  %v3527 = vpop.xlane.xlu0 %3526
  %v3528 = vadd.f32 %v3306, %v3307
  %3529 = vadd.xlane.f32.xlu0 %v3528
  %v3530 = vpop.xlane.xlu0 %3529
  %v3531 = vadd.f32 %v3308, %v3309
  %3532 = vadd.xlane.f32.xlu0 %v3531
  %v3533 = vpop.xlane.xlu0 %3532
  %v3534 = vadd.f32 %v3310, %v3311
  %3535 = vadd.xlane.f32.xlu0 %v3534
  %v3536 = vpop.xlane.xlu0 %3535
  %v3537 = vadd.f32 %v3312, %v3313
  %3538 = vadd.xlane.f32.xlu0 %v3537
  %v3539 = vpop.xlane.xlu0 %3538
  %v3540 = vadd.f32 %v3314, %v3315
  %3541 = vadd.xlane.f32.xlu0 %v3540
  %v3542 = vpop.xlane.xlu0 %3541
  %v3543 = vadd.f32 %v3316, %v3317
  %3544 = vadd.xlane.f32.xlu0 %v3543
  %v3545 = vpop.xlane.xlu0 %3544
  %v3546 = vadd.f32 %v3318, %v3319
  %3547 = vadd.xlane.f32.xlu0 %v3546
  %v3548 = vpop.xlane.xlu0 %3547
  %v3549 = vadd.f32 %v3320, %v3321
  %3550 = vadd.xlane.f32.xlu0 %v3549
  %v3551 = vpop.xlane.xlu0 %3550
  %v3552 = vadd.f32 %v3322, %v3323
  %3553 = vadd.xlane.f32.xlu0 %v3552
  %v3554 = vpop.xlane.xlu0 %3553
  %v3555 = vadd.f32 %v3324, %v3325
  %3556 = vadd.xlane.f32.xlu0 %v3555
  %v3557 = vpop.xlane.xlu0 %3556
  %v3558 = vadd.f32 %v3326, %v3327
  %3559 = vadd.xlane.f32.xlu0 %v3558
  %v3560 = vpop.xlane.xlu0 %3559
  %v3561 = vadd.f32 %v3328, %v3329
  %3562 = vadd.xlane.f32.xlu0 %v3561
  %v3563 = vpop.xlane.xlu0 %3562
  %v3564 = vadd.f32 %v3330, %v3331
  %3565 = vadd.xlane.f32.xlu0 %v3564
  %v3566 = vpop.xlane.xlu0 %3565
  %v3567 = vadd.f32 %v3332, %v3333
  %3568 = vadd.xlane.f32.xlu0 %v3567
  %v3569 = vpop.xlane.xlu0 %3568
  %v3570 = vadd.f32 %v3334, %v3335
  %3571 = vadd.xlane.f32.xlu0 %v3570
  %v3572 = vpop.xlane.xlu0 %3571
  %v3573 = vadd.f32 %v3336, %v3337
  %3574 = vadd.xlane.f32.xlu0 %v3573
  %v3575 = vpop.xlane.xlu0 %3574
  %v3576 = vadd.f32 %v3338, %v3339
  %3577 = vadd.xlane.f32.xlu0 %v3576
  %v3578 = vpop.xlane.xlu0 %3577
  %v3579 = vadd.f32 %v3340, %v3341
  %3580 = vadd.xlane.f32.xlu0 %v3579
  %v3581 = vpop.xlane.xlu0 %3580
  %v3582 = vadd.f32 %v3342, %v3343
  %3583 = vadd.xlane.f32.xlu0 %v3582
  %v3584 = vpop.xlane.xlu0 %3583
  %v3585 = vadd.f32 %v3344, %v3345
  %3586 = vadd.xlane.f32.xlu0 %v3585
  %v3587 = vpop.xlane.xlu0 %3586
  %v3588 = vadd.f32 %v3346, %v3347
  %3589 = vadd.xlane.f32.xlu0 %v3588
  %v3590 = vpop.xlane.xlu0 %3589
  %v3591 = vadd.f32 %v3348, %v3349
  %3592 = vadd.xlane.f32.xlu0 %v3591
  %v3593 = vpop.xlane.xlu0 %3592
  %v3594 = vadd.f32 %v3350, %v3351
  %3595 = vadd.xlane.f32.xlu0 %v3594
  %v3596 = vpop.xlane.xlu0 %3595
  %v3597 = vadd.f32 %v3352, %v3353
  %3598 = vadd.xlane.f32.xlu0 %v3597
  %v3599 = vpop.xlane.xlu0 %3598
  %v3600 = vadd.f32 %v3354, %v3355
  %3601 = vadd.xlane.f32.xlu0 %v3600
  %v3602 = vpop.xlane.xlu0 %3601
  %v3603 = vadd.f32 %v3356, %v3357
  %3604 = vadd.xlane.f32.xlu0 %v3603
  %v3605 = vpop.xlane.xlu0 %3604
  %v3606 = vadd.f32 %v3358, %v3359
  %3607 = vadd.xlane.f32.xlu0 %v3606
  %v3608 = vpop.xlane.xlu0 %3607
  %v3609 = vadd.f32 %v3360, %v3361
  %3610 = vadd.xlane.f32.xlu0 %v3609
  %v3611 = vpop.xlane.xlu0 %3610
  %v3612 = vadd.f32 %v3362, %v3363
  %3613 = vadd.xlane.f32.xlu0 %v3612
  %v3614 = vpop.xlane.xlu0 %3613
  %v3615 = vadd.f32 %v3364, %v3365
  %3616 = vadd.xlane.f32.xlu0 %v3615
  %v3617 = vpop.xlane.xlu0 %3616
  %s3618 = sld [smem:[#allocation2]]
  %v3619 = vstv %s3618
  %v3620 = vadd.f32 %v3368, %v3619
  %v3621 = vadd.f32 %v3371, %v3619
  %v3622 = vadd.f32 %v3374, %v3619
  %v3623 = vadd.f32 %v3377, %v3619
  %v3624 = vadd.f32 %v3380, %v3619
  %v3625 = vadd.f32 %v3383, %v3619
  %v3626 = vadd.f32 %v3386, %v3619
  %v3627 = vadd.f32 %v3389, %v3619
  %v3628 = vadd.f32 %v3392, %v3619
  %v3629 = vadd.f32 %v3395, %v3619
  %v3630 = vadd.f32 %v3398, %v3619
  %v3631 = vadd.f32 %v3401, %v3619
  %v3632 = vadd.f32 %v3404, %v3619
  %v3633 = vadd.f32 %v3407, %v3619
  %v3634 = vadd.f32 %v3410, %v3619
  %v3635 = vadd.f32 %v3413, %v3619
  %v3636 = vadd.f32 %v3416, %v3619
  %v3637 = vadd.f32 %v3419, %v3619
  %v3638 = vadd.f32 %v3422, %v3619
  %v3639 = vadd.f32 %v3425, %v3619
  %v3640 = vadd.f32 %v3428, %v3619
  %v3641 = vadd.f32 %v3431, %v3619
  %v3642 = vadd.f32 %v3434, %v3619
  %v3643 = vadd.f32 %v3437, %v3619
  %v3644 = vadd.f32 %v3440, %v3619
  %v3645 = vadd.f32 %v3443, %v3619
  %v3646 = vadd.f32 %v3446, %v3619
  %v3647 = vadd.f32 %v3449, %v3619
  %v3648 = vadd.f32 %v3452, %v3619
  %v3649 = vadd.f32 %v3455, %v3619
  %v3650 = vadd.f32 %v3458, %v3619
  %v3651 = vadd.f32 %v3461, %v3619
  %v3652 = vadd.f32 %v3464, %v3619
  %v3653 = vadd.f32 %v3467, %v3619
  %v3654 = vadd.f32 %v3470, %v3619
  %v3655 = vadd.f32 %v3473, %v3619
  %v3656 = vadd.f32 %v3476, %v3619
  %v3657 = vadd.f32 %v3479, %v3619
  %v3658 = vadd.f32 %v3482, %v3619
  %v3659 = vadd.f32 %v3485, %v3619
  %v3660 = vadd.f32 %v3488, %v3619
  %v3661 = vadd.f32 %v3491, %v3619
  %v3662 = vadd.f32 %v3494, %v3619
  %v3663 = vadd.f32 %v3497, %v3619
  %v3664 = vadd.f32 %v3500, %v3619
  %v3665 = vadd.f32 %v3503, %v3619
  %v3666 = vadd.f32 %v3506, %v3619
  %v3667 = vadd.f32 %v3509, %v3619
  %v3668 = vadd.f32 %v3512, %v3619
  %v3669 = vadd.f32 %v3515, %v3619
  %v3670 = vadd.f32 %v3518, %v3619
  %v3671 = vadd.f32 %v3521, %v3619
  %v3672 = vadd.f32 %v3524, %v3619
  %v3673 = vadd.f32 %v3527, %v3619
  %v3674 = vadd.f32 %v3530, %v3619
  %v3675 = vadd.f32 %v3533, %v3619
  %v3676 = vadd.f32 %v3536, %v3619
  %v3677 = vadd.f32 %v3539, %v3619
  %v3678 = vadd.f32 %v3542, %v3619
  %v3679 = vadd.f32 %v3545, %v3619
  %v3680 = vadd.f32 %v3548, %v3619
  %v3681 = vadd.f32 %v3551, %v3619
  %v3682 = vadd.f32 %v3554, %v3619
  %v3683 = vadd.f32 %v3557, %v3619
  %v3684 = vadd.f32 %v3560, %v3619
  %v3685 = vadd.f32 %v3563, %v3619
  %v3686 = vadd.f32 %v3566, %v3619
  %v3687 = vadd.f32 %v3569, %v3619
  %v3688 = vadd.f32 %v3572, %v3619
  %v3689 = vadd.f32 %v3575, %v3619
  %v3690 = vadd.f32 %v3578, %v3619
  %v3691 = vadd.f32 %v3581, %v3619
  %v3692 = vadd.f32 %v3584, %v3619
  %v3693 = vadd.f32 %v3587, %v3619
  %v3694 = vadd.f32 %v3590, %v3619
  %v3695 = vadd.f32 %v3593, %v3619
  %v3696 = vadd.f32 %v3596, %v3619
  %v3697 = vadd.f32 %v3599, %v3619
  %v3698 = vadd.f32 %v3602, %v3619
  %v3699 = vadd.f32 %v3605, %v3619
  %v3700 = vadd.f32 %v3608, %v3619
  %v3701 = vadd.f32 %v3611, %v3619
  %v3702 = vadd.f32 %v3614, %v3619
  %v3703 = vadd.f32 %v3617, %v3619
  %vm3704 = vcmask 7168
  %3705 = vst.msk [vmem:[%s5] sm:$0xff] %vm3704, %v3620
  %3706 = vst.msk [vmem:[%s5 + $0x8] sm:$0xff] %vm3704, %v3621
  %3707 = vst.msk [vmem:[%s5 + $0x10] sm:$0xff] %vm3704, %v3622
  %3708 = vst.msk [vmem:[%s5 + $0x18] sm:$0xff] %vm3704, %v3623
  %3709 = vst.msk [vmem:[%s5 + $0x20] sm:$0xff] %vm3704, %v3624
  %3710 = vst.msk [vmem:[%s5 + $0x28] sm:$0xff] %vm3704, %v3625
  %3711 = vst.msk [vmem:[%s5 + $0x30] sm:$0xff] %vm3704, %v3626
  %3712 = vst.msk [vmem:[%s5 + $0x38] sm:$0xff] %vm3704, %v3627
  %3713 = vst.msk [vmem:[%s5 + $0x40] sm:$0xff] %vm3704, %v3628
  %3714 = vst.msk [vmem:[%s5 + $0x48] sm:$0xff] %vm3704, %v3629
  %3715 = vst.msk [vmem:[%s5 + $0x50] sm:$0xff] %vm3704, %v3630
  %3716 = vst.msk [vmem:[%s5 + $0x58] sm:$0xff] %vm3704, %v3631
  %3717 = vst.msk [vmem:[%s5 + $0x60] sm:$0xff] %vm3704, %v3632
  %3718 = vst.msk [vmem:[%s5 + $0x68] sm:$0xff] %vm3704, %v3633
  %3719 = vst.msk [vmem:[%s5 + $0x70] sm:$0xff] %vm3704, %v3634
  %3720 = vst.msk [vmem:[%s5 + $0x78] sm:$0xff] %vm3704, %v3635
  %3721 = vst.msk [vmem:[%s5 + $0x80] sm:$0xff] %vm3704, %v3636
  %3722 = vst.msk [vmem:[%s5 + $0x88] sm:$0xff] %vm3704, %v3637
  %3723 = vst.msk [vmem:[%s5 + $0x90] sm:$0xff] %vm3704, %v3638
  %3724 = vst.msk [vmem:[%s5 + $0x98] sm:$0xff] %vm3704, %v3639
  %3725 = vst.msk [vmem:[%s5 + $0xa0] sm:$0xff] %vm3704, %v3640
  %3726 = vst.msk [vmem:[%s5 + $0xa8] sm:$0xff] %vm3704, %v3641
  %3727 = vst.msk [vmem:[%s5 + $0xb0] sm:$0xff] %vm3704, %v3642
  %3728 = vst.msk [vmem:[%s5 + $0xb8] sm:$0xff] %vm3704, %v3643
  %3729 = vst.msk [vmem:[%s5 + $0xc0] sm:$0xff] %vm3704, %v3644
  %3730 = vst.msk [vmem:[%s5 + $0xc8] sm:$0xff] %vm3704, %v3645
  %3731 = vst.msk [vmem:[%s5 + $0xd0] sm:$0xff] %vm3704, %v3646
  %3732 = vst.msk [vmem:[%s5 + $0xd8] sm:$0xff] %vm3704, %v3647
  %3733 = vst.msk [vmem:[%s5 + $0xe0] sm:$0xff] %vm3704, %v3648
  %3734 = vst.msk [vmem:[%s5 + $0xe8] sm:$0xff] %vm3704, %v3649
  %3735 = vst.msk [vmem:[%s5 + $0xf0] sm:$0xff] %vm3704, %v3650
  %3736 = vst.msk [vmem:[%s5 + $0xf8] sm:$0xff] %vm3704, %v3651
  %3737 = vst.msk [vmem:[%s5 + $0x100] sm:$0xff] %vm3704, %v3652
  %3738 = vst.msk [vmem:[%s5 + $0x108] sm:$0xff] %vm3704, %v3653
  %3739 = vst.msk [vmem:[%s5 + $0x110] sm:$0xff] %vm3704, %v3654
  %3740 = vst.msk [vmem:[%s5 + $0x118] sm:$0xff] %vm3704, %v3655
  %3741 = vst.msk [vmem:[%s5 + $0x120] sm:$0xff] %vm3704, %v3656
  %3742 = vst.msk [vmem:[%s5 + $0x128] sm:$0xff] %vm3704, %v3657
  %3743 = vst.msk [vmem:[%s5 + $0x130] sm:$0xff] %vm3704, %v3658
  %3744 = vst.msk [vmem:[%s5 + $0x138] sm:$0xff] %vm3704, %v3659
  %3745 = vst.msk [vmem:[%s5 + $0x140] sm:$0xff] %vm3704, %v3660
  %3746 = vst.msk [vmem:[%s5 + $0x148] sm:$0xff] %vm3704, %v3661
  %3747 = vst.msk [vmem:[%s5 + $0x150] sm:$0xff] %vm3704, %v3662
  %3748 = vst.msk [vmem:[%s5 + $0x158] sm:$0xff] %vm3704, %v3663
  %3749 = vst.msk [vmem:[%s5 + $0x160] sm:$0xff] %vm3704, %v3664
  %3750 = vst.msk [vmem:[%s5 + $0x168] sm:$0xff] %vm3704, %v3665
  %3751 = vst.msk [vmem:[%s5 + $0x170] sm:$0xff] %vm3704, %v3666
  %3752 = vst.msk [vmem:[%s5 + $0x178] sm:$0xff] %vm3704, %v3667
  %3753 = vst.msk [vmem:[%s5 + $0x180] sm:$0xff] %vm3704, %v3668
  %3754 = vst.msk [vmem:[%s5 + $0x188] sm:$0xff] %vm3704, %v3669
  %3755 = vst.msk [vmem:[%s5 + $0x190] sm:$0xff] %vm3704, %v3670
  %3756 = vst.msk [vmem:[%s5 + $0x198] sm:$0xff] %vm3704, %v3671
  %3757 = vst.msk [vmem:[%s5 + $0x1a0] sm:$0xff] %vm3704, %v3672
  %3758 = vst.msk [vmem:[%s5 + $0x1a8] sm:$0xff] %vm3704, %v3673
  %3759 = vst.msk [vmem:[%s5 + $0x1b0] sm:$0xff] %vm3704, %v3674
  %3760 = vst.msk [vmem:[%s5 + $0x1b8] sm:$0xff] %vm3704, %v3675
  %3761 = vst.msk [vmem:[%s5 + $0x1c0] sm:$0xff] %vm3704, %v3676
  %3762 = vst.msk [vmem:[%s5 + $0x1c8] sm:$0xff] %vm3704, %v3677
  %3763 = vst.msk [vmem:[%s5 + $0x1d0] sm:$0xff] %vm3704, %v3678
  %3764 = vst.msk [vmem:[%s5 + $0x1d8] sm:$0xff] %vm3704, %v3679
  %3765 = vst.msk [vmem:[%s5 + $0x1e0] sm:$0xff] %vm3704, %v3680
  %3766 = vst.msk [vmem:[%s5 + $0x1e8] sm:$0xff] %vm3704, %v3681
  %3767 = vst.msk [vmem:[%s5 + $0x1f0] sm:$0xff] %vm3704, %v3682
  %3768 = vst.msk [vmem:[%s5 + $0x1f8] sm:$0xff] %vm3704, %v3683
  %3769 = vst.msk [vmem:[%s5 + $0x200] sm:$0xff] %vm3704, %v3684
  %3770 = vst.msk [vmem:[%s5 + $0x208] sm:$0xff] %vm3704, %v3685
  %3771 = vst.msk [vmem:[%s5 + $0x210] sm:$0xff] %vm3704, %v3686
  %3772 = vst.msk [vmem:[%s5 + $0x218] sm:$0xff] %vm3704, %v3687
  %3773 = vst.msk [vmem:[%s5 + $0x220] sm:$0xff] %vm3704, %v3688
  %3774 = vst.msk [vmem:[%s5 + $0x228] sm:$0xff] %vm3704, %v3689
  %3775 = vst.msk [vmem:[%s5 + $0x230] sm:$0xff] %vm3704, %v3690
  %3776 = vst.msk [vmem:[%s5 + $0x238] sm:$0xff] %vm3704, %v3691
  %3777 = vst.msk [vmem:[%s5 + $0x240] sm:$0xff] %vm3704, %v3692
  %3778 = vst.msk [vmem:[%s5 + $0x248] sm:$0xff] %vm3704, %v3693
  %3779 = vst.msk [vmem:[%s5 + $0x250] sm:$0xff] %vm3704, %v3694
  %3780 = vst.msk [vmem:[%s5 + $0x258] sm:$0xff] %vm3704, %v3695
  %3781 = vst.msk [vmem:[%s5 + $0x260] sm:$0xff] %vm3704, %v3696
  %3782 = vst.msk [vmem:[%s5 + $0x268] sm:$0xff] %vm3704, %v3697
  %3783 = vst.msk [vmem:[%s5 + $0x270] sm:$0xff] %vm3704, %v3698
  %3784 = vst.msk [vmem:[%s5 + $0x278] sm:$0xff] %vm3704, %v3699
  %3785 = vst.msk [vmem:[%s5 + $0x280] sm:$0xff] %vm3704, %v3700
  %3786 = vst.msk [vmem:[%s5 + $0x288] sm:$0xff] %vm3704, %v3701
  %3787 = vst.msk [vmem:[%s5 + $0x290] sm:$0xff] %vm3704, %v3702
  %3788 = vst.msk [vmem:[%s5 + $0x298] sm:$0xff] %vm3704, %v3703
  // Predicated region
  $region22: #{discriminator_forward.1} parent=0 // pred_check
    _
  $region23: #{discriminator_forward.1} parent=0 // pred_check_branch
    %3790 = sbr.rel (0) target = $region25
  $region24: #{discriminator_forward.1} parent=0 // pred_region
    _
  $region25: #{discriminator_forward.1} parent=0 // pred_fallthru
    _
  // Predicated region
  $region26: #{discriminator_forward.1} parent=0 // pred_check
    _
  $region27: #{discriminator_forward.1} parent=0 // pred_check_branch
    %3792 = sbr.rel (0) target = $region29
  $region28: #{discriminator_forward.1} parent=0 // pred_region
    _
  $region29: #{discriminator_forward.1} parent=0 // pred_fallthru
    _

</llo_original>
